<compile_context>
chip_gen: v6e
topology: v6e:2x2x1
jax: 0.10.0
libtpu: 0.0.40
codegen_flags: <defaults>
</compile_context>

<pallas_src>
import math
from functools import partial

import jax
import jax.numpy as jnp
from jax.experimental import pallas as pl
from jax.experimental.pallas import tpu as pltpu

# ----- module hyperparameters (synthetic, small) -----
VOLUME = 8            # per-token feature size of x
SIZE0, SIZE1, SIZE2 = 8, 16, 4
DEPTH = 2             # number of transformer encoder layers
WIDTH = 64            # model width
NHEAD = max(1, WIDTH // 64)   # = 1
NDENSE = WIDTH * 4    # = 256
LN_EPS = 1e-5
HEAD_PAD = 128        # fused head output padded to a full lane tile

B, S = 2, 8           # batch, sequence length


# ------------------------------------------------------------------ helpers
def _layernorm(h, g, b):
    mu = jnp.mean(h, axis=-1, keepdims=True)
    var = jnp.mean((h - mu) ** 2, axis=-1, keepdims=True)
    return (h - mu) * jax.lax.rsqrt(var + LN_EPS) * g + b


# ------------------------------------------------------------- fused kernel
def fused_kernel(x_ref, mask_ref, pos_ref,
                 w1_ref, b1_ref, g1_ref, be1_ref,
                 w2_ref, b2_ref, g2_ref, be2_ref,
                 wq_ref, wk_ref, wv_ref, bq_ref, bk_ref, bv_ref,
                 wo_ref, bo_ref, lg1_ref, lb1_ref,
                 wf1_ref, bf1_ref, wf2_ref, bf2_ref, lg2_ref, lb2_ref,
                 wh_ref, bh_ref,
                 mem_ref, head_ref, *, depth, nhead):
    # ---- feature expansion + embed MLP -----------------------------------
    x = x_ref[0]                                     # (S, V)
    x1 = x / 3.8
    x2 = x1 * x1
    x3 = x2 * x1
    c, third = 4.0 / 3.0, 1.0 / 3.0
    xx = jnp.concatenate(
        [x1, x2, x3, c / (third + x1), c / (third + x2), c / (third + x3)],
        axis=-1)                                     # (S, 6*V)

    h = jnp.dot(xx, w1_ref[...], preferred_element_type=jnp.float32) + b1_ref[...]
    h = _layernorm(h, g1_ref[...], be1_ref[...])
    h = jnp.maximum(h, 0.0)
    h = jnp.dot(h, w2_ref[...], preferred_element_type=jnp.float32) + b2_ref[...]
    h = _layernorm(h, g2_ref[...], be2_ref[...])
    h = jnp.maximum(h, 0.0)

    # masked_fill_(mask, 0) as 0/1 multiply, then add pre-scaled pos table.
    h = h * (1.0 - mask_ref[0])                      # (S, W) * (S, 1)
    h = h + pos_ref[...]                             # pos already / sqrt(W)

    # ---- transformer encoder layers (post-norm, ReLU FF) ------------------
    w = h.shape[-1]
    hd = w // nhead
    scale = 1.0 / math.sqrt(hd)
    for d in range(depth):                           # DEPTH=2: static unroll
        q = jnp.dot(h, wq_ref[d], preferred_element_type=jnp.float32) + bq_ref[d]
        k = jnp.dot(h, wk_ref[d], preferred_element_type=jnp.float32) + bk_ref[d]
        v = jnp.dot(h, wv_ref[d], preferred_element_type=jnp.float32) + bv_ref[d]

        heads = []
        for hh in range(nhead):
            sl = slice(hh * hd, (hh + 1) * hd)
            qh = q[:, sl] * scale
            s = jax.lax.dot_general(qh, k[:, sl], (((1,), (1,)), ((), ())),
                                    preferred_element_type=jnp.float32)  # (S, S)
            s = s - jnp.max(s, axis=-1, keepdims=True)
            p = jnp.exp(s)
            p = p * pl.reciprocal(jnp.sum(p, axis=-1, keepdims=True), approx=True)
            heads.append(jnp.dot(p, v[:, sl], preferred_element_type=jnp.float32))
        attn = heads[0] if nhead == 1 else jnp.concatenate(heads, axis=-1)
        attn = jnp.dot(attn, wo_ref[d], preferred_element_type=jnp.float32) + bo_ref[d]

        h1 = _layernorm(h + attn, lg1_ref[d], lb1_ref[d])
        ff = jnp.maximum(
            jnp.dot(h1, wf1_ref[d], preferred_element_type=jnp.float32) + bf1_ref[d],
            0.0)
        ff = jnp.dot(ff, wf2_ref[d], preferred_element_type=jnp.float32) + bf2_ref[d]
        h = _layernorm(h1 + ff, lg2_ref[d], lb2_ref[d])

    # ---- mean pool over sequence + fused heads ----------------------------
    mem = jnp.mean(h, axis=0, keepdims=True)         # (1, W)
    mem_ref[0] = mem
    head_ref[0] = (jnp.dot(mem, wh_ref[...], preferred_element_type=jnp.float32)
                   + bh_ref[...])                    # (1, HEAD_PAD) lane-dense


# ------------------------------------------------------------------- params
def init_params(key):
    ks = jax.random.split(key, 16)
    ki = iter(ks)

    def dense_w(k, shape):
        return jax.random.normal(k, shape, jnp.float32) * 0.02

    p = {}
    # embed: Linear(6*V, NDENSE) pre-reshaped to a single (6*V, NDENSE) matrix
    p["w1"] = dense_w(next(ki), (6 * VOLUME, NDENSE))
    p["b1"] = jnp.zeros((1, NDENSE), jnp.float32)
    p["g1"] = jnp.ones((1, NDENSE), jnp.float32)
    p["be1"] = jnp.zeros((1, NDENSE), jnp.float32)
    p["w2"] = dense_w(next(ki), (NDENSE, WIDTH))
    p["b2"] = jnp.zeros((1, WIDTH), jnp.float32)
    p["g2"] = jnp.ones((1, WIDTH), jnp.float32)
    p["be2"] = jnp.zeros((1, WIDTH), jnp.float32)

    # positional table (len_max = 801), pre-scaled by 1/sqrt(width)
    p["pos_table"] = (jax.random.normal(next(ki), (801, WIDTH), jnp.float32)
                      / math.sqrt(WIDTH))

    # encoder layers, stacked over DEPTH
    p["wq"] = dense_w(next(ki), (DEPTH, WIDTH, WIDTH))
    p["wk"] = dense_w(next(ki), (DEPTH, WIDTH, WIDTH))
    p["wv"] = dense_w(next(ki), (DEPTH, WIDTH, WIDTH))
    p["bq"] = jnp.zeros((DEPTH, 1, WIDTH), jnp.float32)
    p["bk"] = jnp.zeros((DEPTH, 1, WIDTH), jnp.float32)
    p["bv"] = jnp.zeros((DEPTH, 1, WIDTH), jnp.float32)
    p["wo"] = dense_w(next(ki), (DEPTH, WIDTH, WIDTH))
    p["bo"] = jnp.zeros((DEPTH, 1, WIDTH), jnp.float32)
    p["ln1_g"] = jnp.ones((DEPTH, 1, WIDTH), jnp.float32)
    p["ln1_b"] = jnp.zeros((DEPTH, 1, WIDTH), jnp.float32)
    p["wf1"] = dense_w(next(ki), (DEPTH, WIDTH, NDENSE))
    p["bf1"] = jnp.zeros((DEPTH, 1, NDENSE), jnp.float32)
    p["wf2"] = dense_w(next(ki), (DEPTH, NDENSE, WIDTH))
    p["bf2"] = jnp.zeros((DEPTH, 1, WIDTH), jnp.float32)
    p["ln2_g"] = jnp.ones((DEPTH, 1, WIDTH), jnp.float32)
    p["ln2_b"] = jnp.zeros((DEPTH, 1, WIDTH), jnp.float32)

    # fused, zero-padded head projection: [out0 | out1 | out2 | 0-pad] (W, 128)
    w0 = dense_w(next(ki), (WIDTH, SIZE0))
    w1h = dense_w(next(ki), (WIDTH, SIZE1))
    w2h = dense_w(next(ki), (WIDTH, SIZE2))
    pad = jnp.zeros((WIDTH, HEAD_PAD - SIZE0 - SIZE1 - SIZE2), jnp.float32)
    p["w_head"] = jnp.concatenate([w0, w1h, w2h, pad], axis=1)
    p["b_head"] = jnp.zeros((1, HEAD_PAD), jnp.float32)
    return p


# ------------------------------------------------------------------ forward
def transnet2_forward(params, x, mask):
    # x: (B, S, VOLUME) float32, mask: (B, S) bool (True = masked-out token)
    b, s, v = x.shape
    maskf = mask.astype(jnp.float32)[:, :, None]          # (B, S, 1)
    pos = params["pos_table"][:s]                         # (S, W), pre-scaled

    weights = (params["w1"], params["b1"], params["g1"], params["be1"],
               params["w2"], params["b2"], params["g2"], params["be2"],
               params["wq"], params["wk"], params["wv"],
               params["bq"], params["bk"], params["bv"],
               params["wo"], params["bo"], params["ln1_g"], params["ln1_b"],
               params["wf1"], params["bf1"], params["wf2"], params["bf2"],
               params["ln2_g"], params["ln2_b"],
               params["w_head"], params["b_head"])

    def shared(a):  # full-array block, same block every grid step (no re-DMA)
        return pl.BlockSpec(a.shape, lambda i, _nd=a.ndim: (0,) * _nd)

    in_specs = [pl.BlockSpec((1, s, v), lambda i: (i, 0, 0)),   # x   (per batch)
                pl.BlockSpec((1, s, 1), lambda i: (i, 0, 0)),   # mask(per batch)
                shared(pos)]
    in_specs += [shared(a) for a in weights]

    out_shapes = (jax.ShapeDtypeStruct((b, 1, WIDTH), jnp.float32),
                  jax.ShapeDtypeStruct((b, 1, HEAD_PAD), jnp.float32))
    out_specs = (pl.BlockSpec((1, 1, WIDTH), lambda i: (i, 0, 0)),
                 pl.BlockSpec((1, 1, HEAD_PAD), lambda i: (i, 0, 0)))

    mem3, head3 = pl.pallas_call(
        partial(fused_kernel, depth=DEPTH, nhead=NHEAD),
        out_shape=out_shapes,
        grid=(b,),
        in_specs=in_specs,
        out_specs=out_specs,
        compiler_params=pltpu.CompilerParams(
            dimension_semantics=("parallel",),        # v7x: batch across 2 TCs
            vmem_limit_bytes=16 * 1024 * 1024),
    )(x, maskf, pos, *weights)

    mem = mem3[:, 0, :]                                   # (B, W)
    head = head3[:, 0, :]                                 # (B, HEAD_PAD)
    out0 = head[:, :SIZE0]
    out1 = head[:, SIZE0:SIZE0 + SIZE1]
    out2 = head[:, SIZE0 + SIZE1:SIZE0 + SIZE1 + SIZE2]
    # TODO(synk): dropout layers are identity (eval mode); not implemented.
    return out0, out1, out2, mem


if __name__ == "__main__":
    key = jax.random.PRNGKey(0)
    kp, kx, km = jax.random.split(key, 3)

    params = init_params(kp)
    x = jax.random.normal(kx, (B, S, VOLUME), jnp.float32)
    mask = jax.random.bernoulli(km, 0.2, (B, S))          # True = masked token

    fwd = jax.jit(transnet2_forward)
    out0, out1, out2, mem = fwd(params, x, mask)
    jax.block_until_ready((out0, out1, out2, mem))

    assert out0.shape == (B, SIZE0)
    assert out1.shape == (B, SIZE1)
    assert out2.shape == (B, SIZE2)
    assert mem.shape == (B, WIDTH)
    assert bool(jnp.all(jnp.isfinite(out0)))
    assert bool(jnp.all(jnp.isfinite(mem)))
    print("KERNEL_OK")
</pallas_src>

<mosaic_0001>
module attributes {stable_mosaic.version = 11 : i64} {
  func.func @fused_kernel(%arg0: i32, %arg1: memref<1x8x8xf32, #tpu.memory_space<vmem>>, %arg2: memref<1x8x1xf32, #tpu.memory_space<vmem>>, %arg3: memref<8x64xf32, #tpu.memory_space<vmem>>, %arg4: memref<48x256xf32, #tpu.memory_space<vmem>>, %arg5: memref<1x256xf32, #tpu.memory_space<vmem>>, %arg6: memref<1x256xf32, #tpu.memory_space<vmem>>, %arg7: memref<1x256xf32, #tpu.memory_space<vmem>>, %arg8: memref<256x64xf32, #tpu.memory_space<vmem>>, %arg9: memref<1x64xf32, #tpu.memory_space<vmem>>, %arg10: memref<1x64xf32, #tpu.memory_space<vmem>>, %arg11: memref<1x64xf32, #tpu.memory_space<vmem>>, %arg12: memref<2x64x64xf32, #tpu.memory_space<vmem>>, %arg13: memref<2x64x64xf32, #tpu.memory_space<vmem>>, %arg14: memref<2x64x64xf32, #tpu.memory_space<vmem>>, %arg15: memref<2x1x64xf32, #tpu.memory_space<vmem>>, %arg16: memref<2x1x64xf32, #tpu.memory_space<vmem>>, %arg17: memref<2x1x64xf32, #tpu.memory_space<vmem>>, %arg18: memref<2x64x64xf32, #tpu.memory_space<vmem>>, %arg19: memref<2x1x64xf32, #tpu.memory_space<vmem>>, %arg20: memref<2x1x64xf32, #tpu.memory_space<vmem>>, %arg21: memref<2x1x64xf32, #tpu.memory_space<vmem>>, %arg22: memref<2x64x256xf32, #tpu.memory_space<vmem>>, %arg23: memref<2x1x256xf32, #tpu.memory_space<vmem>>, %arg24: memref<2x256x64xf32, #tpu.memory_space<vmem>>, %arg25: memref<2x1x64xf32, #tpu.memory_space<vmem>>, %arg26: memref<2x1x64xf32, #tpu.memory_space<vmem>>, %arg27: memref<2x1x64xf32, #tpu.memory_space<vmem>>, %arg28: memref<64x128xf32, #tpu.memory_space<vmem>>, %arg29: memref<1x128xf32, #tpu.memory_space<vmem>>, %arg30: memref<1x1x64xf32, #tpu.memory_space<vmem>>, %arg31: memref<1x1x128xf32, #tpu.memory_space<vmem>>) attributes {dimension_semantics = [#tpu.dimension_semantics<parallel>], iteration_bounds = array<i64: 2>, scalar_prefetch = 0 : i64, scratch_operands = 0 : i64, tpu.core_type = #tpu.core_type<tc>, window_params = [{transform_indices = @transform_0, window_bounds = array<i64: 1, 8, 8>}, {transform_indices = @transform_1, window_bounds = array<i64: 1, 8, 1>}, {pipeline_mode = #tpu.pipeline_mode<synchronous>, transform_indices = @transform_2, window_bounds = array<i64: 8, 64>}, {pipeline_mode = #tpu.pipeline_mode<synchronous>, transform_indices = @transform_3, window_bounds = array<i64: 48, 256>}, {pipeline_mode = #tpu.pipeline_mode<synchronous>, transform_indices = @transform_4, window_bounds = array<i64: 1, 256>}, {pipeline_mode = #tpu.pipeline_mode<synchronous>, transform_indices = @transform_5, window_bounds = array<i64: 1, 256>}, {pipeline_mode = #tpu.pipeline_mode<synchronous>, transform_indices = @transform_6, window_bounds = array<i64: 1, 256>}, {pipeline_mode = #tpu.pipeline_mode<synchronous>, transform_indices = @transform_7, window_bounds = array<i64: 256, 64>}, {pipeline_mode = #tpu.pipeline_mode<synchronous>, transform_indices = @transform_8, window_bounds = array<i64: 1, 64>}, {pipeline_mode = #tpu.pipeline_mode<synchronous>, transform_indices = @transform_9, window_bounds = array<i64: 1, 64>}, {pipeline_mode = #tpu.pipeline_mode<synchronous>, transform_indices = @transform_10, window_bounds = array<i64: 1, 64>}, {pipeline_mode = #tpu.pipeline_mode<synchronous>, transform_indices = @transform_11, window_bounds = array<i64: 2, 64, 64>}, {pipeline_mode = #tpu.pipeline_mode<synchronous>, transform_indices = @transform_12, window_bounds = array<i64: 2, 64, 64>}, {pipeline_mode = #tpu.pipeline_mode<synchronous>, transform_indices = @transform_13, window_bounds = array<i64: 2, 64, 64>}, {pipeline_mode = #tpu.pipeline_mode<synchronous>, transform_indices = @transform_14, window_bounds = array<i64: 2, 1, 64>}, {pipeline_mode = #tpu.pipeline_mode<synchronous>, transform_indices = @transform_15, window_bounds = array<i64: 2, 1, 64>}, {pipeline_mode = #tpu.pipeline_mode<synchronous>, transform_indices = @transform_16, window_bounds = array<i64: 2, 1, 64>}, {pipeline_mode = #tpu.pipeline_mode<synchronous>, transform_indices = @transform_17, window_bounds = array<i64: 2, 64, 64>}, {pipeline_mode = #tpu.pipeline_mode<synchronous>, transform_indices = @transform_18, window_bounds = array<i64: 2, 1, 64>}, {pipeline_mode = #tpu.pipeline_mode<synchronous>, transform_indices = @transform_19, window_bounds = array<i64: 2, 1, 64>}, {pipeline_mode = #tpu.pipeline_mode<synchronous>, transform_indices = @transform_20, window_bounds = array<i64: 2, 1, 64>}, {pipeline_mode = #tpu.pipeline_mode<synchronous>, transform_indices = @transform_21, window_bounds = array<i64: 2, 64, 256>}, {pipeline_mode = #tpu.pipeline_mode<synchronous>, transform_indices = @transform_22, window_bounds = array<i64: 2, 1, 256>}, {pipeline_mode = #tpu.pipeline_mode<synchronous>, transform_indices = @transform_23, window_bounds = array<i64: 2, 256, 64>}, {pipeline_mode = #tpu.pipeline_mode<synchronous>, transform_indices = @transform_24, window_bounds = array<i64: 2, 1, 64>}, {pipeline_mode = #tpu.pipeline_mode<synchronous>, transform_indices = @transform_25, window_bounds = array<i64: 2, 1, 64>}, {pipeline_mode = #tpu.pipeline_mode<synchronous>, transform_indices = @transform_26, window_bounds = array<i64: 2, 1, 64>}, {pipeline_mode = #tpu.pipeline_mode<synchronous>, transform_indices = @transform_27, window_bounds = array<i64: 64, 128>}, {pipeline_mode = #tpu.pipeline_mode<synchronous>, transform_indices = @transform_28, window_bounds = array<i64: 1, 128>}, {transform_indices = @transform_29, window_bounds = array<i64: 1, 1, 64>}, {transform_indices = @transform_30, window_bounds = array<i64: 1, 1, 128>}]} {
    %c0 = arith.constant 0 : index
    %c0_0 = arith.constant 0 : index
    %c0_1 = arith.constant 0 : index
    %0 = vector.load %arg1[%c0, %c0_0, %c0_1] : memref<1x8x8xf32, #tpu.memory_space<vmem>>, vector<1x8x8xf32>
    %1 = vector.shape_cast %0 : vector<1x8x8xf32> to vector<8x8xf32>
    %cst = arith.constant 3.800000e+00 : f32
    %2 = vector.broadcast %cst : f32 to vector<8x8xf32>
    %3 = arith.divf %1, %2 : vector<8x8xf32>
    %4 = arith.mulf %3, %3 : vector<8x8xf32>
    %5 = arith.mulf %4, %3 : vector<8x8xf32>
    %cst_2 = arith.constant 0.333333343 : f32
    %6 = vector.broadcast %cst_2 : f32 to vector<8x8xf32>
    %7 = arith.addf %6, %3 : vector<8x8xf32>
    %cst_3 = arith.constant 1.33333337 : f32
    %8 = vector.broadcast %cst_3 : f32 to vector<8x8xf32>
    %9 = arith.divf %8, %7 : vector<8x8xf32>
    %cst_4 = arith.constant 0.333333343 : f32
    %10 = vector.broadcast %cst_4 : f32 to vector<8x8xf32>
    %11 = arith.addf %10, %4 : vector<8x8xf32>
    %cst_5 = arith.constant 1.33333337 : f32
    %12 = vector.broadcast %cst_5 : f32 to vector<8x8xf32>
    %13 = arith.divf %12, %11 : vector<8x8xf32>
    %cst_6 = arith.constant 0.333333343 : f32
    %14 = vector.broadcast %cst_6 : f32 to vector<8x8xf32>
    %15 = arith.addf %14, %5 : vector<8x8xf32>
    %cst_7 = arith.constant 1.33333337 : f32
    %16 = vector.broadcast %cst_7 : f32 to vector<8x8xf32>
    %17 = arith.divf %16, %15 : vector<8x8xf32>
    %18 = tpu.concatenate %3, %4, %5, %9, %13, %17 in 1 : vector<8x8xf32>, vector<8x8xf32>, vector<8x8xf32>, vector<8x8xf32>, vector<8x8xf32>, vector<8x8xf32> -> vector<8x48xf32>
    %c0_8 = arith.constant 0 : index
    %c0_9 = arith.constant 0 : index
    %19 = vector.load %arg4[%c0_8, %c0_9] : memref<48x256xf32, #tpu.memory_space<vmem>>, vector<48x256xf32>
    %cst_10 = arith.constant dense<0.000000e+00> : vector<8x256xf32>
    %20 = tpu.matmul %18, %19, %cst_10 {dimension_numbers = #tpu.dot_dimension_numbers<[1], [0], [0], [1], [0, 0, 1, 1], [], []>} : vector<8x48xf32>, vector<48x256xf32>, vector<8x256xf32> -> vector<8x256xf32>
    %c0_11 = arith.constant 0 : index
    %c0_12 = arith.constant 0 : index
    %21 = vector.load %arg5[%c0_11, %c0_12] : memref<1x256xf32, #tpu.memory_space<vmem>>, vector<1x256xf32>
    %22 = vector.broadcast %21 : vector<1x256xf32> to vector<8x256xf32>
    %23 = arith.addf %20, %22 : vector<8x256xf32>
    %c0_13 = arith.constant 0 : index
    %c0_14 = arith.constant 0 : index
    %24 = vector.load %arg6[%c0_13, %c0_14] : memref<1x256xf32, #tpu.memory_space<vmem>>, vector<1x256xf32>
    %c0_15 = arith.constant 0 : index
    %c0_16 = arith.constant 0 : index
    %25 = vector.load %arg7[%c0_15, %c0_16] : memref<1x256xf32, #tpu.memory_space<vmem>>, vector<1x256xf32>
    %cst_17 = arith.constant dense<0.000000e+00> : vector<8xf32>
    %26 = vector.multi_reduction <add>, %23, %cst_17 [1] : vector<8x256xf32> to vector<8xf32>
    %27 = vector.shape_cast %26 : vector<8xf32> to vector<8x1xf32>
    %cst_18 = arith.constant 2.560000e+02 : f32
    %28 = vector.broadcast %cst_18 : f32 to vector<8x1xf32>
    %29 = arith.divf %27, %28 : vector<8x1xf32>
    %30 = vector.broadcast %29 : vector<8x1xf32> to vector<8x256xf32>
    %31 = arith.subf %23, %30 : vector<8x256xf32>
    %32 = arith.mulf %31, %31 : vector<8x256xf32>
    %cst_19 = arith.constant dense<0.000000e+00> : vector<8xf32>
    %33 = vector.multi_reduction <add>, %32, %cst_19 [1] : vector<8x256xf32> to vector<8xf32>
    %34 = vector.shape_cast %33 : vector<8xf32> to vector<8x1xf32>
    %cst_20 = arith.constant 2.560000e+02 : f32
    %35 = vector.broadcast %cst_20 : f32 to vector<8x1xf32>
    %36 = arith.divf %34, %35 : vector<8x1xf32>
    %37 = vector.broadcast %29 : vector<8x1xf32> to vector<8x256xf32>
    %38 = arith.subf %23, %37 : vector<8x256xf32>
    %cst_21 = arith.constant 9.99999974E-6 : f32
    %39 = vector.broadcast %cst_21 : f32 to vector<8x1xf32>
    %40 = arith.addf %36, %39 : vector<8x1xf32>
    %41 = math.rsqrt %40 : vector<8x1xf32>
    %42 = vector.broadcast %41 : vector<8x1xf32> to vector<8x256xf32>
    %43 = arith.mulf %38, %42 : vector<8x256xf32>
    %44 = vector.broadcast %24 : vector<1x256xf32> to vector<8x256xf32>
    %45 = arith.mulf %43, %44 : vector<8x256xf32>
    %46 = vector.broadcast %25 : vector<1x256xf32> to vector<8x256xf32>
    %47 = arith.addf %45, %46 : vector<8x256xf32>
    %cst_22 = arith.constant 0.000000e+00 : f32
    %48 = vector.broadcast %cst_22 : f32 to vector<8x256xf32>
    %49 = arith.maximumf %47, %48 : vector<8x256xf32>
    %c0_23 = arith.constant 0 : index
    %c0_24 = arith.constant 0 : index
    %50 = vector.load %arg8[%c0_23, %c0_24] : memref<256x64xf32, #tpu.memory_space<vmem>>, vector<256x64xf32>
    %cst_25 = arith.constant dense<0.000000e+00> : vector<8x64xf32>
    %51 = tpu.matmul %49, %50, %cst_25 {dimension_numbers = #tpu.dot_dimension_numbers<[1], [0], [0], [1], [0, 0, 1, 1], [], []>} : vector<8x256xf32>, vector<256x64xf32>, vector<8x64xf32> -> vector<8x64xf32>
    %c0_26 = arith.constant 0 : index
    %c0_27 = arith.constant 0 : index
    %52 = vector.load %arg9[%c0_26, %c0_27] : memref<1x64xf32, #tpu.memory_space<vmem>>, vector<1x64xf32>
    %53 = vector.broadcast %52 : vector<1x64xf32> to vector<8x64xf32>
    %54 = arith.addf %51, %53 : vector<8x64xf32>
    %c0_28 = arith.constant 0 : index
    %c0_29 = arith.constant 0 : index
    %55 = vector.load %arg10[%c0_28, %c0_29] : memref<1x64xf32, #tpu.memory_space<vmem>>, vector<1x64xf32>
    %c0_30 = arith.constant 0 : index
    %c0_31 = arith.constant 0 : index
    %56 = vector.load %arg11[%c0_30, %c0_31] : memref<1x64xf32, #tpu.memory_space<vmem>>, vector<1x64xf32>
    %cst_32 = arith.constant dense<0.000000e+00> : vector<8xf32>
    %57 = vector.multi_reduction <add>, %54, %cst_32 [1] : vector<8x64xf32> to vector<8xf32>
    %58 = vector.shape_cast %57 : vector<8xf32> to vector<8x1xf32>
    %cst_33 = arith.constant 6.400000e+01 : f32
    %59 = vector.broadcast %cst_33 : f32 to vector<8x1xf32>
    %60 = arith.divf %58, %59 : vector<8x1xf32>
    %61 = vector.broadcast %60 : vector<8x1xf32> to vector<8x64xf32>
    %62 = arith.subf %54, %61 : vector<8x64xf32>
    %63 = arith.mulf %62, %62 : vector<8x64xf32>
    %cst_34 = arith.constant dense<0.000000e+00> : vector<8xf32>
    %64 = vector.multi_reduction <add>, %63, %cst_34 [1] : vector<8x64xf32> to vector<8xf32>
    %65 = vector.shape_cast %64 : vector<8xf32> to vector<8x1xf32>
    %cst_35 = arith.constant 6.400000e+01 : f32
    %66 = vector.broadcast %cst_35 : f32 to vector<8x1xf32>
    %67 = arith.divf %65, %66 : vector<8x1xf32>
    %68 = vector.broadcast %60 : vector<8x1xf32> to vector<8x64xf32>
    %69 = arith.subf %54, %68 : vector<8x64xf32>
    %cst_36 = arith.constant 9.99999974E-6 : f32
    %70 = vector.broadcast %cst_36 : f32 to vector<8x1xf32>
    %71 = arith.addf %67, %70 : vector<8x1xf32>
    %72 = math.rsqrt %71 : vector<8x1xf32>
    %73 = vector.broadcast %72 : vector<8x1xf32> to vector<8x64xf32>
    %74 = arith.mulf %69, %73 : vector<8x64xf32>
    %75 = vector.broadcast %55 : vector<1x64xf32> to vector<8x64xf32>
    %76 = arith.mulf %74, %75 : vector<8x64xf32>
    %77 = vector.broadcast %56 : vector<1x64xf32> to vector<8x64xf32>
    %78 = arith.addf %76, %77 : vector<8x64xf32>
    %cst_37 = arith.constant 0.000000e+00 : f32
    %79 = vector.broadcast %cst_37 : f32 to vector<8x64xf32>
    %80 = arith.maximumf %78, %79 : vector<8x64xf32>
    %c0_38 = arith.constant 0 : index
    %c0_39 = arith.constant 0 : index
    %c0_40 = arith.constant 0 : index
    %81 = vector.load %arg2[%c0_38, %c0_39, %c0_40] : memref<1x8x1xf32, #tpu.memory_space<vmem>>, vector<1x8x1xf32>
    %82 = vector.shape_cast %81 : vector<1x8x1xf32> to vector<8x1xf32>
    %cst_41 = arith.constant 1.000000e+00 : f32
    %83 = vector.broadcast %cst_41 : f32 to vector<8x1xf32>
    %84 = arith.subf %83, %82 : vector<8x1xf32>
    %85 = vector.broadcast %84 : vector<8x1xf32> to vector<8x64xf32>
    %86 = arith.mulf %80, %85 : vector<8x64xf32>
    %c0_42 = arith.constant 0 : index
    %c0_43 = arith.constant 0 : index
    %87 = vector.load %arg3[%c0_42, %c0_43] : memref<8x64xf32, #tpu.memory_space<vmem>>, vector<8x64xf32>
    %88 = arith.addf %86, %87 : vector<8x64xf32>
    %c0_44 = arith.constant 0 : index
    %c0_45 = arith.constant 0 : index
    %c0_46 = arith.constant 0 : index
    %89 = vector.load %arg12[%c0_44, %c0_45, %c0_46] : memref<2x64x64xf32, #tpu.memory_space<vmem>>, vector<1x64x64xf32>
    %90 = vector.shape_cast %89 : vector<1x64x64xf32> to vector<64x64xf32>
    %cst_47 = arith.constant dense<0.000000e+00> : vector<8x64xf32>
    %91 = tpu.matmul %88, %90, %cst_47 {dimension_numbers = #tpu.dot_dimension_numbers<[1], [0], [0], [1], [0, 0, 1, 1], [], []>} : vector<8x64xf32>, vector<64x64xf32>, vector<8x64xf32> -> vector<8x64xf32>
    %c0_48 = arith.constant 0 : index
    %c0_49 = arith.constant 0 : index
    %c0_50 = arith.constant 0 : index
    %92 = vector.load %arg15[%c0_48, %c0_49, %c0_50] : memref<2x1x64xf32, #tpu.memory_space<vmem>>, vector<1x1x64xf32>
    %93 = vector.shape_cast %92 : vector<1x1x64xf32> to vector<1x64xf32>
    %94 = vector.broadcast %93 : vector<1x64xf32> to vector<8x64xf32>
    %95 = arith.addf %91, %94 : vector<8x64xf32>
    %c0_51 = arith.constant 0 : index
    %c0_52 = arith.constant 0 : index
    %c0_53 = arith.constant 0 : index
    %96 = vector.load %arg13[%c0_51, %c0_52, %c0_53] : memref<2x64x64xf32, #tpu.memory_space<vmem>>, vector<1x64x64xf32>
    %97 = vector.shape_cast %96 : vector<1x64x64xf32> to vector<64x64xf32>
    %cst_54 = arith.constant dense<0.000000e+00> : vector<8x64xf32>
    %98 = tpu.matmul %88, %97, %cst_54 {dimension_numbers = #tpu.dot_dimension_numbers<[1], [0], [0], [1], [0, 0, 1, 1], [], []>} : vector<8x64xf32>, vector<64x64xf32>, vector<8x64xf32> -> vector<8x64xf32>
    %c0_55 = arith.constant 0 : index
    %c0_56 = arith.constant 0 : index
    %c0_57 = arith.constant 0 : index
    %99 = vector.load %arg16[%c0_55, %c0_56, %c0_57] : memref<2x1x64xf32, #tpu.memory_space<vmem>>, vector<1x1x64xf32>
    %100 = vector.shape_cast %99 : vector<1x1x64xf32> to vector<1x64xf32>
    %101 = vector.broadcast %100 : vector<1x64xf32> to vector<8x64xf32>
    %102 = arith.addf %98, %101 : vector<8x64xf32>
    %c0_58 = arith.constant 0 : index
    %c0_59 = arith.constant 0 : index
    %c0_60 = arith.constant 0 : index
    %103 = vector.load %arg14[%c0_58, %c0_59, %c0_60] : memref<2x64x64xf32, #tpu.memory_space<vmem>>, vector<1x64x64xf32>
    %104 = vector.shape_cast %103 : vector<1x64x64xf32> to vector<64x64xf32>
    %cst_61 = arith.constant dense<0.000000e+00> : vector<8x64xf32>
    %105 = tpu.matmul %88, %104, %cst_61 {dimension_numbers = #tpu.dot_dimension_numbers<[1], [0], [0], [1], [0, 0, 1, 1], [], []>} : vector<8x64xf32>, vector<64x64xf32>, vector<8x64xf32> -> vector<8x64xf32>
    %c0_62 = arith.constant 0 : index
    %c0_63 = arith.constant 0 : index
    %c0_64 = arith.constant 0 : index
    %106 = vector.load %arg17[%c0_62, %c0_63, %c0_64] : memref<2x1x64xf32, #tpu.memory_space<vmem>>, vector<1x1x64xf32>
    %107 = vector.shape_cast %106 : vector<1x1x64xf32> to vector<1x64xf32>
    %108 = vector.broadcast %107 : vector<1x64xf32> to vector<8x64xf32>
    %109 = arith.addf %105, %108 : vector<8x64xf32>
    %cst_65 = arith.constant 1.250000e-01 : f32
    %110 = vector.broadcast %cst_65 : f32 to vector<8x64xf32>
    %111 = arith.mulf %95, %110 : vector<8x64xf32>
    %cst_66 = arith.constant dense<0.000000e+00> : vector<8x8xf32>
    %112 = tpu.matmul %111, %102, %cst_66 {dimension_numbers = #tpu.dot_dimension_numbers<[1], [1], [0], [0], [0, 0, 1, 0], [], []>} : vector<8x64xf32>, vector<8x64xf32>, vector<8x8xf32> -> vector<8x8xf32>
    %cst_67 = arith.constant dense<0xFF800000> : vector<8xf32>
    %113 = vector.multi_reduction <maximumf>, %112, %cst_67 [1] : vector<8x8xf32> to vector<8xf32>
    %114 = vector.shape_cast %113 : vector<8xf32> to vector<8x1xf32>
    %115 = vector.broadcast %114 : vector<8x1xf32> to vector<8x8xf32>
    %116 = arith.subf %112, %115 : vector<8x8xf32>
    %117 = math.exp %116 : vector<8x8xf32>
    %cst_68 = arith.constant dense<0.000000e+00> : vector<8xf32>
    %118 = vector.multi_reduction <add>, %117, %cst_68 [1] : vector<8x8xf32> to vector<8xf32>
    %119 = vector.shape_cast %118 : vector<8xf32> to vector<8x1xf32>
    %120 = tpu.reciprocal %119 {approx = true} : vector<8x1xf32> -> vector<8x1xf32>
    %121 = vector.broadcast %120 : vector<8x1xf32> to vector<8x8xf32>
    %122 = arith.mulf %117, %121 : vector<8x8xf32>
    %cst_69 = arith.constant dense<0.000000e+00> : vector<8x64xf32>
    %123 = tpu.matmul %122, %109, %cst_69 {dimension_numbers = #tpu.dot_dimension_numbers<[1], [0], [0], [1], [0, 0, 1, 1], [], []>} : vector<8x8xf32>, vector<8x64xf32>, vector<8x64xf32> -> vector<8x64xf32>
    %c0_70 = arith.constant 0 : index
    %c0_71 = arith.constant 0 : index
    %c0_72 = arith.constant 0 : index
    %124 = vector.load %arg18[%c0_70, %c0_71, %c0_72] : memref<2x64x64xf32, #tpu.memory_space<vmem>>, vector<1x64x64xf32>
    %125 = vector.shape_cast %124 : vector<1x64x64xf32> to vector<64x64xf32>
    %cst_73 = arith.constant dense<0.000000e+00> : vector<8x64xf32>
    %126 = tpu.matmul %123, %125, %cst_73 {dimension_numbers = #tpu.dot_dimension_numbers<[1], [0], [0], [1], [0, 0, 1, 1], [], []>} : vector<8x64xf32>, vector<64x64xf32>, vector<8x64xf32> -> vector<8x64xf32>
    %c0_74 = arith.constant 0 : index
    %c0_75 = arith.constant 0 : index
    %c0_76 = arith.constant 0 : index
    %127 = vector.load %arg19[%c0_74, %c0_75, %c0_76] : memref<2x1x64xf32, #tpu.memory_space<vmem>>, vector<1x1x64xf32>
    %128 = vector.shape_cast %127 : vector<1x1x64xf32> to vector<1x64xf32>
    %129 = vector.broadcast %128 : vector<1x64xf32> to vector<8x64xf32>
    %130 = arith.addf %126, %129 : vector<8x64xf32>
    %131 = arith.addf %88, %130 : vector<8x64xf32>
    %c0_77 = arith.constant 0 : index
    %c0_78 = arith.constant 0 : index
    %c0_79 = arith.constant 0 : index
    %132 = vector.load %arg20[%c0_77, %c0_78, %c0_79] : memref<2x1x64xf32, #tpu.memory_space<vmem>>, vector<1x1x64xf32>
    %133 = vector.shape_cast %132 : vector<1x1x64xf32> to vector<1x64xf32>
    %c0_80 = arith.constant 0 : index
    %c0_81 = arith.constant 0 : index
    %c0_82 = arith.constant 0 : index
    %134 = vector.load %arg21[%c0_80, %c0_81, %c0_82] : memref<2x1x64xf32, #tpu.memory_space<vmem>>, vector<1x1x64xf32>
    %135 = vector.shape_cast %134 : vector<1x1x64xf32> to vector<1x64xf32>
    %cst_83 = arith.constant dense<0.000000e+00> : vector<8xf32>
    %136 = vector.multi_reduction <add>, %131, %cst_83 [1] : vector<8x64xf32> to vector<8xf32>
    %137 = vector.shape_cast %136 : vector<8xf32> to vector<8x1xf32>
    %cst_84 = arith.constant 6.400000e+01 : f32
    %138 = vector.broadcast %cst_84 : f32 to vector<8x1xf32>
    %139 = arith.divf %137, %138 : vector<8x1xf32>
    %140 = vector.broadcast %139 : vector<8x1xf32> to vector<8x64xf32>
    %141 = arith.subf %131, %140 : vector<8x64xf32>
    %142 = arith.mulf %141, %141 : vector<8x64xf32>
    %cst_85 = arith.constant dense<0.000000e+00> : vector<8xf32>
    %143 = vector.multi_reduction <add>, %142, %cst_85 [1] : vector<8x64xf32> to vector<8xf32>
    %144 = vector.shape_cast %143 : vector<8xf32> to vector<8x1xf32>
    %cst_86 = arith.constant 6.400000e+01 : f32
    %145 = vector.broadcast %cst_86 : f32 to vector<8x1xf32>
    %146 = arith.divf %144, %145 : vector<8x1xf32>
    %147 = vector.broadcast %139 : vector<8x1xf32> to vector<8x64xf32>
    %148 = arith.subf %131, %147 : vector<8x64xf32>
    %cst_87 = arith.constant 9.99999974E-6 : f32
    %149 = vector.broadcast %cst_87 : f32 to vector<8x1xf32>
    %150 = arith.addf %146, %149 : vector<8x1xf32>
    %151 = math.rsqrt %150 : vector<8x1xf32>
    %152 = vector.broadcast %151 : vector<8x1xf32> to vector<8x64xf32>
    %153 = arith.mulf %148, %152 : vector<8x64xf32>
    %154 = vector.broadcast %133 : vector<1x64xf32> to vector<8x64xf32>
    %155 = arith.mulf %153, %154 : vector<8x64xf32>
    %156 = vector.broadcast %135 : vector<1x64xf32> to vector<8x64xf32>
    %157 = arith.addf %155, %156 : vector<8x64xf32>
    %c0_88 = arith.constant 0 : index
    %c0_89 = arith.constant 0 : index
    %c0_90 = arith.constant 0 : index
    %158 = vector.load %arg22[%c0_88, %c0_89, %c0_90] : memref<2x64x256xf32, #tpu.memory_space<vmem>>, vector<1x64x256xf32>
    %159 = vector.shape_cast %158 : vector<1x64x256xf32> to vector<64x256xf32>
    %cst_91 = arith.constant dense<0.000000e+00> : vector<8x256xf32>
    %160 = tpu.matmul %157, %159, %cst_91 {dimension_numbers = #tpu.dot_dimension_numbers<[1], [0], [0], [1], [0, 0, 1, 1], [], []>} : vector<8x64xf32>, vector<64x256xf32>, vector<8x256xf32> -> vector<8x256xf32>
    %c0_92 = arith.constant 0 : index
    %c0_93 = arith.constant 0 : index
    %c0_94 = arith.constant 0 : index
    %161 = vector.load %arg23[%c0_92, %c0_93, %c0_94] : memref<2x1x256xf32, #tpu.memory_space<vmem>>, vector<1x1x256xf32>
    %162 = vector.shape_cast %161 : vector<1x1x256xf32> to vector<1x256xf32>
    %163 = vector.broadcast %162 : vector<1x256xf32> to vector<8x256xf32>
    %164 = arith.addf %160, %163 : vector<8x256xf32>
    %cst_95 = arith.constant 0.000000e+00 : f32
    %165 = vector.broadcast %cst_95 : f32 to vector<8x256xf32>
    %166 = arith.maximumf %164, %165 : vector<8x256xf32>
    %c0_96 = arith.constant 0 : index
    %c0_97 = arith.constant 0 : index
    %c0_98 = arith.constant 0 : index
    %167 = vector.load %arg24[%c0_96, %c0_97, %c0_98] : memref<2x256x64xf32, #tpu.memory_space<vmem>>, vector<1x256x64xf32>
    %168 = vector.shape_cast %167 : vector<1x256x64xf32> to vector<256x64xf32>
    %cst_99 = arith.constant dense<0.000000e+00> : vector<8x64xf32>
    %169 = tpu.matmul %166, %168, %cst_99 {dimension_numbers = #tpu.dot_dimension_numbers<[1], [0], [0], [1], [0, 0, 1, 1], [], []>} : vector<8x256xf32>, vector<256x64xf32>, vector<8x64xf32> -> vector<8x64xf32>
    %c0_100 = arith.constant 0 : index
    %c0_101 = arith.constant 0 : index
    %c0_102 = arith.constant 0 : index
    %170 = vector.load %arg25[%c0_100, %c0_101, %c0_102] : memref<2x1x64xf32, #tpu.memory_space<vmem>>, vector<1x1x64xf32>
    %171 = vector.shape_cast %170 : vector<1x1x64xf32> to vector<1x64xf32>
    %172 = vector.broadcast %171 : vector<1x64xf32> to vector<8x64xf32>
    %173 = arith.addf %169, %172 : vector<8x64xf32>
    %174 = arith.addf %157, %173 : vector<8x64xf32>
    %c0_103 = arith.constant 0 : index
    %c0_104 = arith.constant 0 : index
    %c0_105 = arith.constant 0 : index
    %175 = vector.load %arg26[%c0_103, %c0_104, %c0_105] : memref<2x1x64xf32, #tpu.memory_space<vmem>>, vector<1x1x64xf32>
    %176 = vector.shape_cast %175 : vector<1x1x64xf32> to vector<1x64xf32>
    %c0_106 = arith.constant 0 : index
    %c0_107 = arith.constant 0 : index
    %c0_108 = arith.constant 0 : index
    %177 = vector.load %arg27[%c0_106, %c0_107, %c0_108] : memref<2x1x64xf32, #tpu.memory_space<vmem>>, vector<1x1x64xf32>
    %178 = vector.shape_cast %177 : vector<1x1x64xf32> to vector<1x64xf32>
    %cst_109 = arith.constant dense<0.000000e+00> : vector<8xf32>
    %179 = vector.multi_reduction <add>, %174, %cst_109 [1] : vector<8x64xf32> to vector<8xf32>
    %180 = vector.shape_cast %179 : vector<8xf32> to vector<8x1xf32>
    %cst_110 = arith.constant 6.400000e+01 : f32
    %181 = vector.broadcast %cst_110 : f32 to vector<8x1xf32>
    %182 = arith.divf %180, %181 : vector<8x1xf32>
    %183 = vector.broadcast %182 : vector<8x1xf32> to vector<8x64xf32>
    %184 = arith.subf %174, %183 : vector<8x64xf32>
    %185 = arith.mulf %184, %184 : vector<8x64xf32>
    %cst_111 = arith.constant dense<0.000000e+00> : vector<8xf32>
    %186 = vector.multi_reduction <add>, %185, %cst_111 [1] : vector<8x64xf32> to vector<8xf32>
    %187 = vector.shape_cast %186 : vector<8xf32> to vector<8x1xf32>
    %cst_112 = arith.constant 6.400000e+01 : f32
    %188 = vector.broadcast %cst_112 : f32 to vector<8x1xf32>
    %189 = arith.divf %187, %188 : vector<8x1xf32>
    %190 = vector.broadcast %182 : vector<8x1xf32> to vector<8x64xf32>
    %191 = arith.subf %174, %190 : vector<8x64xf32>
    %cst_113 = arith.constant 9.99999974E-6 : f32
    %192 = vector.broadcast %cst_113 : f32 to vector<8x1xf32>
    %193 = arith.addf %189, %192 : vector<8x1xf32>
    %194 = math.rsqrt %193 : vector<8x1xf32>
    %195 = vector.broadcast %194 : vector<8x1xf32> to vector<8x64xf32>
    %196 = arith.mulf %191, %195 : vector<8x64xf32>
    %197 = vector.broadcast %176 : vector<1x64xf32> to vector<8x64xf32>
    %198 = arith.mulf %196, %197 : vector<8x64xf32>
    %199 = vector.broadcast %178 : vector<1x64xf32> to vector<8x64xf32>
    %200 = arith.addf %198, %199 : vector<8x64xf32>
    %c1 = arith.constant 1 : index
    %c0_114 = arith.constant 0 : index
    %c0_115 = arith.constant 0 : index
    %201 = vector.load %arg12[%c1, %c0_114, %c0_115] : memref<2x64x64xf32, #tpu.memory_space<vmem>>, vector<1x64x64xf32>
    %202 = vector.shape_cast %201 : vector<1x64x64xf32> to vector<64x64xf32>
    %cst_116 = arith.constant dense<0.000000e+00> : vector<8x64xf32>
    %203 = tpu.matmul %200, %202, %cst_116 {dimension_numbers = #tpu.dot_dimension_numbers<[1], [0], [0], [1], [0, 0, 1, 1], [], []>} : vector<8x64xf32>, vector<64x64xf32>, vector<8x64xf32> -> vector<8x64xf32>
    %c1_117 = arith.constant 1 : index
    %c0_118 = arith.constant 0 : index
    %c0_119 = arith.constant 0 : index
    %204 = vector.load %arg15[%c1_117, %c0_118, %c0_119] : memref<2x1x64xf32, #tpu.memory_space<vmem>>, vector<1x1x64xf32>
    %205 = vector.shape_cast %204 : vector<1x1x64xf32> to vector<1x64xf32>
    %206 = vector.broadcast %205 : vector<1x64xf32> to vector<8x64xf32>
    %207 = arith.addf %203, %206 : vector<8x64xf32>
    %c1_120 = arith.constant 1 : index
    %c0_121 = arith.constant 0 : index
    %c0_122 = arith.constant 0 : index
    %208 = vector.load %arg13[%c1_120, %c0_121, %c0_122] : memref<2x64x64xf32, #tpu.memory_space<vmem>>, vector<1x64x64xf32>
    %209 = vector.shape_cast %208 : vector<1x64x64xf32> to vector<64x64xf32>
    %cst_123 = arith.constant dense<0.000000e+00> : vector<8x64xf32>
    %210 = tpu.matmul %200, %209, %cst_123 {dimension_numbers = #tpu.dot_dimension_numbers<[1], [0], [0], [1], [0, 0, 1, 1], [], []>} : vector<8x64xf32>, vector<64x64xf32>, vector<8x64xf32> -> vector<8x64xf32>
    %c1_124 = arith.constant 1 : index
    %c0_125 = arith.constant 0 : index
    %c0_126 = arith.constant 0 : index
    %211 = vector.load %arg16[%c1_124, %c0_125, %c0_126] : memref<2x1x64xf32, #tpu.memory_space<vmem>>, vector<1x1x64xf32>
    %212 = vector.shape_cast %211 : vector<1x1x64xf32> to vector<1x64xf32>
    %213 = vector.broadcast %212 : vector<1x64xf32> to vector<8x64xf32>
    %214 = arith.addf %210, %213 : vector<8x64xf32>
    %c1_127 = arith.constant 1 : index
    %c0_128 = arith.constant 0 : index
    %c0_129 = arith.constant 0 : index
    %215 = vector.load %arg14[%c1_127, %c0_128, %c0_129] : memref<2x64x64xf32, #tpu.memory_space<vmem>>, vector<1x64x64xf32>
    %216 = vector.shape_cast %215 : vector<1x64x64xf32> to vector<64x64xf32>
    %cst_130 = arith.constant dense<0.000000e+00> : vector<8x64xf32>
    %217 = tpu.matmul %200, %216, %cst_130 {dimension_numbers = #tpu.dot_dimension_numbers<[1], [0], [0], [1], [0, 0, 1, 1], [], []>} : vector<8x64xf32>, vector<64x64xf32>, vector<8x64xf32> -> vector<8x64xf32>
    %c1_131 = arith.constant 1 : index
    %c0_132 = arith.constant 0 : index
    %c0_133 = arith.constant 0 : index
    %218 = vector.load %arg17[%c1_131, %c0_132, %c0_133] : memref<2x1x64xf32, #tpu.memory_space<vmem>>, vector<1x1x64xf32>
    %219 = vector.shape_cast %218 : vector<1x1x64xf32> to vector<1x64xf32>
    %220 = vector.broadcast %219 : vector<1x64xf32> to vector<8x64xf32>
    %221 = arith.addf %217, %220 : vector<8x64xf32>
    %cst_134 = arith.constant 1.250000e-01 : f32
    %222 = vector.broadcast %cst_134 : f32 to vector<8x64xf32>
    %223 = arith.mulf %207, %222 : vector<8x64xf32>
    %cst_135 = arith.constant dense<0.000000e+00> : vector<8x8xf32>
    %224 = tpu.matmul %223, %214, %cst_135 {dimension_numbers = #tpu.dot_dimension_numbers<[1], [1], [0], [0], [0, 0, 1, 0], [], []>} : vector<8x64xf32>, vector<8x64xf32>, vector<8x8xf32> -> vector<8x8xf32>
    %cst_136 = arith.constant dense<0xFF800000> : vector<8xf32>
    %225 = vector.multi_reduction <maximumf>, %224, %cst_136 [1] : vector<8x8xf32> to vector<8xf32>
    %226 = vector.shape_cast %225 : vector<8xf32> to vector<8x1xf32>
    %227 = vector.broadcast %226 : vector<8x1xf32> to vector<8x8xf32>
    %228 = arith.subf %224, %227 : vector<8x8xf32>
    %229 = math.exp %228 : vector<8x8xf32>
    %cst_137 = arith.constant dense<0.000000e+00> : vector<8xf32>
    %230 = vector.multi_reduction <add>, %229, %cst_137 [1] : vector<8x8xf32> to vector<8xf32>
    %231 = vector.shape_cast %230 : vector<8xf32> to vector<8x1xf32>
    %232 = tpu.reciprocal %231 {approx = true} : vector<8x1xf32> -> vector<8x1xf32>
    %233 = vector.broadcast %232 : vector<8x1xf32> to vector<8x8xf32>
    %234 = arith.mulf %229, %233 : vector<8x8xf32>
    %cst_138 = arith.constant dense<0.000000e+00> : vector<8x64xf32>
    %235 = tpu.matmul %234, %221, %cst_138 {dimension_numbers = #tpu.dot_dimension_numbers<[1], [0], [0], [1], [0, 0, 1, 1], [], []>} : vector<8x8xf32>, vector<8x64xf32>, vector<8x64xf32> -> vector<8x64xf32>
    %c1_139 = arith.constant 1 : index
    %c0_140 = arith.constant 0 : index
    %c0_141 = arith.constant 0 : index
    %236 = vector.load %arg18[%c1_139, %c0_140, %c0_141] : memref<2x64x64xf32, #tpu.memory_space<vmem>>, vector<1x64x64xf32>
    %237 = vector.shape_cast %236 : vector<1x64x64xf32> to vector<64x64xf32>
    %cst_142 = arith.constant dense<0.000000e+00> : vector<8x64xf32>
    %238 = tpu.matmul %235, %237, %cst_142 {dimension_numbers = #tpu.dot_dimension_numbers<[1], [0], [0], [1], [0, 0, 1, 1], [], []>} : vector<8x64xf32>, vector<64x64xf32>, vector<8x64xf32> -> vector<8x64xf32>
    %c1_143 = arith.constant 1 : index
    %c0_144 = arith.constant 0 : index
    %c0_145 = arith.constant 0 : index
    %239 = vector.load %arg19[%c1_143, %c0_144, %c0_145] : memref<2x1x64xf32, #tpu.memory_space<vmem>>, vector<1x1x64xf32>
    %240 = vector.shape_cast %239 : vector<1x1x64xf32> to vector<1x64xf32>
    %241 = vector.broadcast %240 : vector<1x64xf32> to vector<8x64xf32>
    %242 = arith.addf %238, %241 : vector<8x64xf32>
    %243 = arith.addf %200, %242 : vector<8x64xf32>
    %c1_146 = arith.constant 1 : index
    %c0_147 = arith.constant 0 : index
    %c0_148 = arith.constant 0 : index
    %244 = vector.load %arg20[%c1_146, %c0_147, %c0_148] : memref<2x1x64xf32, #tpu.memory_space<vmem>>, vector<1x1x64xf32>
    %245 = vector.shape_cast %244 : vector<1x1x64xf32> to vector<1x64xf32>
    %c1_149 = arith.constant 1 : index
    %c0_150 = arith.constant 0 : index
    %c0_151 = arith.constant 0 : index
    %246 = vector.load %arg21[%c1_149, %c0_150, %c0_151] : memref<2x1x64xf32, #tpu.memory_space<vmem>>, vector<1x1x64xf32>
    %247 = vector.shape_cast %246 : vector<1x1x64xf32> to vector<1x64xf32>
    %cst_152 = arith.constant dense<0.000000e+00> : vector<8xf32>
    %248 = vector.multi_reduction <add>, %243, %cst_152 [1] : vector<8x64xf32> to vector<8xf32>
    %249 = vector.shape_cast %248 : vector<8xf32> to vector<8x1xf32>
    %cst_153 = arith.constant 6.400000e+01 : f32
    %250 = vector.broadcast %cst_153 : f32 to vector<8x1xf32>
    %251 = arith.divf %249, %250 : vector<8x1xf32>
    %252 = vector.broadcast %251 : vector<8x1xf32> to vector<8x64xf32>
    %253 = arith.subf %243, %252 : vector<8x64xf32>
    %254 = arith.mulf %253, %253 : vector<8x64xf32>
    %cst_154 = arith.constant dense<0.000000e+00> : vector<8xf32>
    %255 = vector.multi_reduction <add>, %254, %cst_154 [1] : vector<8x64xf32> to vector<8xf32>
    %256 = vector.shape_cast %255 : vector<8xf32> to vector<8x1xf32>
    %cst_155 = arith.constant 6.400000e+01 : f32
    %257 = vector.broadcast %cst_155 : f32 to vector<8x1xf32>
    %258 = arith.divf %256, %257 : vector<8x1xf32>
    %259 = vector.broadcast %251 : vector<8x1xf32> to vector<8x64xf32>
    %260 = arith.subf %243, %259 : vector<8x64xf32>
    %cst_156 = arith.constant 9.99999974E-6 : f32
    %261 = vector.broadcast %cst_156 : f32 to vector<8x1xf32>
    %262 = arith.addf %258, %261 : vector<8x1xf32>
    %263 = math.rsqrt %262 : vector<8x1xf32>
    %264 = vector.broadcast %263 : vector<8x1xf32> to vector<8x64xf32>
    %265 = arith.mulf %260, %264 : vector<8x64xf32>
    %266 = vector.broadcast %245 : vector<1x64xf32> to vector<8x64xf32>
    %267 = arith.mulf %265, %266 : vector<8x64xf32>
    %268 = vector.broadcast %247 : vector<1x64xf32> to vector<8x64xf32>
    %269 = arith.addf %267, %268 : vector<8x64xf32>
    %c1_157 = arith.constant 1 : index
    %c0_158 = arith.constant 0 : index
    %c0_159 = arith.constant 0 : index
    %270 = vector.load %arg22[%c1_157, %c0_158, %c0_159] : memref<2x64x256xf32, #tpu.memory_space<vmem>>, vector<1x64x256xf32>
    %271 = vector.shape_cast %270 : vector<1x64x256xf32> to vector<64x256xf32>
    %cst_160 = arith.constant dense<0.000000e+00> : vector<8x256xf32>
    %272 = tpu.matmul %269, %271, %cst_160 {dimension_numbers = #tpu.dot_dimension_numbers<[1], [0], [0], [1], [0, 0, 1, 1], [], []>} : vector<8x64xf32>, vector<64x256xf32>, vector<8x256xf32> -> vector<8x256xf32>
    %c1_161 = arith.constant 1 : index
    %c0_162 = arith.constant 0 : index
    %c0_163 = arith.constant 0 : index
    %273 = vector.load %arg23[%c1_161, %c0_162, %c0_163] : memref<2x1x256xf32, #tpu.memory_space<vmem>>, vector<1x1x256xf32>
    %274 = vector.shape_cast %273 : vector<1x1x256xf32> to vector<1x256xf32>
    %275 = vector.broadcast %274 : vector<1x256xf32> to vector<8x256xf32>
    %276 = arith.addf %272, %275 : vector<8x256xf32>
    %cst_164 = arith.constant 0.000000e+00 : f32
    %277 = vector.broadcast %cst_164 : f32 to vector<8x256xf32>
    %278 = arith.maximumf %276, %277 : vector<8x256xf32>
    %c1_165 = arith.constant 1 : index
    %c0_166 = arith.constant 0 : index
    %c0_167 = arith.constant 0 : index
    %279 = vector.load %arg24[%c1_165, %c0_166, %c0_167] : memref<2x256x64xf32, #tpu.memory_space<vmem>>, vector<1x256x64xf32>
    %280 = vector.shape_cast %279 : vector<1x256x64xf32> to vector<256x64xf32>
    %cst_168 = arith.constant dense<0.000000e+00> : vector<8x64xf32>
    %281 = tpu.matmul %278, %280, %cst_168 {dimension_numbers = #tpu.dot_dimension_numbers<[1], [0], [0], [1], [0, 0, 1, 1], [], []>} : vector<8x256xf32>, vector<256x64xf32>, vector<8x64xf32> -> vector<8x64xf32>
    %c1_169 = arith.constant 1 : index
    %c0_170 = arith.constant 0 : index
    %c0_171 = arith.constant 0 : index
    %282 = vector.load %arg25[%c1_169, %c0_170, %c0_171] : memref<2x1x64xf32, #tpu.memory_space<vmem>>, vector<1x1x64xf32>
    %283 = vector.shape_cast %282 : vector<1x1x64xf32> to vector<1x64xf32>
    %284 = vector.broadcast %283 : vector<1x64xf32> to vector<8x64xf32>
    %285 = arith.addf %281, %284 : vector<8x64xf32>
    %286 = arith.addf %269, %285 : vector<8x64xf32>
    %c1_172 = arith.constant 1 : index
    %c0_173 = arith.constant 0 : index
    %c0_174 = arith.constant 0 : index
    %287 = vector.load %arg26[%c1_172, %c0_173, %c0_174] : memref<2x1x64xf32, #tpu.memory_space<vmem>>, vector<1x1x64xf32>
    %288 = vector.shape_cast %287 : vector<1x1x64xf32> to vector<1x64xf32>
    %c1_175 = arith.constant 1 : index
    %c0_176 = arith.constant 0 : index
    %c0_177 = arith.constant 0 : index
    %289 = vector.load %arg27[%c1_175, %c0_176, %c0_177] : memref<2x1x64xf32, #tpu.memory_space<vmem>>, vector<1x1x64xf32>
    %290 = vector.shape_cast %289 : vector<1x1x64xf32> to vector<1x64xf32>
    %cst_178 = arith.constant dense<0.000000e+00> : vector<8xf32>
    %291 = vector.multi_reduction <add>, %286, %cst_178 [1] : vector<8x64xf32> to vector<8xf32>
    %292 = vector.shape_cast %291 : vector<8xf32> to vector<8x1xf32>
    %cst_179 = arith.constant 6.400000e+01 : f32
    %293 = vector.broadcast %cst_179 : f32 to vector<8x1xf32>
    %294 = arith.divf %292, %293 : vector<8x1xf32>
    %295 = vector.broadcast %294 : vector<8x1xf32> to vector<8x64xf32>
    %296 = arith.subf %286, %295 : vector<8x64xf32>
    %297 = arith.mulf %296, %296 : vector<8x64xf32>
    %cst_180 = arith.constant dense<0.000000e+00> : vector<8xf32>
    %298 = vector.multi_reduction <add>, %297, %cst_180 [1] : vector<8x64xf32> to vector<8xf32>
    %299 = vector.shape_cast %298 : vector<8xf32> to vector<8x1xf32>
    %cst_181 = arith.constant 6.400000e+01 : f32
    %300 = vector.broadcast %cst_181 : f32 to vector<8x1xf32>
    %301 = arith.divf %299, %300 : vector<8x1xf32>
    %302 = vector.broadcast %294 : vector<8x1xf32> to vector<8x64xf32>
    %303 = arith.subf %286, %302 : vector<8x64xf32>
    %cst_182 = arith.constant 9.99999974E-6 : f32
    %304 = vector.broadcast %cst_182 : f32 to vector<8x1xf32>
    %305 = arith.addf %301, %304 : vector<8x1xf32>
    %306 = math.rsqrt %305 : vector<8x1xf32>
    %307 = vector.broadcast %306 : vector<8x1xf32> to vector<8x64xf32>
    %308 = arith.mulf %303, %307 : vector<8x64xf32>
    %309 = vector.broadcast %288 : vector<1x64xf32> to vector<8x64xf32>
    %310 = arith.mulf %308, %309 : vector<8x64xf32>
    %311 = vector.broadcast %290 : vector<1x64xf32> to vector<8x64xf32>
    %312 = arith.addf %310, %311 : vector<8x64xf32>
    %cst_183 = arith.constant dense<0.000000e+00> : vector<64xf32>
    %313 = vector.multi_reduction <add>, %312, %cst_183 [0] : vector<8x64xf32> to vector<64xf32>
    %314 = vector.shape_cast %313 : vector<64xf32> to vector<1x64xf32>
    %cst_184 = arith.constant 8.000000e+00 : f32
    %315 = vector.broadcast %cst_184 : f32 to vector<1x64xf32>
    %316 = arith.divf %314, %315 : vector<1x64xf32>
    %c0_185 = arith.constant 0 : index
    %c0_186 = arith.constant 0 : index
    %c0_187 = arith.constant 0 : index
    %317 = vector.load %arg30[%c0_185, %c0_186, %c0_187] : memref<1x1x64xf32, #tpu.memory_space<vmem>>, vector<1x1x64xf32>
    %318 = vector.shape_cast %317 : vector<1x1x64xf32> to vector<1x64xf32>
    %319 = vector.shape_cast %316 : vector<1x64xf32> to vector<1x1x64xf32>
    tpu.vector_store %arg30[%c0_185, %c0_186, %c0_187], %319 {strides = array<i32>} : memref<1x1x64xf32, #tpu.memory_space<vmem>>, vector<1x1x64xf32>,
    %c0_188 = arith.constant 0 : index
    %c0_189 = arith.constant 0 : index
    %320 = vector.load %arg28[%c0_188, %c0_189] : memref<64x128xf32, #tpu.memory_space<vmem>>, vector<64x128xf32>
    %cst_190 = arith.constant dense<0.000000e+00> : vector<1x128xf32>
    %321 = tpu.matmul %316, %320, %cst_190 {dimension_numbers = #tpu.dot_dimension_numbers<[1], [0], [0], [1], [0, 0, 1, 1], [], []>} : vector<1x64xf32>, vector<64x128xf32>, vector<1x128xf32> -> vector<1x128xf32>
    %c0_191 = arith.constant 0 : index
    %c0_192 = arith.constant 0 : index
    %322 = vector.load %arg29[%c0_191, %c0_192] : memref<1x128xf32, #tpu.memory_space<vmem>>, vector<1x128xf32>
    %323 = arith.addf %321, %322 : vector<1x128xf32>
    %c0_193 = arith.constant 0 : index
    %c0_194 = arith.constant 0 : index
    %c0_195 = arith.constant 0 : index
    %324 = vector.load %arg31[%c0_193, %c0_194, %c0_195] : memref<1x1x128xf32, #tpu.memory_space<vmem>>, vector<1x1x128xf32>
    %325 = vector.shape_cast %324 : vector<1x1x128xf32> to vector<1x128xf32>
    %326 = vector.shape_cast %323 : vector<1x128xf32> to vector<1x1x128xf32>
    tpu.vector_store %arg31[%c0_193, %c0_194, %c0_195], %326 {strides = array<i32>} : memref<1x1x128xf32, #tpu.memory_space<vmem>>, vector<1x1x128xf32>,
    return
  }
  func.func @transform_0(%arg0: i32) -> (i32, i32, i32) {
    %c0_i32 = arith.constant 0 : i32
    %c0_i32_0 = arith.constant 0 : i32
    %c0_i32_1 = arith.constant 0 : i32
    return %arg0, %c0_i32, %c0_i32_0 : i32, i32, i32
  }
  func.func @transform_1(%arg0: i32) -> (i32, i32, i32) {
    %c0_i32 = arith.constant 0 : i32
    %c0_i32_0 = arith.constant 0 : i32
    %c0_i32_1 = arith.constant 0 : i32
    return %arg0, %c0_i32, %c0_i32_0 : i32, i32, i32
  }
  func.func @transform_2(%arg0: i32) -> (i32, i32) {
    %c0_i32 = arith.constant 0 : i32
    %c0_i32_0 = arith.constant 0 : i32
    %c0_i32_1 = arith.constant 0 : i32
    return %c0_i32, %c0_i32_0 : i32, i32
  }
  func.func @transform_3(%arg0: i32) -> (i32, i32) {
    %c0_i32 = arith.constant 0 : i32
    %c0_i32_0 = arith.constant 0 : i32
    %c0_i32_1 = arith.constant 0 : i32
    return %c0_i32, %c0_i32_0 : i32, i32
  }
  func.func @transform_4(%arg0: i32) -> (i32, i32) {
    %c0_i32 = arith.constant 0 : i32
    %c0_i32_0 = arith.constant 0 : i32
    %c0_i32_1 = arith.constant 0 : i32
    return %c0_i32, %c0_i32_0 : i32, i32
  }
  func.func @transform_5(%arg0: i32) -> (i32, i32) {
    %c0_i32 = arith.constant 0 : i32
    %c0_i32_0 = arith.constant 0 : i32
    %c0_i32_1 = arith.constant 0 : i32
    return %c0_i32, %c0_i32_0 : i32, i32
  }
  func.func @transform_6(%arg0: i32) -> (i32, i32) {
    %c0_i32 = arith.constant 0 : i32
    %c0_i32_0 = arith.constant 0 : i32
    %c0_i32_1 = arith.constant 0 : i32
    return %c0_i32, %c0_i32_0 : i32, i32
  }
  func.func @transform_7(%arg0: i32) -> (i32, i32) {
    %c0_i32 = arith.constant 0 : i32
    %c0_i32_0 = arith.constant 0 : i32
    %c0_i32_1 = arith.constant 0 : i32
    return %c0_i32, %c0_i32_0 : i32, i32
  }
  func.func @transform_8(%arg0: i32) -> (i32, i32) {
    %c0_i32 = arith.constant 0 : i32
    %c0_i32_0 = arith.constant 0 : i32
    %c0_i32_1 = arith.constant 0 : i32
    return %c0_i32, %c0_i32_0 : i32, i32
  }
  func.func @transform_9(%arg0: i32) -> (i32, i32) {
    %c0_i32 = arith.constant 0 : i32
    %c0_i32_0 = arith.constant 0 : i32
    %c0_i32_1 = arith.constant 0 : i32
    return %c0_i32, %c0_i32_0 : i32, i32
  }
  func.func @transform_10(%arg0: i32) -> (i32, i32) {
    %c0_i32 = arith.constant 0 : i32
    %c0_i32_0 = arith.constant 0 : i32
    %c0_i32_1 = arith.constant 0 : i32
    return %c0_i32, %c0_i32_0 : i32, i32
  }
  func.func @transform_11(%arg0: i32) -> (i32, i32, i32) {
    %c0_i32 = arith.constant 0 : i32
    %c0_i32_0 = arith.constant 0 : i32
    %c0_i32_1 = arith.constant 0 : i32
    %c0_i32_2 = arith.constant 0 : i32
    return %c0_i32, %c0_i32_0, %c0_i32_1 : i32, i32, i32
  }
  func.func @transform_12(%arg0: i32) -> (i32, i32, i32) {
    %c0_i32 = arith.constant 0 : i32
    %c0_i32_0 = arith.constant 0 : i32
    %c0_i32_1 = arith.constant 0 : i32
    %c0_i32_2 = arith.constant 0 : i32
    return %c0_i32, %c0_i32_0, %c0_i32_1 : i32, i32, i32
  }
  func.func @transform_13(%arg0: i32) -> (i32, i32, i32) {
    %c0_i32 = arith.constant 0 : i32
    %c0_i32_0 = arith.constant 0 : i32
    %c0_i32_1 = arith.constant 0 : i32
    %c0_i32_2 = arith.constant 0 : i32
    return %c0_i32, %c0_i32_0, %c0_i32_1 : i32, i32, i32
  }
  func.func @transform_14(%arg0: i32) -> (i32, i32, i32) {
    %c0_i32 = arith.constant 0 : i32
    %c0_i32_0 = arith.constant 0 : i32
    %c0_i32_1 = arith.constant 0 : i32
    %c0_i32_2 = arith.constant 0 : i32
    return %c0_i32, %c0_i32_0, %c0_i32_1 : i32, i32, i32
  }
  func.func @transform_15(%arg0: i32) -> (i32, i32, i32) {
    %c0_i32 = arith.constant 0 : i32
    %c0_i32_0 = arith.constant 0 : i32
    %c0_i32_1 = arith.constant 0 : i32
    %c0_i32_2 = arith.constant 0 : i32
    return %c0_i32, %c0_i32_0, %c0_i32_1 : i32, i32, i32
  }
  func.func @transform_16(%arg0: i32) -> (i32, i32, i32) {
    %c0_i32 = arith.constant 0 : i32
    %c0_i32_0 = arith.constant 0 : i32
    %c0_i32_1 = arith.constant 0 : i32
    %c0_i32_2 = arith.constant 0 : i32
    return %c0_i32, %c0_i32_0, %c0_i32_1 : i32, i32, i32
  }
  func.func @transform_17(%arg0: i32) -> (i32, i32, i32) {
    %c0_i32 = arith.constant 0 : i32
    %c0_i32_0 = arith.constant 0 : i32
    %c0_i32_1 = arith.constant 0 : i32
    %c0_i32_2 = arith.constant 0 : i32
    return %c0_i32, %c0_i32_0, %c0_i32_1 : i32, i32, i32
  }
  func.func @transform_18(%arg0: i32) -> (i32, i32, i32) {
    %c0_i32 = arith.constant 0 : i32
    %c0_i32_0 = arith.constant 0 : i32
    %c0_i32_1 = arith.constant 0 : i32
    %c0_i32_2 = arith.constant 0 : i32
    return %c0_i32, %c0_i32_0, %c0_i32_1 : i32, i32, i32
  }
  func.func @transform_19(%arg0: i32) -> (i32, i32, i32) {
    %c0_i32 = arith.constant 0 : i32
    %c0_i32_0 = arith.constant 0 : i32
    %c0_i32_1 = arith.constant 0 : i32
    %c0_i32_2 = arith.constant 0 : i32
    return %c0_i32, %c0_i32_0, %c0_i32_1 : i32, i32, i32
  }
  func.func @transform_20(%arg0: i32) -> (i32, i32, i32) {
    %c0_i32 = arith.constant 0 : i32
    %c0_i32_0 = arith.constant 0 : i32
    %c0_i32_1 = arith.constant 0 : i32
    %c0_i32_2 = arith.constant 0 : i32
    return %c0_i32, %c0_i32_0, %c0_i32_1 : i32, i32, i32
  }
  func.func @transform_21(%arg0: i32) -> (i32, i32, i32) {
    %c0_i32 = arith.constant 0 : i32
    %c0_i32_0 = arith.constant 0 : i32
    %c0_i32_1 = arith.constant 0 : i32
    %c0_i32_2 = arith.constant 0 : i32
    return %c0_i32, %c0_i32_0, %c0_i32_1 : i32, i32, i32
  }
  func.func @transform_22(%arg0: i32) -> (i32, i32, i32) {
    %c0_i32 = arith.constant 0 : i32
    %c0_i32_0 = arith.constant 0 : i32
    %c0_i32_1 = arith.constant 0 : i32
    %c0_i32_2 = arith.constant 0 : i32
    return %c0_i32, %c0_i32_0, %c0_i32_1 : i32, i32, i32
  }
  func.func @transform_23(%arg0: i32) -> (i32, i32, i32) {
    %c0_i32 = arith.constant 0 : i32
    %c0_i32_0 = arith.constant 0 : i32
    %c0_i32_1 = arith.constant 0 : i32
    %c0_i32_2 = arith.constant 0 : i32
    return %c0_i32, %c0_i32_0, %c0_i32_1 : i32, i32, i32
  }
  func.func @transform_24(%arg0: i32) -> (i32, i32, i32) {
    %c0_i32 = arith.constant 0 : i32
    %c0_i32_0 = arith.constant 0 : i32
    %c0_i32_1 = arith.constant 0 : i32
    %c0_i32_2 = arith.constant 0 : i32
    return %c0_i32, %c0_i32_0, %c0_i32_1 : i32, i32, i32
  }
  func.func @transform_25(%arg0: i32) -> (i32, i32, i32) {
    %c0_i32 = arith.constant 0 : i32
    %c0_i32_0 = arith.constant 0 : i32
    %c0_i32_1 = arith.constant 0 : i32
    %c0_i32_2 = arith.constant 0 : i32
    return %c0_i32, %c0_i32_0, %c0_i32_1 : i32, i32, i32
  }
  func.func @transform_26(%arg0: i32) -> (i32, i32, i32) {
    %c0_i32 = arith.constant 0 : i32
    %c0_i32_0 = arith.constant 0 : i32
    %c0_i32_1 = arith.constant 0 : i32
    %c0_i32_2 = arith.constant 0 : i32
    return %c0_i32, %c0_i32_0, %c0_i32_1 : i32, i32, i32
  }
  func.func @transform_27(%arg0: i32) -> (i32, i32) {
    %c0_i32 = arith.constant 0 : i32
    %c0_i32_0 = arith.constant 0 : i32
    %c0_i32_1 = arith.constant 0 : i32
    return %c0_i32, %c0_i32_0 : i32, i32
  }
  func.func @transform_28(%arg0: i32) -> (i32, i32) {
    %c0_i32 = arith.constant 0 : i32
    %c0_i32_0 = arith.constant 0 : i32
    %c0_i32_1 = arith.constant 0 : i32
    return %c0_i32, %c0_i32_0 : i32, i32
  }
  func.func @transform_29(%arg0: i32) -> (i32, i32, i32) {
    %c0_i32 = arith.constant 0 : i32
    %c0_i32_0 = arith.constant 0 : i32
    %c0_i32_1 = arith.constant 0 : i32
    return %arg0, %c0_i32, %c0_i32_0 : i32, i32, i32
  }
  func.func @transform_30(%arg0: i32) -> (i32, i32, i32) {
    %c0_i32 = arith.constant 0 : i32
    %c0_i32_0 = arith.constant 0 : i32
    %c0_i32_1 = arith.constant 0 : i32
    return %arg0, %c0_i32, %c0_i32_0 : i32, i32, i32
  }
}

</mosaic_0001>

<llo_original>
// kernel: transnet2_forward.1
$region0: #{transnet2_forward.1}
  #allocation0 [shape = 'u32[]', space=smem, size = 0x4, offset = 0x4, fixed_abs, tag = 'smem constant byte address 0x4 - core index']
  #allocation1 [shape = 'u32[144,128]{1,0:T(1,128)}', space=vmem, size = 0x12000, scoped, tag = 'internal scratch']
  %s0 = inlined_call_operand.smem [shape: u32[31], index: -1, kind: input, shape index: {}]
  %s1 = sld [smem:[%s0]]
  %s2 = scalar_lea.smem %s0, 1
  %s3 = sld [smem:[%s2]]
  %s4 = scalar_lea.smem %s0, 2
  %s5 = sld [smem:[%s4]]
  %s6 = scalar_lea.smem %s0, 3
  %s7 = sld [smem:[%s6]]
  %s8 = scalar_lea.smem %s0, 4
  %s9 = sld [smem:[%s8]]
  %s10 = scalar_lea.smem %s0, 5
  %s11 = sld [smem:[%s10]]
  %s12 = scalar_lea.smem %s0, 6
  %s13 = sld [smem:[%s12]]
  %s14 = scalar_lea.smem %s0, 7
  %s15 = sld [smem:[%s14]]
  %s16 = scalar_lea.smem %s0, 8
  %s17 = sld [smem:[%s16]]
  %s18 = scalar_lea.smem %s0, 9
  %s19 = sld [smem:[%s18]]
  %s20 = scalar_lea.smem %s0, 10
  %s21 = sld [smem:[%s20]]
  %s22 = scalar_lea.smem %s0, 11
  %s23 = sld [smem:[%s22]]
  %s24 = scalar_lea.smem %s0, 12
  %s25 = sld [smem:[%s24]]
  %s26 = scalar_lea.smem %s0, 13
  %s27 = sld [smem:[%s26]]
  %s28 = scalar_lea.smem %s0, 14
  %s29 = sld [smem:[%s28]]
  %s30 = scalar_lea.smem %s0, 15
  %s31 = sld [smem:[%s30]]
  %s32 = scalar_lea.smem %s0, 16
  %s33 = sld [smem:[%s32]]
  %s34 = scalar_lea.smem %s0, 17
  %s35 = sld [smem:[%s34]]
  %s36 = scalar_lea.smem %s0, 18
  %s37 = sld [smem:[%s36]]
  %s38 = scalar_lea.smem %s0, 19
  %s39 = sld [smem:[%s38]]
  %s40 = scalar_lea.smem %s0, 20
  %s41 = sld [smem:[%s40]]
  %s42 = scalar_lea.smem %s0, 21
  %s43 = sld [smem:[%s42]]
  %s44 = scalar_lea.smem %s0, 22
  %s45 = sld [smem:[%s44]]
  %s46 = scalar_lea.smem %s0, 23
  %s47 = sld [smem:[%s46]]
  %s48 = scalar_lea.smem %s0, 24
  %s49 = sld [smem:[%s48]]
  %s50 = scalar_lea.smem %s0, 25
  %s51 = sld [smem:[%s50]]
  %s52 = scalar_lea.smem %s0, 26
  %s53 = sld [smem:[%s52]]
  %s54 = scalar_lea.smem %s0, 27
  %s55 = sld [smem:[%s54]]
  %s56 = scalar_lea.smem %s0, 28
  %s57 = sld [smem:[%s56]]
  %s58 = scalar_lea.smem %s0, 29
  %s59 = sld [smem:[%s58]]
  %s60 = scalar_lea.smem %s0, 30
  %s61 = sld [smem:[%s60]]
  %62 = xla_tuple %s59, %s61
  %s63 = sld [smem:[#allocation0]]
  $region161: #{transnet2_forward.1} parent=0
    _
  %s65 = ssub.s32 1, %s63
  %s66 = scalar_select 0, %s65, %s63
  $region1: #{transnet2_forward.1} parent=0
    #allocation2 [shape = 'u8[32768]{0}', space=vmem, size = 0x8000, scoped, tag = 'input window, operand 27, single buffered']
    #allocation3 [shape = 's32[2]{0}', space=sflag, size = 0x8, scoped, tag = 'scoped memory for transnet2_forward.1']
    #allocation4 [shape = 's32[2]{0}', space=sflag, size = 0x8, scoped, tag = 'scoped memory for transnet2_forward.1']
    #allocation5 [shape = 'u8[1024]{0}', space=vmem, size = 0x400, scoped, tag = 'output window, operand 0']
    %67 = vsyncpa [#allocation3], 0
    %68 = vsyncpa [#allocation4], 0
    %s69 = scalar_lea.sflag [#allocation4], 1
    %70 = vsyncpa %s69, 0
    loop: start=0, step=1, limit=4
    $region2: #{transnet2_forward.1} parent=1 // loop_pre_header
      _
    $region3: #{transnet2_forward.1} parent=1 // loop_header
      %s72 = sphi 0, %s76
      %p73 = scmp.ge.s32.totalorder %s72, 4
      %s82 = sphi 0, %s84
      %s85 = sphi 0, %s82
      %s86 = sphi 0, %s85
      %s102 = sphi 0, %s86
      %s108 = sphi 0, %s110
      %s111 = sphi 0, %s108
      %s112 = sphi 0, %s111
      %s128 = sphi 0, %s112
      %s132 = sphi 0, %s132
      %s134 = sphi 0, %s132
      %s135 = sphi 0, %s134
      %s149 = sphi 0, %s135
      %s153 = sphi 0, %s153
      %s155 = sphi 0, %s153
      %s156 = sphi 0, %s155
      %s170 = sphi 0, %s156
      %s174 = sphi 0, %s174
      %s176 = sphi 0, %s174
      %s177 = sphi 0, %s176
      %s191 = sphi 0, %s177
      %s195 = sphi 0, %s195
      %s197 = sphi 0, %s195
      %s198 = sphi 0, %s197
      %s212 = sphi 0, %s198
      %s216 = sphi 0, %s216
      %s218 = sphi 0, %s216
      %s219 = sphi 0, %s218
      %s233 = sphi 0, %s219
      %s237 = sphi 0, %s237
      %s239 = sphi 0, %s237
      %s240 = sphi 0, %s239
      %s254 = sphi 0, %s240
      %s258 = sphi 0, %s258
      %s260 = sphi 0, %s258
      %s261 = sphi 0, %s260
      %s275 = sphi 0, %s261
      %s279 = sphi 0, %s279
      %s281 = sphi 0, %s279
      %s282 = sphi 0, %s281
      %s296 = sphi 0, %s282
      %s300 = sphi 0, %s300
      %s302 = sphi 0, %s300
      %s303 = sphi 0, %s302
      %s317 = sphi 0, %s303
      %s321 = sphi 0, %s321
      %s323 = sphi 0, %s321
      %s324 = sphi 0, %s323
      %s338 = sphi 0, %s324
      %s342 = sphi 0, %s342
      %s344 = sphi 0, %s342
      %s345 = sphi 0, %s344
      %s359 = sphi 0, %s345
      %s363 = sphi 0, %s363
      %s365 = sphi 0, %s363
      %s366 = sphi 0, %s365
      %s380 = sphi 0, %s366
      %s384 = sphi 0, %s384
      %s386 = sphi 0, %s384
      %s387 = sphi 0, %s386
      %s401 = sphi 0, %s387
      %s405 = sphi 0, %s405
      %s407 = sphi 0, %s405
      %s408 = sphi 0, %s407
      %s422 = sphi 0, %s408
      %s426 = sphi 0, %s426
      %s428 = sphi 0, %s426
      %s429 = sphi 0, %s428
      %s443 = sphi 0, %s429
      %s447 = sphi 0, %s447
      %s449 = sphi 0, %s447
      %s450 = sphi 0, %s449
      %s464 = sphi 0, %s450
      %s468 = sphi 0, %s468
      %s470 = sphi 0, %s468
      %s471 = sphi 0, %s470
      %s485 = sphi 0, %s471
      %s489 = sphi 0, %s489
      %s491 = sphi 0, %s489
      %s492 = sphi 0, %s491
      %s506 = sphi 0, %s492
      %s510 = sphi 0, %s510
      %s512 = sphi 0, %s510
      %s513 = sphi 0, %s512
      %s527 = sphi 0, %s513
      %s531 = sphi 0, %s531
      %s533 = sphi 0, %s531
      %s534 = sphi 0, %s533
      %s548 = sphi 0, %s534
      %s552 = sphi 0, %s552
      %s554 = sphi 0, %s552
      %s555 = sphi 0, %s554
      %s569 = sphi 0, %s555
      %s573 = sphi 0, %s573
      %s575 = sphi 0, %s573
      %s576 = sphi 0, %s575
      %s590 = sphi 0, %s576
      %s594 = sphi 0, %s594
      %s596 = sphi 0, %s594
      %s597 = sphi 0, %s596
      %s611 = sphi 0, %s597
      %s615 = sphi 0, %s615
      %s617 = sphi 0, %s615
      %s618 = sphi 0, %s617
      %s632 = sphi 0, %s618
      %s636 = sphi 0, %s636
      %s638 = sphi 0, %s636
      %s639 = sphi 0, %s638
      %s653 = sphi 0, %s639
      %s657 = sphi 0, %s657
      %s659 = sphi 0, %s657
      %s660 = sphi 0, %s659
      %s674 = sphi 0, %s660
      %s678 = sphi 0, %s678
      %s680 = sphi 0, %s678
      %s681 = sphi 0, %s680
      %s695 = sphi 0, %s681
      %s701 = sphi 0, %s703
      %s704 = sphi 0, %s701
      %s705 = sphi 0, %s704
      %s721 = sphi 0, %s705
      %s727 = sphi 0, %s729
      %s730 = sphi 0, %s727
      %s731 = sphi 0, %s730
      %s747 = sphi 0, %s731
    $region4: #{transnet2_forward.1} parent=1 // loop_header_branch
      %75 = sbr.rel (%p73) target = $region8
    $region5: #{transnet2_forward.1} parent=1 // loop_body
      %s77 = ssub.s32 %s72, 1
      %s78 = ssub.s32 %s72, 2
      %s79 = sadd.s32 %s72, 1
      %s80 = ssub.s32 %s72, %s79
      %p81 = scmp.eq.s32.totalorder %s80, 0
      %s83 = sadd.s32 %s82, 1
      %s84 = scalar_select %p81, %s82, %s83
      %p87 = pneg %p81
      %p88 = scmp.eq.s32.totalorder %s72, 1
      %p89 = por %p87, %p88
      %p90 = scmp.ne.s32.totalorder %s82, %s85
      %p91 = scmp.eq.s32.totalorder %s72, 0
      %p92 = por %p90, %p91
      %p93 = scmp.ne.s32.totalorder %s82, %s85
      %p94 = scmp.eq.s32.totalorder %s77, 1
      %p95 = por %p93, %p94
      %p96 = scmp.ne.s32.totalorder %s85, %s86
      %p97 = scmp.eq.s32.totalorder %s77, 0
      %p98 = por %p96, %p97
      %p99 = scmp.ne.s32.totalorder %s85, %s86
      %p100 = scmp.eq.s32.totalorder %s78, 1
      %p101 = por %p99, %p100
      %p103 = scmp.ne.s32.totalorder %s86, %s102
      %p104 = scmp.eq.s32.totalorder %s78, 0
      %p105 = por %p103, %p104
      %s106 = ssub.s32 %s72, %s79
      %p107 = scmp.eq.s32.totalorder %s106, 0
      %s109 = sadd.s32 %s108, 1
      %s110 = scalar_select %p107, %s108, %s109
      %p113 = pneg %p107
      %p114 = scmp.eq.s32.totalorder %s72, 1
      %p115 = por %p113, %p114
      %p116 = scmp.ne.s32.totalorder %s108, %s111
      %p117 = scmp.eq.s32.totalorder %s72, 0
      %p118 = por %p116, %p117
      %p119 = scmp.ne.s32.totalorder %s108, %s111
      %p120 = scmp.eq.s32.totalorder %s77, 1
      %p121 = por %p119, %p120
      %p122 = scmp.ne.s32.totalorder %s111, %s112
      %p123 = scmp.eq.s32.totalorder %s77, 0
      %p124 = por %p122, %p123
      %p125 = scmp.ne.s32.totalorder %s111, %s112
      %p126 = scmp.eq.s32.totalorder %s78, 1
      %p127 = por %p125, %p126
      %p129 = scmp.ne.s32.totalorder %s112, %s128
      %p130 = scmp.eq.s32.totalorder %s78, 0
      %p131 = por %p129, %p130
      %s133 = sadd.s32 %s132, 1
      %p136 = scmp.eq.s32.totalorder %s72, 1
      %p137 = scmp.ne.s32.totalorder %s132, %s134
      %p138 = scmp.eq.s32.totalorder %s72, 0
      %p139 = por %p137, %p138
      %p140 = scmp.ne.s32.totalorder %s132, %s134
      %p141 = scmp.eq.s32.totalorder %s77, 1
      %p142 = por %p140, %p141
      %p143 = scmp.ne.s32.totalorder %s134, %s135
      %p144 = scmp.eq.s32.totalorder %s77, 0
      %p145 = por %p143, %p144
      %p146 = scmp.ne.s32.totalorder %s134, %s135
      %p147 = scmp.eq.s32.totalorder %s78, 1
      %p148 = por %p146, %p147
      %p150 = scmp.ne.s32.totalorder %s135, %s149
      %p151 = scmp.eq.s32.totalorder %s78, 0
      %p152 = por %p150, %p151
      %s154 = sadd.s32 %s153, 1
      %p157 = scmp.eq.s32.totalorder %s72, 1
      %p158 = scmp.ne.s32.totalorder %s153, %s155
      %p159 = scmp.eq.s32.totalorder %s72, 0
      %p160 = por %p158, %p159
      %p161 = scmp.ne.s32.totalorder %s153, %s155
      %p162 = scmp.eq.s32.totalorder %s77, 1
      %p163 = por %p161, %p162
      %p164 = scmp.ne.s32.totalorder %s155, %s156
      %p165 = scmp.eq.s32.totalorder %s77, 0
      %p166 = por %p164, %p165
      %p167 = scmp.ne.s32.totalorder %s155, %s156
      %p168 = scmp.eq.s32.totalorder %s78, 1
      %p169 = por %p167, %p168
      %p171 = scmp.ne.s32.totalorder %s156, %s170
      %p172 = scmp.eq.s32.totalorder %s78, 0
      %p173 = por %p171, %p172
      %s175 = sadd.s32 %s174, 1
      %p178 = scmp.eq.s32.totalorder %s72, 1
      %p179 = scmp.ne.s32.totalorder %s174, %s176
      %p180 = scmp.eq.s32.totalorder %s72, 0
      %p181 = por %p179, %p180
      %p182 = scmp.ne.s32.totalorder %s174, %s176
      %p183 = scmp.eq.s32.totalorder %s77, 1
      %p184 = por %p182, %p183
      %p185 = scmp.ne.s32.totalorder %s176, %s177
      %p186 = scmp.eq.s32.totalorder %s77, 0
      %p187 = por %p185, %p186
      %p188 = scmp.ne.s32.totalorder %s176, %s177
      %p189 = scmp.eq.s32.totalorder %s78, 1
      %p190 = por %p188, %p189
      %p192 = scmp.ne.s32.totalorder %s177, %s191
      %p193 = scmp.eq.s32.totalorder %s78, 0
      %p194 = por %p192, %p193
      %s196 = sadd.s32 %s195, 1
      %p199 = scmp.eq.s32.totalorder %s72, 1
      %p200 = scmp.ne.s32.totalorder %s195, %s197
      %p201 = scmp.eq.s32.totalorder %s72, 0
      %p202 = por %p200, %p201
      %p203 = scmp.ne.s32.totalorder %s195, %s197
      %p204 = scmp.eq.s32.totalorder %s77, 1
      %p205 = por %p203, %p204
      %p206 = scmp.ne.s32.totalorder %s197, %s198
      %p207 = scmp.eq.s32.totalorder %s77, 0
      %p208 = por %p206, %p207
      %p209 = scmp.ne.s32.totalorder %s197, %s198
      %p210 = scmp.eq.s32.totalorder %s78, 1
      %p211 = por %p209, %p210
      %p213 = scmp.ne.s32.totalorder %s198, %s212
      %p214 = scmp.eq.s32.totalorder %s78, 0
      %p215 = por %p213, %p214
      %s217 = sadd.s32 %s216, 1
      %p220 = scmp.eq.s32.totalorder %s72, 1
      %p221 = scmp.ne.s32.totalorder %s216, %s218
      %p222 = scmp.eq.s32.totalorder %s72, 0
      %p223 = por %p221, %p222
      %p224 = scmp.ne.s32.totalorder %s216, %s218
      %p225 = scmp.eq.s32.totalorder %s77, 1
      %p226 = por %p224, %p225
      %p227 = scmp.ne.s32.totalorder %s218, %s219
      %p228 = scmp.eq.s32.totalorder %s77, 0
      %p229 = por %p227, %p228
      %p230 = scmp.ne.s32.totalorder %s218, %s219
      %p231 = scmp.eq.s32.totalorder %s78, 1
      %p232 = por %p230, %p231
      %p234 = scmp.ne.s32.totalorder %s219, %s233
      %p235 = scmp.eq.s32.totalorder %s78, 0
      %p236 = por %p234, %p235
      %s238 = sadd.s32 %s237, 1
      %p241 = scmp.eq.s32.totalorder %s72, 1
      %p242 = scmp.ne.s32.totalorder %s237, %s239
      %p243 = scmp.eq.s32.totalorder %s72, 0
      %p244 = por %p242, %p243
      %p245 = scmp.ne.s32.totalorder %s237, %s239
      %p246 = scmp.eq.s32.totalorder %s77, 1
      %p247 = por %p245, %p246
      %p248 = scmp.ne.s32.totalorder %s239, %s240
      %p249 = scmp.eq.s32.totalorder %s77, 0
      %p250 = por %p248, %p249
      %p251 = scmp.ne.s32.totalorder %s239, %s240
      %p252 = scmp.eq.s32.totalorder %s78, 1
      %p253 = por %p251, %p252
      %p255 = scmp.ne.s32.totalorder %s240, %s254
      %p256 = scmp.eq.s32.totalorder %s78, 0
      %p257 = por %p255, %p256
      %s259 = sadd.s32 %s258, 1
      %p262 = scmp.eq.s32.totalorder %s72, 1
      %p263 = scmp.ne.s32.totalorder %s258, %s260
      %p264 = scmp.eq.s32.totalorder %s72, 0
      %p265 = por %p263, %p264
      %p266 = scmp.ne.s32.totalorder %s258, %s260
      %p267 = scmp.eq.s32.totalorder %s77, 1
      %p268 = por %p266, %p267
      %p269 = scmp.ne.s32.totalorder %s260, %s261
      %p270 = scmp.eq.s32.totalorder %s77, 0
      %p271 = por %p269, %p270
      %p272 = scmp.ne.s32.totalorder %s260, %s261
      %p273 = scmp.eq.s32.totalorder %s78, 1
      %p274 = por %p272, %p273
      %p276 = scmp.ne.s32.totalorder %s261, %s275
      %p277 = scmp.eq.s32.totalorder %s78, 0
      %p278 = por %p276, %p277
      %s280 = sadd.s32 %s279, 1
      %p283 = scmp.eq.s32.totalorder %s72, 1
      %p284 = scmp.ne.s32.totalorder %s279, %s281
      %p285 = scmp.eq.s32.totalorder %s72, 0
      %p286 = por %p284, %p285
      %p287 = scmp.ne.s32.totalorder %s279, %s281
      %p288 = scmp.eq.s32.totalorder %s77, 1
      %p289 = por %p287, %p288
      %p290 = scmp.ne.s32.totalorder %s281, %s282
      %p291 = scmp.eq.s32.totalorder %s77, 0
      %p292 = por %p290, %p291
      %p293 = scmp.ne.s32.totalorder %s281, %s282
      %p294 = scmp.eq.s32.totalorder %s78, 1
      %p295 = por %p293, %p294
      %p297 = scmp.ne.s32.totalorder %s282, %s296
      %p298 = scmp.eq.s32.totalorder %s78, 0
      %p299 = por %p297, %p298
      %s301 = sadd.s32 %s300, 1
      %p304 = scmp.eq.s32.totalorder %s72, 1
      %p305 = scmp.ne.s32.totalorder %s300, %s302
      %p306 = scmp.eq.s32.totalorder %s72, 0
      %p307 = por %p305, %p306
      %p308 = scmp.ne.s32.totalorder %s300, %s302
      %p309 = scmp.eq.s32.totalorder %s77, 1
      %p310 = por %p308, %p309
      %p311 = scmp.ne.s32.totalorder %s302, %s303
      %p312 = scmp.eq.s32.totalorder %s77, 0
      %p313 = por %p311, %p312
      %p314 = scmp.ne.s32.totalorder %s302, %s303
      %p315 = scmp.eq.s32.totalorder %s78, 1
      %p316 = por %p314, %p315
      %p318 = scmp.ne.s32.totalorder %s303, %s317
      %p319 = scmp.eq.s32.totalorder %s78, 0
      %p320 = por %p318, %p319
      %s322 = sadd.s32 %s321, 1
      %p325 = scmp.eq.s32.totalorder %s72, 1
      %p326 = scmp.ne.s32.totalorder %s321, %s323
      %p327 = scmp.eq.s32.totalorder %s72, 0
      %p328 = por %p326, %p327
      %p329 = scmp.ne.s32.totalorder %s321, %s323
      %p330 = scmp.eq.s32.totalorder %s77, 1
      %p331 = por %p329, %p330
      %p332 = scmp.ne.s32.totalorder %s323, %s324
      %p333 = scmp.eq.s32.totalorder %s77, 0
      %p334 = por %p332, %p333
      %p335 = scmp.ne.s32.totalorder %s323, %s324
      %p336 = scmp.eq.s32.totalorder %s78, 1
      %p337 = por %p335, %p336
      %p339 = scmp.ne.s32.totalorder %s324, %s338
      %p340 = scmp.eq.s32.totalorder %s78, 0
      %p341 = por %p339, %p340
      %s343 = sadd.s32 %s342, 1
      %p346 = scmp.eq.s32.totalorder %s72, 1
      %p347 = scmp.ne.s32.totalorder %s342, %s344
      %p348 = scmp.eq.s32.totalorder %s72, 0
      %p349 = por %p347, %p348
      %p350 = scmp.ne.s32.totalorder %s342, %s344
      %p351 = scmp.eq.s32.totalorder %s77, 1
      %p352 = por %p350, %p351
      %p353 = scmp.ne.s32.totalorder %s344, %s345
      %p354 = scmp.eq.s32.totalorder %s77, 0
      %p355 = por %p353, %p354
      %p356 = scmp.ne.s32.totalorder %s344, %s345
      %p357 = scmp.eq.s32.totalorder %s78, 1
      %p358 = por %p356, %p357
      %p360 = scmp.ne.s32.totalorder %s345, %s359
      %p361 = scmp.eq.s32.totalorder %s78, 0
      %p362 = por %p360, %p361
      %s364 = sadd.s32 %s363, 1
      %p367 = scmp.eq.s32.totalorder %s72, 1
      %p368 = scmp.ne.s32.totalorder %s363, %s365
      %p369 = scmp.eq.s32.totalorder %s72, 0
      %p370 = por %p368, %p369
      %p371 = scmp.ne.s32.totalorder %s363, %s365
      %p372 = scmp.eq.s32.totalorder %s77, 1
      %p373 = por %p371, %p372
      %p374 = scmp.ne.s32.totalorder %s365, %s366
      %p375 = scmp.eq.s32.totalorder %s77, 0
      %p376 = por %p374, %p375
      %p377 = scmp.ne.s32.totalorder %s365, %s366
      %p378 = scmp.eq.s32.totalorder %s78, 1
      %p379 = por %p377, %p378
      %p381 = scmp.ne.s32.totalorder %s366, %s380
      %p382 = scmp.eq.s32.totalorder %s78, 0
      %p383 = por %p381, %p382
      %s385 = sadd.s32 %s384, 1
      %p388 = scmp.eq.s32.totalorder %s72, 1
      %p389 = scmp.ne.s32.totalorder %s384, %s386
      %p390 = scmp.eq.s32.totalorder %s72, 0
      %p391 = por %p389, %p390
      %p392 = scmp.ne.s32.totalorder %s384, %s386
      %p393 = scmp.eq.s32.totalorder %s77, 1
      %p394 = por %p392, %p393
      %p395 = scmp.ne.s32.totalorder %s386, %s387
      %p396 = scmp.eq.s32.totalorder %s77, 0
      %p397 = por %p395, %p396
      %p398 = scmp.ne.s32.totalorder %s386, %s387
      %p399 = scmp.eq.s32.totalorder %s78, 1
      %p400 = por %p398, %p399
      %p402 = scmp.ne.s32.totalorder %s387, %s401
      %p403 = scmp.eq.s32.totalorder %s78, 0
      %p404 = por %p402, %p403
      %s406 = sadd.s32 %s405, 1
      %p409 = scmp.eq.s32.totalorder %s72, 1
      %p410 = scmp.ne.s32.totalorder %s405, %s407
      %p411 = scmp.eq.s32.totalorder %s72, 0
      %p412 = por %p410, %p411
      %p413 = scmp.ne.s32.totalorder %s405, %s407
      %p414 = scmp.eq.s32.totalorder %s77, 1
      %p415 = por %p413, %p414
      %p416 = scmp.ne.s32.totalorder %s407, %s408
      %p417 = scmp.eq.s32.totalorder %s77, 0
      %p418 = por %p416, %p417
      %p419 = scmp.ne.s32.totalorder %s407, %s408
      %p420 = scmp.eq.s32.totalorder %s78, 1
      %p421 = por %p419, %p420
      %p423 = scmp.ne.s32.totalorder %s408, %s422
      %p424 = scmp.eq.s32.totalorder %s78, 0
      %p425 = por %p423, %p424
      %s427 = sadd.s32 %s426, 1
      %p430 = scmp.eq.s32.totalorder %s72, 1
      %p431 = scmp.ne.s32.totalorder %s426, %s428
      %p432 = scmp.eq.s32.totalorder %s72, 0
      %p433 = por %p431, %p432
      %p434 = scmp.ne.s32.totalorder %s426, %s428
      %p435 = scmp.eq.s32.totalorder %s77, 1
      %p436 = por %p434, %p435
      %p437 = scmp.ne.s32.totalorder %s428, %s429
      %p438 = scmp.eq.s32.totalorder %s77, 0
      %p439 = por %p437, %p438
      %p440 = scmp.ne.s32.totalorder %s428, %s429
      %p441 = scmp.eq.s32.totalorder %s78, 1
      %p442 = por %p440, %p441
      %p444 = scmp.ne.s32.totalorder %s429, %s443
      %p445 = scmp.eq.s32.totalorder %s78, 0
      %p446 = por %p444, %p445
      %s448 = sadd.s32 %s447, 1
      %p451 = scmp.eq.s32.totalorder %s72, 1
      %p452 = scmp.ne.s32.totalorder %s447, %s449
      %p453 = scmp.eq.s32.totalorder %s72, 0
      %p454 = por %p452, %p453
      %p455 = scmp.ne.s32.totalorder %s447, %s449
      %p456 = scmp.eq.s32.totalorder %s77, 1
      %p457 = por %p455, %p456
      %p458 = scmp.ne.s32.totalorder %s449, %s450
      %p459 = scmp.eq.s32.totalorder %s77, 0
      %p460 = por %p458, %p459
      %p461 = scmp.ne.s32.totalorder %s449, %s450
      %p462 = scmp.eq.s32.totalorder %s78, 1
      %p463 = por %p461, %p462
      %p465 = scmp.ne.s32.totalorder %s450, %s464
      %p466 = scmp.eq.s32.totalorder %s78, 0
      %p467 = por %p465, %p466
      %s469 = sadd.s32 %s468, 1
      %p472 = scmp.eq.s32.totalorder %s72, 1
      %p473 = scmp.ne.s32.totalorder %s468, %s470
      %p474 = scmp.eq.s32.totalorder %s72, 0
      %p475 = por %p473, %p474
      %p476 = scmp.ne.s32.totalorder %s468, %s470
      %p477 = scmp.eq.s32.totalorder %s77, 1
      %p478 = por %p476, %p477
      %p479 = scmp.ne.s32.totalorder %s470, %s471
      %p480 = scmp.eq.s32.totalorder %s77, 0
      %p481 = por %p479, %p480
      %p482 = scmp.ne.s32.totalorder %s470, %s471
      %p483 = scmp.eq.s32.totalorder %s78, 1
      %p484 = por %p482, %p483
      %p486 = scmp.ne.s32.totalorder %s471, %s485
      %p487 = scmp.eq.s32.totalorder %s78, 0
      %p488 = por %p486, %p487
      %s490 = sadd.s32 %s489, 1
      %p493 = scmp.eq.s32.totalorder %s72, 1
      %p494 = scmp.ne.s32.totalorder %s489, %s491
      %p495 = scmp.eq.s32.totalorder %s72, 0
      %p496 = por %p494, %p495
      %p497 = scmp.ne.s32.totalorder %s489, %s491
      %p498 = scmp.eq.s32.totalorder %s77, 1
      %p499 = por %p497, %p498
      %p500 = scmp.ne.s32.totalorder %s491, %s492
      %p501 = scmp.eq.s32.totalorder %s77, 0
      %p502 = por %p500, %p501
      %p503 = scmp.ne.s32.totalorder %s491, %s492
      %p504 = scmp.eq.s32.totalorder %s78, 1
      %p505 = por %p503, %p504
      %p507 = scmp.ne.s32.totalorder %s492, %s506
      %p508 = scmp.eq.s32.totalorder %s78, 0
      %p509 = por %p507, %p508
      %s511 = sadd.s32 %s510, 1
      %p514 = scmp.eq.s32.totalorder %s72, 1
      %p515 = scmp.ne.s32.totalorder %s510, %s512
      %p516 = scmp.eq.s32.totalorder %s72, 0
      %p517 = por %p515, %p516
      %p518 = scmp.ne.s32.totalorder %s510, %s512
      %p519 = scmp.eq.s32.totalorder %s77, 1
      %p520 = por %p518, %p519
      %p521 = scmp.ne.s32.totalorder %s512, %s513
      %p522 = scmp.eq.s32.totalorder %s77, 0
      %p523 = por %p521, %p522
      %p524 = scmp.ne.s32.totalorder %s512, %s513
      %p525 = scmp.eq.s32.totalorder %s78, 1
      %p526 = por %p524, %p525
      %p528 = scmp.ne.s32.totalorder %s513, %s527
      %p529 = scmp.eq.s32.totalorder %s78, 0
      %p530 = por %p528, %p529
      %s532 = sadd.s32 %s531, 1
      %p535 = scmp.eq.s32.totalorder %s72, 1
      %p536 = scmp.ne.s32.totalorder %s531, %s533
      %p537 = scmp.eq.s32.totalorder %s72, 0
      %p538 = por %p536, %p537
      %p539 = scmp.ne.s32.totalorder %s531, %s533
      %p540 = scmp.eq.s32.totalorder %s77, 1
      %p541 = por %p539, %p540
      %p542 = scmp.ne.s32.totalorder %s533, %s534
      %p543 = scmp.eq.s32.totalorder %s77, 0
      %p544 = por %p542, %p543
      %p545 = scmp.ne.s32.totalorder %s533, %s534
      %p546 = scmp.eq.s32.totalorder %s78, 1
      %p547 = por %p545, %p546
      %p549 = scmp.ne.s32.totalorder %s534, %s548
      %p550 = scmp.eq.s32.totalorder %s78, 0
      %p551 = por %p549, %p550
      %s553 = sadd.s32 %s552, 1
      %p556 = scmp.eq.s32.totalorder %s72, 1
      %p557 = scmp.ne.s32.totalorder %s552, %s554
      %p558 = scmp.eq.s32.totalorder %s72, 0
      %p559 = por %p557, %p558
      %p560 = scmp.ne.s32.totalorder %s552, %s554
      %p561 = scmp.eq.s32.totalorder %s77, 1
      %p562 = por %p560, %p561
      %p563 = scmp.ne.s32.totalorder %s554, %s555
      %p564 = scmp.eq.s32.totalorder %s77, 0
      %p565 = por %p563, %p564
      %p566 = scmp.ne.s32.totalorder %s554, %s555
      %p567 = scmp.eq.s32.totalorder %s78, 1
      %p568 = por %p566, %p567
      %p570 = scmp.ne.s32.totalorder %s555, %s569
      %p571 = scmp.eq.s32.totalorder %s78, 0
      %p572 = por %p570, %p571
      %s574 = sadd.s32 %s573, 1
      %p577 = scmp.eq.s32.totalorder %s72, 1
      %p578 = scmp.ne.s32.totalorder %s573, %s575
      %p579 = scmp.eq.s32.totalorder %s72, 0
      %p580 = por %p578, %p579
      %p581 = scmp.ne.s32.totalorder %s573, %s575
      %p582 = scmp.eq.s32.totalorder %s77, 1
      %p583 = por %p581, %p582
      %p584 = scmp.ne.s32.totalorder %s575, %s576
      %p585 = scmp.eq.s32.totalorder %s77, 0
      %p586 = por %p584, %p585
      %p587 = scmp.ne.s32.totalorder %s575, %s576
      %p588 = scmp.eq.s32.totalorder %s78, 1
      %p589 = por %p587, %p588
      %p591 = scmp.ne.s32.totalorder %s576, %s590
      %p592 = scmp.eq.s32.totalorder %s78, 0
      %p593 = por %p591, %p592
      %s595 = sadd.s32 %s594, 1
      %p598 = scmp.eq.s32.totalorder %s72, 1
      %p599 = scmp.ne.s32.totalorder %s594, %s596
      %p600 = scmp.eq.s32.totalorder %s72, 0
      %p601 = por %p599, %p600
      %p602 = scmp.ne.s32.totalorder %s594, %s596
      %p603 = scmp.eq.s32.totalorder %s77, 1
      %p604 = por %p602, %p603
      %p605 = scmp.ne.s32.totalorder %s596, %s597
      %p606 = scmp.eq.s32.totalorder %s77, 0
      %p607 = por %p605, %p606
      %p608 = scmp.ne.s32.totalorder %s596, %s597
      %p609 = scmp.eq.s32.totalorder %s78, 1
      %p610 = por %p608, %p609
      %p612 = scmp.ne.s32.totalorder %s597, %s611
      %p613 = scmp.eq.s32.totalorder %s78, 0
      %p614 = por %p612, %p613
      %s616 = sadd.s32 %s615, 1
      %p619 = scmp.eq.s32.totalorder %s72, 1
      %p620 = scmp.ne.s32.totalorder %s615, %s617
      %p621 = scmp.eq.s32.totalorder %s72, 0
      %p622 = por %p620, %p621
      %p623 = scmp.ne.s32.totalorder %s615, %s617
      %p624 = scmp.eq.s32.totalorder %s77, 1
      %p625 = por %p623, %p624
      %p626 = scmp.ne.s32.totalorder %s617, %s618
      %p627 = scmp.eq.s32.totalorder %s77, 0
      %p628 = por %p626, %p627
      %p629 = scmp.ne.s32.totalorder %s617, %s618
      %p630 = scmp.eq.s32.totalorder %s78, 1
      %p631 = por %p629, %p630
      %p633 = scmp.ne.s32.totalorder %s618, %s632
      %p634 = scmp.eq.s32.totalorder %s78, 0
      %p635 = por %p633, %p634
      %s637 = sadd.s32 %s636, 1
      %p640 = scmp.eq.s32.totalorder %s72, 1
      %p641 = scmp.ne.s32.totalorder %s636, %s638
      %p642 = scmp.eq.s32.totalorder %s72, 0
      %p643 = por %p641, %p642
      %p644 = scmp.ne.s32.totalorder %s636, %s638
      %p645 = scmp.eq.s32.totalorder %s77, 1
      %p646 = por %p644, %p645
      %p647 = scmp.ne.s32.totalorder %s638, %s639
      %p648 = scmp.eq.s32.totalorder %s77, 0
      %p649 = por %p647, %p648
      %p650 = scmp.ne.s32.totalorder %s638, %s639
      %p651 = scmp.eq.s32.totalorder %s78, 1
      %p652 = por %p650, %p651
      %p654 = scmp.ne.s32.totalorder %s639, %s653
      %p655 = scmp.eq.s32.totalorder %s78, 0
      %p656 = por %p654, %p655
      %s658 = sadd.s32 %s657, 1
      %p661 = scmp.eq.s32.totalorder %s72, 1
      %p662 = scmp.ne.s32.totalorder %s657, %s659
      %p663 = scmp.eq.s32.totalorder %s72, 0
      %p664 = por %p662, %p663
      %p665 = scmp.ne.s32.totalorder %s657, %s659
      %p666 = scmp.eq.s32.totalorder %s77, 1
      %p667 = por %p665, %p666
      %p668 = scmp.ne.s32.totalorder %s659, %s660
      %p669 = scmp.eq.s32.totalorder %s77, 0
      %p670 = por %p668, %p669
      %p671 = scmp.ne.s32.totalorder %s659, %s660
      %p672 = scmp.eq.s32.totalorder %s78, 1
      %p673 = por %p671, %p672
      %p675 = scmp.ne.s32.totalorder %s660, %s674
      %p676 = scmp.eq.s32.totalorder %s78, 0
      %p677 = por %p675, %p676
      %s679 = sadd.s32 %s678, 1
      %p682 = scmp.eq.s32.totalorder %s72, 1
      %p683 = scmp.ne.s32.totalorder %s678, %s680
      %p684 = scmp.eq.s32.totalorder %s72, 0
      %p685 = por %p683, %p684
      %p686 = scmp.ne.s32.totalorder %s678, %s680
      %p687 = scmp.eq.s32.totalorder %s77, 1
      %p688 = por %p686, %p687
      %p689 = scmp.ne.s32.totalorder %s680, %s681
      %p690 = scmp.eq.s32.totalorder %s77, 0
      %p691 = por %p689, %p690
      %p692 = scmp.ne.s32.totalorder %s680, %s681
      %p693 = scmp.eq.s32.totalorder %s78, 1
      %p694 = por %p692, %p693
      %p696 = scmp.ne.s32.totalorder %s681, %s695
      %p697 = scmp.eq.s32.totalorder %s78, 0
      %p698 = por %p696, %p697
      %s699 = ssub.s32 %s72, %s79
      %p700 = scmp.eq.s32.totalorder %s699, 0
      %s702 = sadd.s32 %s701, 1
      %s703 = scalar_select %p700, %s701, %s702
      %p706 = pneg %p700
      %p707 = scmp.eq.s32.totalorder %s72, 1
      %p708 = por %p706, %p707
      %p709 = scmp.ne.s32.totalorder %s701, %s704
      %p710 = scmp.eq.s32.totalorder %s72, 0
      %p711 = por %p709, %p710
      %p712 = scmp.ne.s32.totalorder %s701, %s704
      %p713 = scmp.eq.s32.totalorder %s77, 1
      %p714 = por %p712, %p713
      %p715 = scmp.ne.s32.totalorder %s704, %s705
      %p716 = scmp.eq.s32.totalorder %s77, 0
      %p717 = por %p715, %p716
      %p718 = scmp.ne.s32.totalorder %s704, %s705
      %p719 = scmp.eq.s32.totalorder %s78, 1
      %p720 = por %p718, %p719
      %p722 = scmp.ne.s32.totalorder %s705, %s721
      %p723 = scmp.eq.s32.totalorder %s78, 0
      %p724 = por %p722, %p723
      %s725 = ssub.s32 %s72, %s79
      %p726 = scmp.eq.s32.totalorder %s725, 0
      %s728 = sadd.s32 %s727, 1
      %s729 = scalar_select %p726, %s727, %s728
      %p732 = pneg %p726
      %p733 = scmp.eq.s32.totalorder %s72, 1
      %p734 = por %p732, %p733
      %p735 = scmp.ne.s32.totalorder %s727, %s730
      %p736 = scmp.eq.s32.totalorder %s72, 0
      %p737 = por %p735, %p736
      %p738 = scmp.ne.s32.totalorder %s727, %s730
      %p739 = scmp.eq.s32.totalorder %s77, 1
      %p740 = por %p738, %p739
      %p741 = scmp.ne.s32.totalorder %s730, %s731
      %p742 = scmp.eq.s32.totalorder %s77, 0
      %p743 = por %p741, %p742
      %p744 = scmp.ne.s32.totalorder %s730, %s731
      %p745 = scmp.eq.s32.totalorder %s78, 1
      %p746 = por %p744, %p745
      %p748 = scmp.ne.s32.totalorder %s731, %s747
      %p749 = scmp.eq.s32.totalorder %s78, 0
      %p750 = por %p748, %p749
      %p751 = scmp.le.s32.totalorder 1, %s72
      %p752 = scmp.lt.s32.totalorder %s72, 3
      %p753 = pnand %p751, %p752
      %p754 = pneg %p753
      // Predicated region
      $region9: #{transnet2_forward.1} parent=5 // pred_check
        _
      $region10: #{transnet2_forward.1} parent=5 // pred_check_branch
        %756 = sbr.rel (%p753) target = $region12
      $region11: #{transnet2_forward.1} parent=5 // pred_region
        %s757 = ssub.s32 %s72, 1
        // Predicated region
        $region13: #{transnet2_forward.1} parent=11 // pred_check
          %p758 = pneg %p145
        $region14: #{transnet2_forward.1} parent=11 // pred_check_branch
          %760 = sbr.rel (%p758) target = $region16
        $region15: #{transnet2_forward.1} parent=11 // pred_region
          _
        $region16: #{transnet2_forward.1} parent=11 // pred_fallthru
          _
        // Predicated region
        $region17: #{transnet2_forward.1} parent=11 // pred_check
          %p761 = pneg %p166
        $region18: #{transnet2_forward.1} parent=11 // pred_check_branch
          %763 = sbr.rel (%p761) target = $region20
        $region19: #{transnet2_forward.1} parent=11 // pred_region
          _
        $region20: #{transnet2_forward.1} parent=11 // pred_fallthru
          _
        // Predicated region
        $region21: #{transnet2_forward.1} parent=11 // pred_check
          %p764 = pneg %p187
        $region22: #{transnet2_forward.1} parent=11 // pred_check_branch
          %766 = sbr.rel (%p764) target = $region24
        $region23: #{transnet2_forward.1} parent=11 // pred_region
          _
        $region24: #{transnet2_forward.1} parent=11 // pred_fallthru
          _
        // Predicated region
        $region25: #{transnet2_forward.1} parent=11 // pred_check
          %p767 = pneg %p208
        $region26: #{transnet2_forward.1} parent=11 // pred_check_branch
          %769 = sbr.rel (%p767) target = $region28
        $region27: #{transnet2_forward.1} parent=11 // pred_region
          _
        $region28: #{transnet2_forward.1} parent=11 // pred_fallthru
          _
        // Predicated region
        $region29: #{transnet2_forward.1} parent=11 // pred_check
          %p770 = pneg %p229
        $region30: #{transnet2_forward.1} parent=11 // pred_check_branch
          %772 = sbr.rel (%p770) target = $region32
        $region31: #{transnet2_forward.1} parent=11 // pred_region
          _
        $region32: #{transnet2_forward.1} parent=11 // pred_fallthru
          _
        // Predicated region
        $region33: #{transnet2_forward.1} parent=11 // pred_check
          %p773 = pneg %p250
        $region34: #{transnet2_forward.1} parent=11 // pred_check_branch
          %775 = sbr.rel (%p773) target = $region36
        $region35: #{transnet2_forward.1} parent=11 // pred_region
          _
        $region36: #{transnet2_forward.1} parent=11 // pred_fallthru
          _
        // Predicated region
        $region37: #{transnet2_forward.1} parent=11 // pred_check
          %p776 = pneg %p271
        $region38: #{transnet2_forward.1} parent=11 // pred_check_branch
          %778 = sbr.rel (%p776) target = $region40
        $region39: #{transnet2_forward.1} parent=11 // pred_region
          _
        $region40: #{transnet2_forward.1} parent=11 // pred_fallthru
          _
        // Predicated region
        $region41: #{transnet2_forward.1} parent=11 // pred_check
          %p779 = pneg %p292
        $region42: #{transnet2_forward.1} parent=11 // pred_check_branch
          %781 = sbr.rel (%p779) target = $region44
        $region43: #{transnet2_forward.1} parent=11 // pred_region
          _
        $region44: #{transnet2_forward.1} parent=11 // pred_fallthru
          _
        // Predicated region
        $region45: #{transnet2_forward.1} parent=11 // pred_check
          %p782 = pneg %p313
        $region46: #{transnet2_forward.1} parent=11 // pred_check_branch
          %784 = sbr.rel (%p782) target = $region48
        $region47: #{transnet2_forward.1} parent=11 // pred_region
          _
        $region48: #{transnet2_forward.1} parent=11 // pred_fallthru
          _
        // Predicated region
        $region49: #{transnet2_forward.1} parent=11 // pred_check
          %p785 = pneg %p334
        $region50: #{transnet2_forward.1} parent=11 // pred_check_branch
          %787 = sbr.rel (%p785) target = $region52
        $region51: #{transnet2_forward.1} parent=11 // pred_region
          _
        $region52: #{transnet2_forward.1} parent=11 // pred_fallthru
          _
        // Predicated region
        $region53: #{transnet2_forward.1} parent=11 // pred_check
          %p788 = pneg %p355
        $region54: #{transnet2_forward.1} parent=11 // pred_check_branch
          %790 = sbr.rel (%p788) target = $region56
        $region55: #{transnet2_forward.1} parent=11 // pred_region
          _
        $region56: #{transnet2_forward.1} parent=11 // pred_fallthru
          _
        // Predicated region
        $region57: #{transnet2_forward.1} parent=11 // pred_check
          %p791 = pneg %p376
        $region58: #{transnet2_forward.1} parent=11 // pred_check_branch
          %793 = sbr.rel (%p791) target = $region60
        $region59: #{transnet2_forward.1} parent=11 // pred_region
          _
        $region60: #{transnet2_forward.1} parent=11 // pred_fallthru
          _
        // Predicated region
        $region61: #{transnet2_forward.1} parent=11 // pred_check
          %p794 = pneg %p397
        $region62: #{transnet2_forward.1} parent=11 // pred_check_branch
          %796 = sbr.rel (%p794) target = $region64
        $region63: #{transnet2_forward.1} parent=11 // pred_region
          _
        $region64: #{transnet2_forward.1} parent=11 // pred_fallthru
          _
        // Predicated region
        $region65: #{transnet2_forward.1} parent=11 // pred_check
          %p797 = pneg %p418
        $region66: #{transnet2_forward.1} parent=11 // pred_check_branch
          %799 = sbr.rel (%p797) target = $region68
        $region67: #{transnet2_forward.1} parent=11 // pred_region
          _
        $region68: #{transnet2_forward.1} parent=11 // pred_fallthru
          _
        // Predicated region
        $region69: #{transnet2_forward.1} parent=11 // pred_check
          %p800 = pneg %p439
        $region70: #{transnet2_forward.1} parent=11 // pred_check_branch
          %802 = sbr.rel (%p800) target = $region72
        $region71: #{transnet2_forward.1} parent=11 // pred_region
          _
        $region72: #{transnet2_forward.1} parent=11 // pred_fallthru
          _
        // Predicated region
        $region73: #{transnet2_forward.1} parent=11 // pred_check
          %p803 = pneg %p460
        $region74: #{transnet2_forward.1} parent=11 // pred_check_branch
          %805 = sbr.rel (%p803) target = $region76
        $region75: #{transnet2_forward.1} parent=11 // pred_region
          _
        $region76: #{transnet2_forward.1} parent=11 // pred_fallthru
          _
        // Predicated region
        $region77: #{transnet2_forward.1} parent=11 // pred_check
          %p806 = pneg %p481
        $region78: #{transnet2_forward.1} parent=11 // pred_check_branch
          %808 = sbr.rel (%p806) target = $region80
        $region79: #{transnet2_forward.1} parent=11 // pred_region
          _
        $region80: #{transnet2_forward.1} parent=11 // pred_fallthru
          _
        // Predicated region
        $region81: #{transnet2_forward.1} parent=11 // pred_check
          %p809 = pneg %p502
        $region82: #{transnet2_forward.1} parent=11 // pred_check_branch
          %811 = sbr.rel (%p809) target = $region84
        $region83: #{transnet2_forward.1} parent=11 // pred_region
          _
        $region84: #{transnet2_forward.1} parent=11 // pred_fallthru
          _
        // Predicated region
        $region85: #{transnet2_forward.1} parent=11 // pred_check
          %p812 = pneg %p523
        $region86: #{transnet2_forward.1} parent=11 // pred_check_branch
          %814 = sbr.rel (%p812) target = $region88
        $region87: #{transnet2_forward.1} parent=11 // pred_region
          _
        $region88: #{transnet2_forward.1} parent=11 // pred_fallthru
          _
        // Predicated region
        $region89: #{transnet2_forward.1} parent=11 // pred_check
          %p815 = pneg %p544
        $region90: #{transnet2_forward.1} parent=11 // pred_check_branch
          %817 = sbr.rel (%p815) target = $region92
        $region91: #{transnet2_forward.1} parent=11 // pred_region
          _
        $region92: #{transnet2_forward.1} parent=11 // pred_fallthru
          _
        // Predicated region
        $region93: #{transnet2_forward.1} parent=11 // pred_check
          %p818 = pneg %p565
        $region94: #{transnet2_forward.1} parent=11 // pred_check_branch
          %820 = sbr.rel (%p818) target = $region96
        $region95: #{transnet2_forward.1} parent=11 // pred_region
          _
        $region96: #{transnet2_forward.1} parent=11 // pred_fallthru
          _
        // Predicated region
        $region97: #{transnet2_forward.1} parent=11 // pred_check
          %p821 = pneg %p586
        $region98: #{transnet2_forward.1} parent=11 // pred_check_branch
          %823 = sbr.rel (%p821) target = $region100
        $region99: #{transnet2_forward.1} parent=11 // pred_region
          _
        $region100: #{transnet2_forward.1} parent=11 // pred_fallthru
          _
        // Predicated region
        $region101: #{transnet2_forward.1} parent=11 // pred_check
          %p824 = pneg %p607
        $region102: #{transnet2_forward.1} parent=11 // pred_check_branch
          %826 = sbr.rel (%p824) target = $region104
        $region103: #{transnet2_forward.1} parent=11 // pred_region
          _
        $region104: #{transnet2_forward.1} parent=11 // pred_fallthru
          _
        // Predicated region
        $region105: #{transnet2_forward.1} parent=11 // pred_check
          %p827 = pneg %p628
        $region106: #{transnet2_forward.1} parent=11 // pred_check_branch
          %829 = sbr.rel (%p827) target = $region108
        $region107: #{transnet2_forward.1} parent=11 // pred_region
          _
        $region108: #{transnet2_forward.1} parent=11 // pred_fallthru
          _
        // Predicated region
        $region109: #{transnet2_forward.1} parent=11 // pred_check
          %p830 = pneg %p649
        $region110: #{transnet2_forward.1} parent=11 // pred_check_branch
          %832 = sbr.rel (%p830) target = $region112
        $region111: #{transnet2_forward.1} parent=11 // pred_region
          _
        $region112: #{transnet2_forward.1} parent=11 // pred_fallthru
          _
        // Predicated region
        $region113: #{transnet2_forward.1} parent=11 // pred_check
          %p833 = pneg %p670
        $region114: #{transnet2_forward.1} parent=11 // pred_check_branch
          %835 = sbr.rel (%p833) target = $region116
        $region115: #{transnet2_forward.1} parent=11 // pred_region
          %s837 = ssub.s32 1024, 1024
          %838 = vsyncadd [#allocation3], %s837
          %s839 = sshll.u32 [#allocation2], 4
          %s840 = int_to_ptr.vmem [resolvable:$true] %s839
          %845 = dma.hbm_to_vmem [thread:$0]  %s55, 1024, %s840, [#allocation3], 128, 128, 8
        $region116: #{transnet2_forward.1} parent=11 // pred_fallthru
          _
        // Predicated region
        $region117: #{transnet2_forward.1} parent=11 // pred_check
          %p846 = pneg %p691
        $region118: #{transnet2_forward.1} parent=11 // pred_check_branch
          %848 = sbr.rel (%p846) target = $region120
        $region119: #{transnet2_forward.1} parent=11 // pred_region
          _
        $region120: #{transnet2_forward.1} parent=11 // pred_fallthru
          _
      $region12: #{transnet2_forward.1} parent=5 // pred_fallthru
        _
      %p849 = scmp.lt.s32.totalorder %s72, 2
      // Predicated region
      $region121: #{transnet2_forward.1} parent=5 // pred_check
        %p850 = pneg %p849
      $region122: #{transnet2_forward.1} parent=5 // pred_check_branch
        %852 = sbr.rel (%p850) target = $region124
      $region123: #{transnet2_forward.1} parent=5 // pred_region
        // Predicated region
        $region125: #{transnet2_forward.1} parent=123 // pred_check
          %p853 = pneg %p92
        $region126: #{transnet2_forward.1} parent=123 // pred_check_branch
          %855 = sbr.rel (%p853) target = $region128
        $region127: #{transnet2_forward.1} parent=123 // pred_region
          %p856 = scmp.lt.s32.totalorder %s72, 1
          %s857 = scalar_select %p856, %s72, 1
          %s858 = smul.addr %s857, 8
          %s859 = scalar_lea.vmem %s1, %s858
        $region128: #{transnet2_forward.1} parent=123 // pred_fallthru
          _
        // Predicated region
        $region129: #{transnet2_forward.1} parent=123 // pred_check
          %p860 = pneg %p118
        $region130: #{transnet2_forward.1} parent=123 // pred_check_branch
          %862 = sbr.rel (%p860) target = $region132
        $region131: #{transnet2_forward.1} parent=123 // pred_region
          %p863 = scmp.lt.s32.totalorder %s72, 1
          %s864 = scalar_select %p863, %s72, 1
          %s865 = smul.addr %s864, 8
          %s866 = scalar_lea.vmem %s3, %s865
        $region132: #{transnet2_forward.1} parent=123 // pred_fallthru
          _
      $region124: #{transnet2_forward.1} parent=5 // pred_fallthru
        _
      %p867 = scmp.le.s32.totalorder 1, %s72
      %p868 = scmp.lt.s32.totalorder %s72, 3
      %p869 = pnand %p867, %p868
      %p870 = pneg %p869
      // Predicated region
      $region133: #{transnet2_forward.1} parent=5 // pred_check
        _
      $region134: #{transnet2_forward.1} parent=5 // pred_check_branch
        %872 = sbr.rel (%p869) target = $region136
      $region135: #{transnet2_forward.1} parent=5 // pred_region
        %s873 = ssub.s32 %s72, 1
        // Predicated region
        $region137: #{transnet2_forward.1} parent=135 // pred_check
          %p874 = pneg %p670
        $region138: #{transnet2_forward.1} parent=135 // pred_check_branch
          %876 = sbr.rel (%p874) target = $region140
        $region139: #{transnet2_forward.1} parent=135 // pred_region
          %877 = dma.done [#allocation3], 1024
        $region140: #{transnet2_forward.1} parent=135 // pred_fallthru
          _
        %p878 = scmp.lt.s32.totalorder %s77, 1
        %s879 = scalar_select %p878, %s77, 1
        %s880 = smul.addr %s879, 8
        %s881 = scalar_lea.vmem %s1, %s880
        %p882 = pneg %p98
        %p883 = pneg %p95
        %p884 = scmp.lt.s32.totalorder %s77, 1
        %s885 = scalar_select %p884, %s77, 1
        %s886 = smul.addr %s885, 8
        %s887 = scalar_lea.vmem %s3, %s886
        %p888 = pneg %p124
        %p889 = pneg %p121
        %p890 = pneg %p145
        %p891 = pneg %p142
        %p892 = pneg %p166
        %p893 = pneg %p163
        %p894 = pneg %p187
        %p895 = pneg %p184
        %p896 = pneg %p208
        %p897 = pneg %p205
        %p898 = pneg %p229
        %p899 = pneg %p226
        %p900 = pneg %p250
        %p901 = pneg %p247
        %p902 = pneg %p271
        %p903 = pneg %p268
        %p904 = pneg %p292
        %p905 = pneg %p289
        %p906 = pneg %p313
        %p907 = pneg %p310
        %p908 = pneg %p334
        %p909 = pneg %p331
        %p910 = pneg %p355
        %p911 = pneg %p352
        %p912 = pneg %p376
        %p913 = pneg %p373
        %p914 = pneg %p397
        %p915 = pneg %p394
        %p916 = pneg %p418
        %p917 = pneg %p415
        %p918 = pneg %p439
        %p919 = pneg %p436
        %p920 = pneg %p460
        %p921 = pneg %p457
        %p922 = pneg %p481
        %p923 = pneg %p478
        %p924 = pneg %p502
        %p925 = pneg %p499
        %p926 = pneg %p523
        %p927 = pneg %p520
        %p928 = pneg %p544
        %p929 = pneg %p541
        %p930 = pneg %p565
        %p931 = pneg %p562
        %p932 = pneg %p586
        %p933 = pneg %p583
        %p934 = pneg %p607
        %p935 = pneg %p604
        %p936 = pneg %p628
        %p937 = pneg %p625
        %p938 = pneg %p649
        %p939 = pneg %p646
        %p940 = pneg %p670
        %p941 = pneg %p667
        %p942 = pneg %p691
        %p943 = pneg %p688
        %p944 = pneg %p717
        %p945 = pneg %p714
        %s946 = sand.u32 %s704, 1
        %s947 = scalar_lea.sflag [#allocation4], %s946
        %s948 = sand.u32 %s704, 1
        %s949 = scalar_lea.vmem [#allocation5], %s948
        %p950 = pneg %p743
        %p951 = pneg %p740
        %p952 = scmp.lt.s32.totalorder %s77, 1
        %s953 = scalar_select %p952, %s77, 1
        %s954 = scalar_lea.vmem %s61, %s953
        %p955 = scmp.lt.s32.totalorder %s77, 1
        %s956 = scalar_select %p955, %s77, 1
        %s957 = smul.addr %s956, 8
        %s958 = scalar_lea.vmem %s1, %s957
        %p959 = scmp.lt.s32.totalorder %s77, 1
        %s960 = scalar_select %p959, %s77, 1
        %s961 = smul.addr %s960, 8
        %s962 = scalar_lea.vmem %s3, %s961
        %p963 = scmp.lt.s32.totalorder %s77, 1
        %s964 = scalar_select %p963, %s77, 1
        %s965 = scalar_lea.vmem %s61, %s964
        %v966 = vld [vmem:[%s958] sm:$0xff]
        %v967 = vrcp.pop 3.8
        %v968 = vmul.f32 %v966, %v967
        %v969 = vmul.f32 %v968, %v968
        %v970 = vmul.f32 %v969, %v968
        %v971 = vadd.f32 %v968, 0.33333334
        %v972 = vrcp.pop %v971
        %v973 = vmul.f32 1.3333334, %v972
        %v974 = vadd.f32 %v969, 0.33333334
        %v975 = vrcp.pop %v974
        %v976 = vmul.f32 1.3333334, %v975
        %v977 = vadd.f32 %v970, 0.33333334
        %v978 = vrcp.pop %v977
        %v979 = vmul.f32 1.3333334, %v978
        %981 = vrot.lane.b32.xlu0 %v969, 8
        %v982 = vpop.permute.xlu0 %981
        %985 = vrot.lane.b32.xlu0 %v970, 16
        %v986 = vpop.permute.xlu0 %985
        %989 = vrot.lane.b32.xlu0 %v973, 24
        %v990 = vpop.permute.xlu0 %989
        %993 = vrot.lane.b32.xlu0 %v976, 32
        %v994 = vpop.permute.xlu0 %993
        %997 = vrot.lane.b32.xlu0 %v979, 40
        %v998 = vpop.permute.xlu0 %997
        %vm1000 = vcmask 64512
        %v1001 = vsel %vm1000, %v968, %v982
        %vm1002 = vcmask 130048
        %v1003 = vsel %vm1002, %v1001, %v986
        %vm1004 = vcmask 195584
        %v1005 = vsel %vm1004, %v1003, %v990
        %vm1006 = vcmask 261120
        %v1007 = vsel %vm1006, %v1005, %v994
        %vm1008 = vcmask 326656
        %v1009 = vsel %vm1008, %v1007, %v998
        %v1010 = vld [vmem:[%s7] sm:$0xff]
        %v1011 = vld [vmem:[%s7 + $0x8] sm:$0xff]
        %v1012 = vld [vmem:[%s7 + $0x10] sm:$0xff]
        %v1013 = vld [vmem:[%s7 + $0x18] sm:$0xff]
        %v1014 = vld [vmem:[%s7 + $0x20] sm:$0xff]
        %v1015 = vld [vmem:[%s7 + $0x28] sm:$0xff]
        %v1016 = vld [vmem:[%s7 + $0x30] sm:$0xff]
        %v1017 = vld [vmem:[%s7 + $0x38] sm:$0xff]
        %v1018 = vld [vmem:[%s7 + $0x40] sm:$0xff]
        %v1019 = vld [vmem:[%s7 + $0x48] sm:$0xff]
        %v1020 = vld [vmem:[%s7 + $0x50] sm:$0xff]
        %v1021 = vld [vmem:[%s7 + $0x58] sm:$0xff]
        %v1022 = vld [vmem:[%s9] sm:$0x3]
        %v1024 = vlaneseq
        %v1025 = vshrl.u32 %v1024, 7
        %v1026 = vsub.s32 0, %v1025
        %v1027 = vrot.slane %v1022, %v1026
        %v1028 = vlaneseq
        %v1029 = vshrl.u32 %v1028, 7
        %v1030 = vsub.s32 1, %v1029
        %v1031 = vrot.slane %v1022, %v1030
        %vm1034 = vcmask 392192
        %v1036 = vsel %vm1034, %v1009, 0
        %1038 = vmatprep.subr.mxu0 0.0
        %1039 = vmatpush1.msra.mxu0 0.0
        %1040 = vmatprep.subr.mxu0 0.0
        %1041 = vmatpush1.msra.mxu0 0.0
        %1042 = vmatprep.subr.mxu0 0.0
        %1043 = vmatpush1.msra.mxu0 0.0
        %1044 = vmatprep.subr.mxu0 0.0
        %1045 = vmatpush1.msra.mxu0 0.0
        %1046 = vmatprep.subr.mxu0 0.0
        %1047 = vmatpush1.msra.mxu0 0.0
        %1048 = vmatprep.subr.mxu0 0.0
        %1049 = vmatpush1.msra.mxu0 0.0
        %1050 = vmatprep.subr.mxu0 0.0
        %1051 = vmatpush1.msra.mxu0 0.0
        %1052 = vmatprep.subr.mxu0 0.0
        %1053 = vmatpush1.msra.mxu0 0.0
        %1054 = vmatprep.subr.mxu0 0.0
        %1055 = vmatpush1.msra.mxu0 0.0
        %1056 = vmatprep.subr.mxu0 0.0
        %1057 = vmatpush1.msra.mxu0 0.0
        %1058 = vmatprep.subr.mxu0 %v1021
        %1059 = vmatpush1.msra.mxu0 %v1020
        %1060 = vmatprep.subr.mxu0 %v1019
        %1061 = vmatpush1.msra.mxu0 %v1018
        %1062 = vmatprep.subr.mxu0 %v1017
        %1063 = vmatpush1.msra.mxu0 %v1016
        %1064 = vmatprep.subr.mxu0 %v1015
        %1065 = vmatpush1.msra.mxu0 %v1014
        %1066 = vmatprep.subr.mxu0 %v1013
        %1067 = vmatpush1.msra.mxu0 %v1012
        %1068 = vmatprep.subr.mxu0 %v1011
        %1069 = vmatpush1.msra.mxu0 %v1010
        %1070 = vmatprep.subr.mxu0 0.0
        %1071 = vmatpush2.msra.mxu0 0.0
        %1072 = vmatprep.subr.mxu0 0.0
        %1073 = vmatpush2.msra.mxu0 0.0
        %1074 = vmatprep.subr.mxu0 0.0
        %1075 = vmatpush2.msra.mxu0 0.0
        %1076 = vmatprep.subr.mxu0 0.0
        %1077 = vmatpush2.msra.mxu0 0.0
        %1078 = vmatprep.subr.mxu0 0.0
        %1079 = vmatpush2.msra.mxu0 0.0
        %1080 = vmatprep.subr.mxu0 0.0
        %1081 = vmatpush2.msra.mxu0 0.0
        %1082 = vmatprep.subr.mxu0 0.0
        %1083 = vmatpush2.msra.mxu0 0.0
        %1084 = vmatprep.subr.mxu0 0.0
        %1085 = vmatpush2.msra.mxu0 0.0
        %1086 = vmatprep.subr.mxu0 0.0
        %1087 = vmatpush2.msra.mxu0 0.0
        %1088 = vmatprep.subr.mxu0 0.0
        %1089 = vmatpush2.msra.mxu0 0.0
        %1090 = vmatprep.subr.mxu0 0.0
        %1091 = vmatpush2.msra.mxu0 0.0
        %1092 = vmatprep.subr.mxu0 0.0
        %1093 = vmatpush2.msra.mxu0 0.0
        %1094 = vmatprep.subr.mxu0 0.0
        %1095 = vmatpush2.msra.mxu0 0.0
        %1096 = vmatprep.subr.mxu0 0.0
        %1097 = vmatpush2.msra.mxu0 0.0
        %1098 = vmatprep.subr.mxu0 0.0
        %1099 = vmatpush2.msra.mxu0 0.0
        %1100 = vmatprep.subr.mxu0 0.0
        %1101 = vmatpush2.msra.mxu0 0.0
        %1102 = vmatprep.mubr.f32.mxu0 0.0
        %1103 = vmatmul.mubr.f32.gmra.mxu0 %v1036
        %v1104 = vpop.f32.mrf.mxu0
        %v1105 = vadd.f32 %v1027, %v1104
        %v1106 = vpop.f32.mrf.mxu0
        %v1107 = vadd.f32 %v1031, %v1106
        %1108 = vdwg.mxu0
        %v1109 = vld [vmem:[%s11] sm:$0x3]
        %v1110 = vld [vmem:[%s13] sm:$0x3]
        %v1111 = vadd.f32 %v1105, %v1107
        %1112 = vadd.xlane.f32.xlu0 %v1111
        %v1113 = vpop.xlane.xlu0 %1112
        %v1114 = vrcp.pop 256.0
        %v1115 = vmul.f32 %v1113, %v1114
        %v1116 = vsub.f32 %v1105, %v1115
        %v1117 = vsub.f32 %v1107, %v1115
        %v1118 = vmul.f32 %v1116, %v1116
        %v1119 = vmul.f32 %v1117, %v1117
        %v1120 = vadd.f32 %v1118, %v1119
        %1121 = vadd.xlane.f32.xlu0 %v1120
        %v1122 = vpop.xlane.xlu0 %1121
        %v1123 = vmul.f32 %v1122, %v1114
        %v1124 = vadd.f32 %v1123, 1e-05
        %v1125 = vrsqrt.pop %v1124
        %v1126 = vmul.f32 %v1116, %v1125
        %v1127 = vmul.f32 %v1117, %v1125
        %v1129 = vlaneseq
        %v1130 = vshrl.u32 %v1129, 7
        %v1131 = vsub.s32 0, %v1130
        %v1132 = vrot.slane %v1109, %v1131
        %v1133 = vlaneseq
        %v1134 = vshrl.u32 %v1133, 7
        %v1135 = vsub.s32 1, %v1134
        %v1136 = vrot.slane %v1109, %v1135
        %v1139 = vmul.f32 %v1126, %v1132
        %v1140 = vmul.f32 %v1127, %v1136
        %v1142 = vlaneseq
        %v1143 = vshrl.u32 %v1142, 7
        %v1144 = vsub.s32 0, %v1143
        %v1145 = vrot.slane %v1110, %v1144
        %v1146 = vlaneseq
        %v1147 = vshrl.u32 %v1146, 7
        %v1148 = vsub.s32 1, %v1147
        %v1149 = vrot.slane %v1110, %v1148
        %v1152 = vadd.f32 %v1139, %v1145
        %v1153 = vadd.f32 %v1140, %v1149
        %v1154 = vmax.f32 %v1152, 0.0
        %v1155 = vmax.f32 %v1153, 0.0
        %v1156 = vld [vmem:[%s15] sm:$0xff]
        %v1157 = vld [vmem:[%s15 + $0x8] sm:$0xff]
        %v1158 = vld [vmem:[%s15 + $0x10] sm:$0xff]
        %v1159 = vld [vmem:[%s15 + $0x18] sm:$0xff]
        %v1160 = vld [vmem:[%s15 + $0x20] sm:$0xff]
        %v1161 = vld [vmem:[%s15 + $0x28] sm:$0xff]
        %v1162 = vld [vmem:[%s15 + $0x30] sm:$0xff]
        %v1163 = vld [vmem:[%s15 + $0x38] sm:$0xff]
        %v1164 = vld [vmem:[%s15 + $0x40] sm:$0xff]
        %v1165 = vld [vmem:[%s15 + $0x48] sm:$0xff]
        %v1166 = vld [vmem:[%s15 + $0x50] sm:$0xff]
        %v1167 = vld [vmem:[%s15 + $0x58] sm:$0xff]
        %v1168 = vld [vmem:[%s15 + $0x60] sm:$0xff]
        %v1169 = vld [vmem:[%s15 + $0x68] sm:$0xff]
        %v1170 = vld [vmem:[%s15 + $0x70] sm:$0xff]
        %v1171 = vld [vmem:[%s15 + $0x78] sm:$0xff]
        %v1172 = vld [vmem:[%s15 + $0x80] sm:$0xff]
        %v1173 = vld [vmem:[%s15 + $0x88] sm:$0xff]
        %v1174 = vld [vmem:[%s15 + $0x90] sm:$0xff]
        %v1175 = vld [vmem:[%s15 + $0x98] sm:$0xff]
        %v1176 = vld [vmem:[%s15 + $0xa0] sm:$0xff]
        %v1177 = vld [vmem:[%s15 + $0xa8] sm:$0xff]
        %v1178 = vld [vmem:[%s15 + $0xb0] sm:$0xff]
        %v1179 = vld [vmem:[%s15 + $0xb8] sm:$0xff]
        %v1180 = vld [vmem:[%s15 + $0xc0] sm:$0xff]
        %v1181 = vld [vmem:[%s15 + $0xc8] sm:$0xff]
        %v1182 = vld [vmem:[%s15 + $0xd0] sm:$0xff]
        %v1183 = vld [vmem:[%s15 + $0xd8] sm:$0xff]
        %v1184 = vld [vmem:[%s15 + $0xe0] sm:$0xff]
        %v1185 = vld [vmem:[%s15 + $0xe8] sm:$0xff]
        %v1186 = vld [vmem:[%s15 + $0xf0] sm:$0xff]
        %v1187 = vld [vmem:[%s15 + $0xf8] sm:$0xff]
        %v1188 = vld [vmem:[%s17] sm:$0x1]
        %v1190 = vlaneseq
        %v1191 = vshrl.u32 %v1190, 7
        %v1192 = vsub.s32 0, %v1191
        %v1193 = vrot.slane %v1188, %v1192
        %1195 = vmatprep.subr.mxu0 0.0
        %1196 = vmatpush1.msra.mxu0 %v1171
        %1197 = vmatprep.subr.mxu0 0.0
        %1198 = vmatpush1.msra.mxu0 %v1170
        %1199 = vmatprep.subr.mxu0 0.0
        %1200 = vmatpush1.msra.mxu0 %v1169
        %1201 = vmatprep.subr.mxu0 0.0
        %1202 = vmatpush1.msra.mxu0 %v1168
        %1203 = vmatprep.subr.mxu0 0.0
        %1204 = vmatpush1.msra.mxu0 %v1167
        %1205 = vmatprep.subr.mxu0 0.0
        %1206 = vmatpush1.msra.mxu0 %v1166
        %1207 = vmatprep.subr.mxu0 0.0
        %1208 = vmatpush1.msra.mxu0 %v1165
        %1209 = vmatprep.subr.mxu0 0.0
        %1210 = vmatpush1.msra.mxu0 %v1164
        %1211 = vmatprep.subr.mxu0 0.0
        %1212 = vmatpush1.msra.mxu0 %v1163
        %1213 = vmatprep.subr.mxu0 0.0
        %1214 = vmatpush1.msra.mxu0 %v1162
        %1215 = vmatprep.subr.mxu0 0.0
        %1216 = vmatpush1.msra.mxu0 %v1161
        %1217 = vmatprep.subr.mxu0 0.0
        %1218 = vmatpush1.msra.mxu0 %v1160
        %1219 = vmatprep.subr.mxu0 0.0
        %1220 = vmatpush1.msra.mxu0 %v1159
        %1221 = vmatprep.subr.mxu0 0.0
        %1222 = vmatpush1.msra.mxu0 %v1158
        %1223 = vmatprep.subr.mxu0 0.0
        %1224 = vmatpush1.msra.mxu0 %v1157
        %1225 = vmatprep.subr.mxu0 0.0
        %1226 = vmatpush1.msra.mxu0 %v1156
        %1227 = vmatprep.subr.mxu0 0.0
        %1228 = vmatpush2.msra.mxu0 %v1187
        %1229 = vmatprep.subr.mxu0 0.0
        %1230 = vmatpush2.msra.mxu0 %v1186
        %1231 = vmatprep.subr.mxu0 0.0
        %1232 = vmatpush2.msra.mxu0 %v1185
        %1233 = vmatprep.subr.mxu0 0.0
        %1234 = vmatpush2.msra.mxu0 %v1184
        %1235 = vmatprep.subr.mxu0 0.0
        %1236 = vmatpush2.msra.mxu0 %v1183
        %1237 = vmatprep.subr.mxu0 0.0
        %1238 = vmatpush2.msra.mxu0 %v1182
        %1239 = vmatprep.subr.mxu0 0.0
        %1240 = vmatpush2.msra.mxu0 %v1181
        %1241 = vmatprep.subr.mxu0 0.0
        %1242 = vmatpush2.msra.mxu0 %v1180
        %1243 = vmatprep.subr.mxu0 0.0
        %1244 = vmatpush2.msra.mxu0 %v1179
        %1245 = vmatprep.subr.mxu0 0.0
        %1246 = vmatpush2.msra.mxu0 %v1178
        %1247 = vmatprep.subr.mxu0 0.0
        %1248 = vmatpush2.msra.mxu0 %v1177
        %1249 = vmatprep.subr.mxu0 0.0
        %1250 = vmatpush2.msra.mxu0 %v1176
        %1251 = vmatprep.subr.mxu0 0.0
        %1252 = vmatpush2.msra.mxu0 %v1175
        %1253 = vmatprep.subr.mxu0 0.0
        %1254 = vmatpush2.msra.mxu0 %v1174
        %1255 = vmatprep.subr.mxu0 0.0
        %1256 = vmatpush2.msra.mxu0 %v1173
        %1257 = vmatprep.subr.mxu0 0.0
        %1258 = vmatpush2.msra.mxu0 %v1172
        %1259 = vmatprep.mubr.f32.mxu0 %v1155
        %1260 = vmatmul.mubr.f32.gmra.mxu0 %v1154
        %v1261 = vpop.f32.mrf.mxu0
        %v1262 = vadd.f32 %v1193, %v1261
        %v1263 = vpop.f32.mrf.mxu0
        %1264 = vdwg.mxu0
        %v1265 = vld [vmem:[%s19] sm:$0x1]
        %v1266 = vld [vmem:[%s21] sm:$0x1]
        %vm1267 = vcmask 523264
        %v1268 = vsel %vm1267, %v1262, 0.0
        %1269 = vadd.xlane.f32.xlu0 %v1268
        %v1270 = vpop.xlane.xlu0 %1269
        %v1271 = vrcp.pop 64.0
        %v1272 = vmul.f32 %v1270, %v1271
        %v1273 = vsub.f32 %v1262, %v1272
        %v1274 = vmul.f32 %v1273, %v1273
        %v1275 = vsel %vm1267, %v1274, 0.0
        %1276 = vadd.xlane.f32.xlu0 %v1275
        %v1277 = vpop.xlane.xlu0 %1276
        %v1278 = vmul.f32 %v1277, %v1271
        %v1279 = vadd.f32 %v1278, 1e-05
        %v1280 = vrsqrt.pop %v1279
        %v1281 = vmul.f32 %v1273, %v1280
        %v1283 = vlaneseq
        %v1284 = vshrl.u32 %v1283, 7
        %v1285 = vsub.s32 0, %v1284
        %v1286 = vrot.slane %v1265, %v1285
        %v1288 = vmul.f32 %v1281, %v1286
        %v1290 = vlaneseq
        %v1291 = vshrl.u32 %v1290, 7
        %v1292 = vsub.s32 0, %v1291
        %v1293 = vrot.slane %v1266, %v1292
        %v1295 = vadd.f32 %v1288, %v1293
        %v1296 = vmax.f32 %v1295, 0.0
        %v1297 = vld [vmem:[%s962] sm:$0xff]
        %v1298 = vsub.f32 1.0, %v1297
        %1300 = vset.pattern.permute.xlu0 0
        %1301 = vperm.xlu0 %1300, %v1298
        %v1302 = vpop.permute.xlu0 %1301
        %v1304 = vmul.f32 %v1296, %v1302
        %v1305 = vld [vmem:[%s5] sm:$0xff]
        %v1306 = vadd.f32 %v1304, %v1305
        %v1307 = vld [vmem:[%s23] sm:$0xff]
        %v1308 = vld [vmem:[%s23 + $0x8] sm:$0xff]
        %v1309 = vld [vmem:[%s23 + $0x10] sm:$0xff]
        %v1310 = vld [vmem:[%s23 + $0x18] sm:$0xff]
        %v1311 = vld [vmem:[%s23 + $0x20] sm:$0xff]
        %v1312 = vld [vmem:[%s23 + $0x28] sm:$0xff]
        %v1313 = vld [vmem:[%s23 + $0x30] sm:$0xff]
        %v1314 = vld [vmem:[%s23 + $0x38] sm:$0xff]
        %v1315 = vld [vmem:[%s29] sm:$0x1]
        %v1317 = vlaneseq
        %v1318 = vshrl.u32 %v1317, 7
        %v1319 = vsub.s32 0, %v1318
        %v1320 = vrot.slane %v1315, %v1319
        %v1323 = vsel %vm1267, %v1306, 0
        %1325 = vmatprep.subr.mxu0 0.0
        %1326 = vmatpush1.msra.mxu0 0.0
        %1327 = vmatprep.subr.mxu0 0.0
        %1328 = vmatpush1.msra.mxu0 0.0
        %1329 = vmatprep.subr.mxu0 0.0
        %1330 = vmatpush1.msra.mxu0 0.0
        %1331 = vmatprep.subr.mxu0 0.0
        %1332 = vmatpush1.msra.mxu0 0.0
        %1333 = vmatprep.subr.mxu0 0.0
        %1334 = vmatpush1.msra.mxu0 0.0
        %1335 = vmatprep.subr.mxu0 0.0
        %1336 = vmatpush1.msra.mxu0 0.0
        %1337 = vmatprep.subr.mxu0 0.0
        %1338 = vmatpush1.msra.mxu0 0.0
        %1339 = vmatprep.subr.mxu0 0.0
        %1340 = vmatpush1.msra.mxu0 0.0
        %1341 = vmatprep.subr.mxu0 0.0
        %1342 = vmatpush1.msra.mxu0 %v1314
        %1343 = vmatprep.subr.mxu0 0.0
        %1344 = vmatpush1.msra.mxu0 %v1313
        %1345 = vmatprep.subr.mxu0 0.0
        %1346 = vmatpush1.msra.mxu0 %v1312
        %1347 = vmatprep.subr.mxu0 0.0
        %1348 = vmatpush1.msra.mxu0 %v1311
        %1349 = vmatprep.subr.mxu0 0.0
        %1350 = vmatpush1.msra.mxu0 %v1310
        %1351 = vmatprep.subr.mxu0 0.0
        %1352 = vmatpush1.msra.mxu0 %v1309
        %1353 = vmatprep.subr.mxu0 0.0
        %1354 = vmatpush1.msra.mxu0 %v1308
        %1355 = vmatprep.subr.mxu0 0.0
        %1356 = vmatpush1.msra.mxu0 %v1307
        %1357 = vmatprep.subr.mxu0 0.0
        %1358 = vmatpush2.msra.mxu0 0.0
        %1359 = vmatprep.subr.mxu0 0.0
        %1360 = vmatpush2.msra.mxu0 0.0
        %1361 = vmatprep.subr.mxu0 0.0
        %1362 = vmatpush2.msra.mxu0 0.0
        %1363 = vmatprep.subr.mxu0 0.0
        %1364 = vmatpush2.msra.mxu0 0.0
        %1365 = vmatprep.subr.mxu0 0.0
        %1366 = vmatpush2.msra.mxu0 0.0
        %1367 = vmatprep.subr.mxu0 0.0
        %1368 = vmatpush2.msra.mxu0 0.0
        %1369 = vmatprep.subr.mxu0 0.0
        %1370 = vmatpush2.msra.mxu0 0.0
        %1371 = vmatprep.subr.mxu0 0.0
        %1372 = vmatpush2.msra.mxu0 0.0
        %1373 = vmatprep.subr.mxu0 0.0
        %1374 = vmatpush2.msra.mxu0 0.0
        %1375 = vmatprep.subr.mxu0 0.0
        %1376 = vmatpush2.msra.mxu0 0.0
        %1377 = vmatprep.subr.mxu0 0.0
        %1378 = vmatpush2.msra.mxu0 0.0
        %1379 = vmatprep.subr.mxu0 0.0
        %1380 = vmatpush2.msra.mxu0 0.0
        %1381 = vmatprep.subr.mxu0 0.0
        %1382 = vmatpush2.msra.mxu0 0.0
        %1383 = vmatprep.subr.mxu0 0.0
        %1384 = vmatpush2.msra.mxu0 0.0
        %1385 = vmatprep.subr.mxu0 0.0
        %1386 = vmatpush2.msra.mxu0 0.0
        %1387 = vmatprep.subr.mxu0 0.0
        %1388 = vmatpush2.msra.mxu0 0.0
        %1389 = vmatprep.mubr.f32.mxu0 0.0
        %1390 = vmatmul.mubr.f32.gmra.mxu0 %v1323
        %v1391 = vpop.f32.mrf.mxu0
        %v1392 = vadd.f32 %v1320, %v1391
        %v1393 = vpop.f32.mrf.mxu0
        %1394 = vdwg.mxu0
        %v1395 = vld [vmem:[%s25] sm:$0xff]
        %v1396 = vld [vmem:[%s25 + $0x8] sm:$0xff]
        %v1397 = vld [vmem:[%s25 + $0x10] sm:$0xff]
        %v1398 = vld [vmem:[%s25 + $0x18] sm:$0xff]
        %v1399 = vld [vmem:[%s25 + $0x20] sm:$0xff]
        %v1400 = vld [vmem:[%s25 + $0x28] sm:$0xff]
        %v1401 = vld [vmem:[%s25 + $0x30] sm:$0xff]
        %v1402 = vld [vmem:[%s25 + $0x38] sm:$0xff]
        %v1403 = vld [vmem:[%s31] sm:$0x1]
        %v1405 = vlaneseq
        %v1406 = vshrl.u32 %v1405, 7
        %v1407 = vsub.s32 0, %v1406
        %v1408 = vrot.slane %v1403, %v1407
        %1410 = vmatprep.subr.mxu0 0.0
        %1411 = vmatpush1.msra.mxu0 0.0
        %1412 = vmatprep.subr.mxu0 0.0
        %1413 = vmatpush1.msra.mxu0 0.0
        %1414 = vmatprep.subr.mxu0 0.0
        %1415 = vmatpush1.msra.mxu0 0.0
        %1416 = vmatprep.subr.mxu0 0.0
        %1417 = vmatpush1.msra.mxu0 0.0
        %1418 = vmatprep.subr.mxu0 0.0
        %1419 = vmatpush1.msra.mxu0 0.0
        %1420 = vmatprep.subr.mxu0 0.0
        %1421 = vmatpush1.msra.mxu0 0.0
        %1422 = vmatprep.subr.mxu0 0.0
        %1423 = vmatpush1.msra.mxu0 0.0
        %1424 = vmatprep.subr.mxu0 0.0
        %1425 = vmatpush1.msra.mxu0 0.0
        %1426 = vmatprep.subr.mxu0 0.0
        %1427 = vmatpush1.msra.mxu0 %v1402
        %1428 = vmatprep.subr.mxu0 0.0
        %1429 = vmatpush1.msra.mxu0 %v1401
        %1430 = vmatprep.subr.mxu0 0.0
        %1431 = vmatpush1.msra.mxu0 %v1400
        %1432 = vmatprep.subr.mxu0 0.0
        %1433 = vmatpush1.msra.mxu0 %v1399
        %1434 = vmatprep.subr.mxu0 0.0
        %1435 = vmatpush1.msra.mxu0 %v1398
        %1436 = vmatprep.subr.mxu0 0.0
        %1437 = vmatpush1.msra.mxu0 %v1397
        %1438 = vmatprep.subr.mxu0 0.0
        %1439 = vmatpush1.msra.mxu0 %v1396
        %1440 = vmatprep.subr.mxu0 0.0
        %1441 = vmatpush1.msra.mxu0 %v1395
        %1442 = vmatprep.subr.mxu0 0.0
        %1443 = vmatpush2.msra.mxu0 0.0
        %1444 = vmatprep.subr.mxu0 0.0
        %1445 = vmatpush2.msra.mxu0 0.0
        %1446 = vmatprep.subr.mxu0 0.0
        %1447 = vmatpush2.msra.mxu0 0.0
        %1448 = vmatprep.subr.mxu0 0.0
        %1449 = vmatpush2.msra.mxu0 0.0
        %1450 = vmatprep.subr.mxu0 0.0
        %1451 = vmatpush2.msra.mxu0 0.0
        %1452 = vmatprep.subr.mxu0 0.0
        %1453 = vmatpush2.msra.mxu0 0.0
        %1454 = vmatprep.subr.mxu0 0.0
        %1455 = vmatpush2.msra.mxu0 0.0
        %1456 = vmatprep.subr.mxu0 0.0
        %1457 = vmatpush2.msra.mxu0 0.0
        %1458 = vmatprep.subr.mxu0 0.0
        %1459 = vmatpush2.msra.mxu0 0.0
        %1460 = vmatprep.subr.mxu0 0.0
        %1461 = vmatpush2.msra.mxu0 0.0
        %1462 = vmatprep.subr.mxu0 0.0
        %1463 = vmatpush2.msra.mxu0 0.0
        %1464 = vmatprep.subr.mxu0 0.0
        %1465 = vmatpush2.msra.mxu0 0.0
        %1466 = vmatprep.subr.mxu0 0.0
        %1467 = vmatpush2.msra.mxu0 0.0
        %1468 = vmatprep.subr.mxu0 0.0
        %1469 = vmatpush2.msra.mxu0 0.0
        %1470 = vmatprep.subr.mxu0 0.0
        %1471 = vmatpush2.msra.mxu0 0.0
        %1472 = vmatprep.subr.mxu0 0.0
        %1473 = vmatpush2.msra.mxu0 0.0
        %1474 = vmatprep.mubr.f32.mxu0 0.0
        %1475 = vmatmul.mubr.f32.gmra.mxu0 %v1323
        %v1476 = vpop.f32.mrf.mxu0
        %v1477 = vadd.f32 %v1408, %v1476
        %v1478 = vpop.f32.mrf.mxu0
        %1479 = vdwg.mxu0
        %v1480 = vld [vmem:[%s27] sm:$0xff]
        %v1481 = vld [vmem:[%s27 + $0x8] sm:$0xff]
        %v1482 = vld [vmem:[%s27 + $0x10] sm:$0xff]
        %v1483 = vld [vmem:[%s27 + $0x18] sm:$0xff]
        %v1484 = vld [vmem:[%s27 + $0x20] sm:$0xff]
        %v1485 = vld [vmem:[%s27 + $0x28] sm:$0xff]
        %v1486 = vld [vmem:[%s27 + $0x30] sm:$0xff]
        %v1487 = vld [vmem:[%s27 + $0x38] sm:$0xff]
        %v1488 = vld [vmem:[%s33] sm:$0x1]
        %v1490 = vlaneseq
        %v1491 = vshrl.u32 %v1490, 7
        %v1492 = vsub.s32 0, %v1491
        %v1493 = vrot.slane %v1488, %v1492
        %1495 = vmatprep.subr.mxu0 0.0
        %1496 = vmatpush1.msra.mxu0 0.0
        %1497 = vmatprep.subr.mxu0 0.0
        %1498 = vmatpush1.msra.mxu0 0.0
        %1499 = vmatprep.subr.mxu0 0.0
        %1500 = vmatpush1.msra.mxu0 0.0
        %1501 = vmatprep.subr.mxu0 0.0
        %1502 = vmatpush1.msra.mxu0 0.0
        %1503 = vmatprep.subr.mxu0 0.0
        %1504 = vmatpush1.msra.mxu0 0.0
        %1505 = vmatprep.subr.mxu0 0.0
        %1506 = vmatpush1.msra.mxu0 0.0
        %1507 = vmatprep.subr.mxu0 0.0
        %1508 = vmatpush1.msra.mxu0 0.0
        %1509 = vmatprep.subr.mxu0 0.0
        %1510 = vmatpush1.msra.mxu0 0.0
        %1511 = vmatprep.subr.mxu0 0.0
        %1512 = vmatpush1.msra.mxu0 %v1487
        %1513 = vmatprep.subr.mxu0 0.0
        %1514 = vmatpush1.msra.mxu0 %v1486
        %1515 = vmatprep.subr.mxu0 0.0
        %1516 = vmatpush1.msra.mxu0 %v1485
        %1517 = vmatprep.subr.mxu0 0.0
        %1518 = vmatpush1.msra.mxu0 %v1484
        %1519 = vmatprep.subr.mxu0 0.0
        %1520 = vmatpush1.msra.mxu0 %v1483
        %1521 = vmatprep.subr.mxu0 0.0
        %1522 = vmatpush1.msra.mxu0 %v1482
        %1523 = vmatprep.subr.mxu0 0.0
        %1524 = vmatpush1.msra.mxu0 %v1481
        %1525 = vmatprep.subr.mxu0 0.0
        %1526 = vmatpush1.msra.mxu0 %v1480
        %1527 = vmatprep.subr.mxu0 0.0
        %1528 = vmatpush2.msra.mxu0 0.0
        %1529 = vmatprep.subr.mxu0 0.0
        %1530 = vmatpush2.msra.mxu0 0.0
        %1531 = vmatprep.subr.mxu0 0.0
        %1532 = vmatpush2.msra.mxu0 0.0
        %1533 = vmatprep.subr.mxu0 0.0
        %1534 = vmatpush2.msra.mxu0 0.0
        %1535 = vmatprep.subr.mxu0 0.0
        %1536 = vmatpush2.msra.mxu0 0.0
        %1537 = vmatprep.subr.mxu0 0.0
        %1538 = vmatpush2.msra.mxu0 0.0
        %1539 = vmatprep.subr.mxu0 0.0
        %1540 = vmatpush2.msra.mxu0 0.0
        %1541 = vmatprep.subr.mxu0 0.0
        %1542 = vmatpush2.msra.mxu0 0.0
        %1543 = vmatprep.subr.mxu0 0.0
        %1544 = vmatpush2.msra.mxu0 0.0
        %1545 = vmatprep.subr.mxu0 0.0
        %1546 = vmatpush2.msra.mxu0 0.0
        %1547 = vmatprep.subr.mxu0 0.0
        %1548 = vmatpush2.msra.mxu0 0.0
        %1549 = vmatprep.subr.mxu0 0.0
        %1550 = vmatpush2.msra.mxu0 0.0
        %1551 = vmatprep.subr.mxu0 0.0
        %1552 = vmatpush2.msra.mxu0 0.0
        %1553 = vmatprep.subr.mxu0 0.0
        %1554 = vmatpush2.msra.mxu0 0.0
        %1555 = vmatprep.subr.mxu0 0.0
        %1556 = vmatpush2.msra.mxu0 0.0
        %1557 = vmatprep.subr.mxu0 0.0
        %1558 = vmatpush2.msra.mxu0 0.0
        %1559 = vmatprep.mubr.f32.mxu0 0.0
        %1560 = vmatmul.mubr.f32.gmra.mxu0 %v1323
        %v1561 = vpop.f32.mrf.mxu0
        %v1562 = vadd.f32 %v1493, %v1561
        %v1563 = vpop.f32.mrf.mxu0
        %1564 = vdwg.mxu0
        %v1565 = vmul.f32 %v1392, 0.125
        %v1567 = vsel %vm1267, %v1565, 0
        %v1570 = vsel %vm1267, %v1477, 0
        %1572 = vmatprep.subr.mxu0 0.0
        %1573 = vmatpush1.xpose.msra.mxu0 0.0
        %1574 = vmatprep.subr.mxu0 0.0
        %1575 = vmatpush1.xpose.msra.mxu0 0.0
        %1576 = vmatprep.subr.mxu0 0.0
        %1577 = vmatpush1.xpose.msra.mxu0 0.0
        %1578 = vmatprep.subr.mxu0 0.0
        %1579 = vmatpush1.xpose.msra.mxu0 0.0
        %1580 = vmatprep.subr.mxu0 0.0
        %1581 = vmatpush1.xpose.msra.mxu0 0.0
        %1582 = vmatprep.subr.mxu0 0.0
        %1583 = vmatpush1.xpose.msra.mxu0 0.0
        %1584 = vmatprep.subr.mxu0 0.0
        %1585 = vmatpush1.xpose.msra.mxu0 0.0
        %1586 = vmatprep.subr.mxu0 0.0
        %1587 = vmatpush1.xpose.msra.mxu0 0.0
        %1588 = vmatprep.subr.mxu0 0.0
        %1589 = vmatpush1.xpose.msra.mxu0 0.0
        %1590 = vmatprep.subr.mxu0 0.0
        %1591 = vmatpush1.xpose.msra.mxu0 0.0
        %1592 = vmatprep.subr.mxu0 0.0
        %1593 = vmatpush1.xpose.msra.mxu0 0.0
        %1594 = vmatprep.subr.mxu0 0.0
        %1595 = vmatpush1.xpose.msra.mxu0 0.0
        %1596 = vmatprep.subr.mxu0 0.0
        %1597 = vmatpush1.xpose.msra.mxu0 0.0
        %1598 = vmatprep.subr.mxu0 0.0
        %1599 = vmatpush1.xpose.msra.mxu0 0.0
        %1600 = vmatprep.subr.mxu0 0.0
        %1601 = vmatpush1.xpose.msra.mxu0 0.0
        %1602 = vmatprep.subr.mxu0 0.0
        %1603 = vmatpush1.xpose.msra.mxu0 %v1570
        %1604 = vmatprep.subr.mxu0 0.0
        %1605 = vmatpush2.xpose.msra.mxu0 0.0
        %1606 = vmatprep.subr.mxu0 0.0
        %1607 = vmatpush2.xpose.msra.mxu0 0.0
        %1608 = vmatprep.subr.mxu0 0.0
        %1609 = vmatpush2.xpose.msra.mxu0 0.0
        %1610 = vmatprep.subr.mxu0 0.0
        %1611 = vmatpush2.xpose.msra.mxu0 0.0
        %1612 = vmatprep.subr.mxu0 0.0
        %1613 = vmatpush2.xpose.msra.mxu0 0.0
        %1614 = vmatprep.subr.mxu0 0.0
        %1615 = vmatpush2.xpose.msra.mxu0 0.0
        %1616 = vmatprep.subr.mxu0 0.0
        %1617 = vmatpush2.xpose.msra.mxu0 0.0
        %1618 = vmatprep.subr.mxu0 0.0
        %1619 = vmatpush2.xpose.msra.mxu0 0.0
        %1620 = vmatprep.subr.mxu0 0.0
        %1621 = vmatpush2.xpose.msra.mxu0 0.0
        %1622 = vmatprep.subr.mxu0 0.0
        %1623 = vmatpush2.xpose.msra.mxu0 0.0
        %1624 = vmatprep.subr.mxu0 0.0
        %1625 = vmatpush2.xpose.msra.mxu0 0.0
        %1626 = vmatprep.subr.mxu0 0.0
        %1627 = vmatpush2.xpose.msra.mxu0 0.0
        %1628 = vmatprep.subr.mxu0 0.0
        %1629 = vmatpush2.xpose.msra.mxu0 0.0
        %1630 = vmatprep.subr.mxu0 0.0
        %1631 = vmatpush2.xpose.msra.mxu0 0.0
        %1632 = vmatprep.subr.mxu0 0.0
        %1633 = vmatpush2.xpose.msra.mxu0 0.0
        %1634 = vmatprep.subr.mxu0 0.0
        %1635 = vmatpush2.xpose.msra.mxu0 0.0
        %1636 = vmatprep.mubr.f32.mxu0 0.0
        %1637 = vmatmul.mubr.f32.gmra.mxu0 %v1567
        %v1638 = vpop.f32.mrf.mxu0
        %v1639 = vadd.f32 0.0, %v1638
        %v1640 = vpop.f32.mrf.mxu0
        %1641 = vdwg.mxu0
        %v1642 = vsel %vm1000, %v1639, -inf
        %1643 = vmax.xlane.f32.xlu0 %v1642
        %v1644 = vpop.xlane.xlu0 %1643
        %v1645 = vsub.f32 %v1639, %v1644
        %v1646 = vmul.f32 %v1645, 1.442695
        %v1647 = vpow.pop %v1646
        %v1648 = vsel %vm1000, %v1647, 0.0
        %1649 = vadd.xlane.f32.xlu0 %v1648
        %v1650 = vpop.xlane.xlu0 %1649
        %v1651 = vrcp.pop %v1650
        %v1652 = vmul.f32 %v1647, %v1651
        %v1654 = vsel %vm1000, %v1652, 0
        %1656 = vmatprep.subr.mxu0 0.0
        %1657 = vmatpush1.msra.mxu0 0.0
        %1658 = vmatprep.subr.mxu0 0.0
        %1659 = vmatpush1.msra.mxu0 0.0
        %1660 = vmatprep.subr.mxu0 0.0
        %1661 = vmatpush1.msra.mxu0 0.0
        %1662 = vmatprep.subr.mxu0 0.0
        %1663 = vmatpush1.msra.mxu0 0.0
        %1664 = vmatprep.subr.mxu0 0.0
        %1665 = vmatpush1.msra.mxu0 0.0
        %1666 = vmatprep.subr.mxu0 0.0
        %1667 = vmatpush1.msra.mxu0 0.0
        %1668 = vmatprep.subr.mxu0 0.0
        %1669 = vmatpush1.msra.mxu0 0.0
        %1670 = vmatprep.subr.mxu0 0.0
        %1671 = vmatpush1.msra.mxu0 0.0
        %1672 = vmatprep.subr.mxu0 0.0
        %1673 = vmatpush1.msra.mxu0 0.0
        %1674 = vmatprep.subr.mxu0 0.0
        %1675 = vmatpush1.msra.mxu0 0.0
        %1676 = vmatprep.subr.mxu0 0.0
        %1677 = vmatpush1.msra.mxu0 0.0
        %1678 = vmatprep.subr.mxu0 0.0
        %1679 = vmatpush1.msra.mxu0 0.0
        %1680 = vmatprep.subr.mxu0 0.0
        %1681 = vmatpush1.msra.mxu0 0.0
        %1682 = vmatprep.subr.mxu0 0.0
        %1683 = vmatpush1.msra.mxu0 0.0
        %1684 = vmatprep.subr.mxu0 0.0
        %1685 = vmatpush1.msra.mxu0 0.0
        %1686 = vmatprep.subr.mxu0 0.0
        %1687 = vmatpush1.msra.mxu0 %v1562
        %1688 = vmatprep.subr.mxu0 0.0
        %1689 = vmatpush2.msra.mxu0 0.0
        %1690 = vmatprep.subr.mxu0 0.0
        %1691 = vmatpush2.msra.mxu0 0.0
        %1692 = vmatprep.subr.mxu0 0.0
        %1693 = vmatpush2.msra.mxu0 0.0
        %1694 = vmatprep.subr.mxu0 0.0
        %1695 = vmatpush2.msra.mxu0 0.0
        %1696 = vmatprep.subr.mxu0 0.0
        %1697 = vmatpush2.msra.mxu0 0.0
        %1698 = vmatprep.subr.mxu0 0.0
        %1699 = vmatpush2.msra.mxu0 0.0
        %1700 = vmatprep.subr.mxu0 0.0
        %1701 = vmatpush2.msra.mxu0 0.0
        %1702 = vmatprep.subr.mxu0 0.0
        %1703 = vmatpush2.msra.mxu0 0.0
        %1704 = vmatprep.subr.mxu0 0.0
        %1705 = vmatpush2.msra.mxu0 0.0
        %1706 = vmatprep.subr.mxu0 0.0
        %1707 = vmatpush2.msra.mxu0 0.0
        %1708 = vmatprep.subr.mxu0 0.0
        %1709 = vmatpush2.msra.mxu0 0.0
        %1710 = vmatprep.subr.mxu0 0.0
        %1711 = vmatpush2.msra.mxu0 0.0
        %1712 = vmatprep.subr.mxu0 0.0
        %1713 = vmatpush2.msra.mxu0 0.0
        %1714 = vmatprep.subr.mxu0 0.0
        %1715 = vmatpush2.msra.mxu0 0.0
        %1716 = vmatprep.subr.mxu0 0.0
        %1717 = vmatpush2.msra.mxu0 0.0
        %1718 = vmatprep.subr.mxu0 0.0
        %1719 = vmatpush2.msra.mxu0 0.0
        %1720 = vmatprep.mubr.f32.mxu0 0.0
        %1721 = vmatmul.mubr.f32.gmra.mxu0 %v1654
        %v1722 = vpop.f32.mrf.mxu0
        %v1723 = vadd.f32 0.0, %v1722
        %v1724 = vpop.f32.mrf.mxu0
        %1725 = vdwg.mxu0
        %v1726 = vld [vmem:[%s35] sm:$0xff]
        %v1727 = vld [vmem:[%s35 + $0x8] sm:$0xff]
        %v1728 = vld [vmem:[%s35 + $0x10] sm:$0xff]
        %v1729 = vld [vmem:[%s35 + $0x18] sm:$0xff]
        %v1730 = vld [vmem:[%s35 + $0x20] sm:$0xff]
        %v1731 = vld [vmem:[%s35 + $0x28] sm:$0xff]
        %v1732 = vld [vmem:[%s35 + $0x30] sm:$0xff]
        %v1733 = vld [vmem:[%s35 + $0x38] sm:$0xff]
        %v1734 = vld [vmem:[%s37] sm:$0x1]
        %v1736 = vlaneseq
        %v1737 = vshrl.u32 %v1736, 7
        %v1738 = vsub.s32 0, %v1737
        %v1739 = vrot.slane %v1734, %v1738
        %v1742 = vsel %vm1267, %v1723, 0
        %1744 = vmatprep.subr.mxu0 0.0
        %1745 = vmatpush1.msra.mxu0 0.0
        %1746 = vmatprep.subr.mxu0 0.0
        %1747 = vmatpush1.msra.mxu0 0.0
        %1748 = vmatprep.subr.mxu0 0.0
        %1749 = vmatpush1.msra.mxu0 0.0
        %1750 = vmatprep.subr.mxu0 0.0
        %1751 = vmatpush1.msra.mxu0 0.0
        %1752 = vmatprep.subr.mxu0 0.0
        %1753 = vmatpush1.msra.mxu0 0.0
        %1754 = vmatprep.subr.mxu0 0.0
        %1755 = vmatpush1.msra.mxu0 0.0
        %1756 = vmatprep.subr.mxu0 0.0
        %1757 = vmatpush1.msra.mxu0 0.0
        %1758 = vmatprep.subr.mxu0 0.0
        %1759 = vmatpush1.msra.mxu0 0.0
        %1760 = vmatprep.subr.mxu0 0.0
        %1761 = vmatpush1.msra.mxu0 %v1733
        %1762 = vmatprep.subr.mxu0 0.0
        %1763 = vmatpush1.msra.mxu0 %v1732
        %1764 = vmatprep.subr.mxu0 0.0
        %1765 = vmatpush1.msra.mxu0 %v1731
        %1766 = vmatprep.subr.mxu0 0.0
        %1767 = vmatpush1.msra.mxu0 %v1730
        %1768 = vmatprep.subr.mxu0 0.0
        %1769 = vmatpush1.msra.mxu0 %v1729
        %1770 = vmatprep.subr.mxu0 0.0
        %1771 = vmatpush1.msra.mxu0 %v1728
        %1772 = vmatprep.subr.mxu0 0.0
        %1773 = vmatpush1.msra.mxu0 %v1727
        %1774 = vmatprep.subr.mxu0 0.0
        %1775 = vmatpush1.msra.mxu0 %v1726
        %1776 = vmatprep.subr.mxu0 0.0
        %1777 = vmatpush2.msra.mxu0 0.0
        %1778 = vmatprep.subr.mxu0 0.0
        %1779 = vmatpush2.msra.mxu0 0.0
        %1780 = vmatprep.subr.mxu0 0.0
        %1781 = vmatpush2.msra.mxu0 0.0
        %1782 = vmatprep.subr.mxu0 0.0
        %1783 = vmatpush2.msra.mxu0 0.0
        %1784 = vmatprep.subr.mxu0 0.0
        %1785 = vmatpush2.msra.mxu0 0.0
        %1786 = vmatprep.subr.mxu0 0.0
        %1787 = vmatpush2.msra.mxu0 0.0
        %1788 = vmatprep.subr.mxu0 0.0
        %1789 = vmatpush2.msra.mxu0 0.0
        %1790 = vmatprep.subr.mxu0 0.0
        %1791 = vmatpush2.msra.mxu0 0.0
        %1792 = vmatprep.subr.mxu0 0.0
        %1793 = vmatpush2.msra.mxu0 0.0
        %1794 = vmatprep.subr.mxu0 0.0
        %1795 = vmatpush2.msra.mxu0 0.0
        %1796 = vmatprep.subr.mxu0 0.0
        %1797 = vmatpush2.msra.mxu0 0.0
        %1798 = vmatprep.subr.mxu0 0.0
        %1799 = vmatpush2.msra.mxu0 0.0
        %1800 = vmatprep.subr.mxu0 0.0
        %1801 = vmatpush2.msra.mxu0 0.0
        %1802 = vmatprep.subr.mxu0 0.0
        %1803 = vmatpush2.msra.mxu0 0.0
        %1804 = vmatprep.subr.mxu0 0.0
        %1805 = vmatpush2.msra.mxu0 0.0
        %1806 = vmatprep.subr.mxu0 0.0
        %1807 = vmatpush2.msra.mxu0 0.0
        %1808 = vmatprep.mubr.f32.mxu0 0.0
        %1809 = vmatmul.mubr.f32.gmra.mxu0 %v1742
        %v1810 = vpop.f32.mrf.mxu0
        %v1811 = vadd.f32 %v1739, %v1810
        %v1812 = vpop.f32.mrf.mxu0
        %1813 = vdwg.mxu0
        %v1814 = vadd.f32 %v1306, %v1811
        %v1815 = vld [vmem:[%s39] sm:$0x1]
        %v1816 = vld [vmem:[%s41] sm:$0x1]
        %v1817 = vsel %vm1267, %v1814, 0.0
        %1818 = vadd.xlane.f32.xlu0 %v1817
        %v1819 = vpop.xlane.xlu0 %1818
        %v1820 = vmul.f32 %v1819, %v1271
        %v1821 = vsub.f32 %v1814, %v1820
        %v1822 = vmul.f32 %v1821, %v1821
        %v1823 = vsel %vm1267, %v1822, 0.0
        %1824 = vadd.xlane.f32.xlu0 %v1823
        %v1825 = vpop.xlane.xlu0 %1824
        %v1826 = vmul.f32 %v1825, %v1271
        %v1827 = vadd.f32 %v1826, 1e-05
        %v1828 = vrsqrt.pop %v1827
        %v1829 = vmul.f32 %v1821, %v1828
        %v1831 = vlaneseq
        %v1832 = vshrl.u32 %v1831, 7
        %v1833 = vsub.s32 0, %v1832
        %v1834 = vrot.slane %v1815, %v1833
        %v1836 = vmul.f32 %v1829, %v1834
        %v1838 = vlaneseq
        %v1839 = vshrl.u32 %v1838, 7
        %v1840 = vsub.s32 0, %v1839
        %v1841 = vrot.slane %v1816, %v1840
        %v1843 = vadd.f32 %v1836, %v1841
        %v1844 = vld [vmem:[%s43] sm:$0xff]
        %v1845 = vld [vmem:[%s43 + $0x8] sm:$0xff]
        %v1846 = vld [vmem:[%s43 + $0x10] sm:$0xff]
        %v1847 = vld [vmem:[%s43 + $0x18] sm:$0xff]
        %v1848 = vld [vmem:[%s43 + $0x20] sm:$0xff]
        %v1849 = vld [vmem:[%s43 + $0x28] sm:$0xff]
        %v1850 = vld [vmem:[%s43 + $0x30] sm:$0xff]
        %v1851 = vld [vmem:[%s43 + $0x38] sm:$0xff]
        %v1852 = vld [vmem:[%s43 + $0x40] sm:$0xff]
        %v1853 = vld [vmem:[%s43 + $0x48] sm:$0xff]
        %v1854 = vld [vmem:[%s43 + $0x50] sm:$0xff]
        %v1855 = vld [vmem:[%s43 + $0x58] sm:$0xff]
        %v1856 = vld [vmem:[%s43 + $0x60] sm:$0xff]
        %v1857 = vld [vmem:[%s43 + $0x68] sm:$0xff]
        %v1858 = vld [vmem:[%s43 + $0x70] sm:$0xff]
        %v1859 = vld [vmem:[%s43 + $0x78] sm:$0xff]
        %v1860 = vld [vmem:[%s45] sm:$0x3]
        %v1862 = vlaneseq
        %v1863 = vshrl.u32 %v1862, 7
        %v1864 = vsub.s32 0, %v1863
        %v1865 = vrot.slane %v1860, %v1864
        %v1866 = vlaneseq
        %v1867 = vshrl.u32 %v1866, 7
        %v1868 = vsub.s32 1, %v1867
        %v1869 = vrot.slane %v1860, %v1868
        %v1873 = vsel %vm1267, %v1843, 0
        %1875 = vmatprep.subr.mxu0 0.0
        %1876 = vmatpush1.msra.mxu0 0.0
        %1877 = vmatprep.subr.mxu0 0.0
        %1878 = vmatpush1.msra.mxu0 0.0
        %1879 = vmatprep.subr.mxu0 0.0
        %1880 = vmatpush1.msra.mxu0 0.0
        %1881 = vmatprep.subr.mxu0 0.0
        %1882 = vmatpush1.msra.mxu0 0.0
        %1883 = vmatprep.subr.mxu0 0.0
        %1884 = vmatpush1.msra.mxu0 0.0
        %1885 = vmatprep.subr.mxu0 0.0
        %1886 = vmatpush1.msra.mxu0 0.0
        %1887 = vmatprep.subr.mxu0 0.0
        %1888 = vmatpush1.msra.mxu0 0.0
        %1889 = vmatprep.subr.mxu0 0.0
        %1890 = vmatpush1.msra.mxu0 0.0
        %1891 = vmatprep.subr.mxu0 %v1859
        %1892 = vmatpush1.msra.mxu0 %v1858
        %1893 = vmatprep.subr.mxu0 %v1857
        %1894 = vmatpush1.msra.mxu0 %v1856
        %1895 = vmatprep.subr.mxu0 %v1855
        %1896 = vmatpush1.msra.mxu0 %v1854
        %1897 = vmatprep.subr.mxu0 %v1853
        %1898 = vmatpush1.msra.mxu0 %v1852
        %1899 = vmatprep.subr.mxu0 %v1851
        %1900 = vmatpush1.msra.mxu0 %v1850
        %1901 = vmatprep.subr.mxu0 %v1849
        %1902 = vmatpush1.msra.mxu0 %v1848
        %1903 = vmatprep.subr.mxu0 %v1847
        %1904 = vmatpush1.msra.mxu0 %v1846
        %1905 = vmatprep.subr.mxu0 %v1845
        %1906 = vmatpush1.msra.mxu0 %v1844
        %1907 = vmatprep.subr.mxu0 0.0
        %1908 = vmatpush2.msra.mxu0 0.0
        %1909 = vmatprep.subr.mxu0 0.0
        %1910 = vmatpush2.msra.mxu0 0.0
        %1911 = vmatprep.subr.mxu0 0.0
        %1912 = vmatpush2.msra.mxu0 0.0
        %1913 = vmatprep.subr.mxu0 0.0
        %1914 = vmatpush2.msra.mxu0 0.0
        %1915 = vmatprep.subr.mxu0 0.0
        %1916 = vmatpush2.msra.mxu0 0.0
        %1917 = vmatprep.subr.mxu0 0.0
        %1918 = vmatpush2.msra.mxu0 0.0
        %1919 = vmatprep.subr.mxu0 0.0
        %1920 = vmatpush2.msra.mxu0 0.0
        %1921 = vmatprep.subr.mxu0 0.0
        %1922 = vmatpush2.msra.mxu0 0.0
        %1923 = vmatprep.subr.mxu0 0.0
        %1924 = vmatpush2.msra.mxu0 0.0
        %1925 = vmatprep.subr.mxu0 0.0
        %1926 = vmatpush2.msra.mxu0 0.0
        %1927 = vmatprep.subr.mxu0 0.0
        %1928 = vmatpush2.msra.mxu0 0.0
        %1929 = vmatprep.subr.mxu0 0.0
        %1930 = vmatpush2.msra.mxu0 0.0
        %1931 = vmatprep.subr.mxu0 0.0
        %1932 = vmatpush2.msra.mxu0 0.0
        %1933 = vmatprep.subr.mxu0 0.0
        %1934 = vmatpush2.msra.mxu0 0.0
        %1935 = vmatprep.subr.mxu0 0.0
        %1936 = vmatpush2.msra.mxu0 0.0
        %1937 = vmatprep.subr.mxu0 0.0
        %1938 = vmatpush2.msra.mxu0 0.0
        %1939 = vmatprep.mubr.f32.mxu0 0.0
        %1940 = vmatmul.mubr.f32.gmra.mxu0 %v1873
        %v1941 = vpop.f32.mrf.mxu0
        %v1942 = vadd.f32 %v1865, %v1941
        %v1943 = vpop.f32.mrf.mxu0
        %v1944 = vadd.f32 %v1869, %v1943
        %1945 = vdwg.mxu0
        %v1946 = vmax.f32 %v1942, 0.0
        %v1947 = vmax.f32 %v1944, 0.0
        %v1948 = vld [vmem:[%s47] sm:$0xff]
        %v1949 = vld [vmem:[%s47 + $0x8] sm:$0xff]
        %v1950 = vld [vmem:[%s47 + $0x10] sm:$0xff]
        %v1951 = vld [vmem:[%s47 + $0x18] sm:$0xff]
        %v1952 = vld [vmem:[%s47 + $0x20] sm:$0xff]
        %v1953 = vld [vmem:[%s47 + $0x28] sm:$0xff]
        %v1954 = vld [vmem:[%s47 + $0x30] sm:$0xff]
        %v1955 = vld [vmem:[%s47 + $0x38] sm:$0xff]
        %v1956 = vld [vmem:[%s47 + $0x40] sm:$0xff]
        %v1957 = vld [vmem:[%s47 + $0x48] sm:$0xff]
        %v1958 = vld [vmem:[%s47 + $0x50] sm:$0xff]
        %v1959 = vld [vmem:[%s47 + $0x58] sm:$0xff]
        %v1960 = vld [vmem:[%s47 + $0x60] sm:$0xff]
        %v1961 = vld [vmem:[%s47 + $0x68] sm:$0xff]
        %v1962 = vld [vmem:[%s47 + $0x70] sm:$0xff]
        %v1963 = vld [vmem:[%s47 + $0x78] sm:$0xff]
        %v1964 = vld [vmem:[%s47 + $0x80] sm:$0xff]
        %v1965 = vld [vmem:[%s47 + $0x88] sm:$0xff]
        %v1966 = vld [vmem:[%s47 + $0x90] sm:$0xff]
        %v1967 = vld [vmem:[%s47 + $0x98] sm:$0xff]
        %v1968 = vld [vmem:[%s47 + $0xa0] sm:$0xff]
        %v1969 = vld [vmem:[%s47 + $0xa8] sm:$0xff]
        %v1970 = vld [vmem:[%s47 + $0xb0] sm:$0xff]
        %v1971 = vld [vmem:[%s47 + $0xb8] sm:$0xff]
        %v1972 = vld [vmem:[%s47 + $0xc0] sm:$0xff]
        %v1973 = vld [vmem:[%s47 + $0xc8] sm:$0xff]
        %v1974 = vld [vmem:[%s47 + $0xd0] sm:$0xff]
        %v1975 = vld [vmem:[%s47 + $0xd8] sm:$0xff]
        %v1976 = vld [vmem:[%s47 + $0xe0] sm:$0xff]
        %v1977 = vld [vmem:[%s47 + $0xe8] sm:$0xff]
        %v1978 = vld [vmem:[%s47 + $0xf0] sm:$0xff]
        %v1979 = vld [vmem:[%s47 + $0xf8] sm:$0xff]
        %v1980 = vld [vmem:[%s49] sm:$0x1]
        %v1982 = vlaneseq
        %v1983 = vshrl.u32 %v1982, 7
        %v1984 = vsub.s32 0, %v1983
        %v1985 = vrot.slane %v1980, %v1984
        %1987 = vmatprep.subr.mxu0 0.0
        %1988 = vmatpush1.msra.mxu0 %v1963
        %1989 = vmatprep.subr.mxu0 0.0
        %1990 = vmatpush1.msra.mxu0 %v1962
        %1991 = vmatprep.subr.mxu0 0.0
        %1992 = vmatpush1.msra.mxu0 %v1961
        %1993 = vmatprep.subr.mxu0 0.0
        %1994 = vmatpush1.msra.mxu0 %v1960
        %1995 = vmatprep.subr.mxu0 0.0
        %1996 = vmatpush1.msra.mxu0 %v1959
        %1997 = vmatprep.subr.mxu0 0.0
        %1998 = vmatpush1.msra.mxu0 %v1958
        %1999 = vmatprep.subr.mxu0 0.0
        %2000 = vmatpush1.msra.mxu0 %v1957
        %2001 = vmatprep.subr.mxu0 0.0
        %2002 = vmatpush1.msra.mxu0 %v1956
        %2003 = vmatprep.subr.mxu0 0.0
        %2004 = vmatpush1.msra.mxu0 %v1955
        %2005 = vmatprep.subr.mxu0 0.0
        %2006 = vmatpush1.msra.mxu0 %v1954
        %2007 = vmatprep.subr.mxu0 0.0
        %2008 = vmatpush1.msra.mxu0 %v1953
        %2009 = vmatprep.subr.mxu0 0.0
        %2010 = vmatpush1.msra.mxu0 %v1952
        %2011 = vmatprep.subr.mxu0 0.0
        %2012 = vmatpush1.msra.mxu0 %v1951
        %2013 = vmatprep.subr.mxu0 0.0
        %2014 = vmatpush1.msra.mxu0 %v1950
        %2015 = vmatprep.subr.mxu0 0.0
        %2016 = vmatpush1.msra.mxu0 %v1949
        %2017 = vmatprep.subr.mxu0 0.0
        %2018 = vmatpush1.msra.mxu0 %v1948
        %2019 = vmatprep.subr.mxu0 0.0
        %2020 = vmatpush2.msra.mxu0 %v1979
        %2021 = vmatprep.subr.mxu0 0.0
        %2022 = vmatpush2.msra.mxu0 %v1978
        %2023 = vmatprep.subr.mxu0 0.0
        %2024 = vmatpush2.msra.mxu0 %v1977
        %2025 = vmatprep.subr.mxu0 0.0
        %2026 = vmatpush2.msra.mxu0 %v1976
        %2027 = vmatprep.subr.mxu0 0.0
        %2028 = vmatpush2.msra.mxu0 %v1975
        %2029 = vmatprep.subr.mxu0 0.0
        %2030 = vmatpush2.msra.mxu0 %v1974
        %2031 = vmatprep.subr.mxu0 0.0
        %2032 = vmatpush2.msra.mxu0 %v1973
        %2033 = vmatprep.subr.mxu0 0.0
        %2034 = vmatpush2.msra.mxu0 %v1972
        %2035 = vmatprep.subr.mxu0 0.0
        %2036 = vmatpush2.msra.mxu0 %v1971
        %2037 = vmatprep.subr.mxu0 0.0
        %2038 = vmatpush2.msra.mxu0 %v1970
        %2039 = vmatprep.subr.mxu0 0.0
        %2040 = vmatpush2.msra.mxu0 %v1969
        %2041 = vmatprep.subr.mxu0 0.0
        %2042 = vmatpush2.msra.mxu0 %v1968
        %2043 = vmatprep.subr.mxu0 0.0
        %2044 = vmatpush2.msra.mxu0 %v1967
        %2045 = vmatprep.subr.mxu0 0.0
        %2046 = vmatpush2.msra.mxu0 %v1966
        %2047 = vmatprep.subr.mxu0 0.0
        %2048 = vmatpush2.msra.mxu0 %v1965
        %2049 = vmatprep.subr.mxu0 0.0
        %2050 = vmatpush2.msra.mxu0 %v1964
        %2051 = vmatprep.mubr.f32.mxu0 %v1947
        %2052 = vmatmul.mubr.f32.gmra.mxu0 %v1946
        %v2053 = vpop.f32.mrf.mxu0
        %v2054 = vadd.f32 %v1985, %v2053
        %v2055 = vpop.f32.mrf.mxu0
        %2056 = vdwg.mxu0
        %v2057 = vadd.f32 %v1843, %v2054
        %v2058 = vld [vmem:[%s51] sm:$0x1]
        %v2059 = vld [vmem:[%s53] sm:$0x1]
        %v2060 = vsel %vm1267, %v2057, 0.0
        %2061 = vadd.xlane.f32.xlu0 %v2060
        %v2062 = vpop.xlane.xlu0 %2061
        %v2063 = vmul.f32 %v2062, %v1271
        %v2064 = vsub.f32 %v2057, %v2063
        %v2065 = vmul.f32 %v2064, %v2064
        %v2066 = vsel %vm1267, %v2065, 0.0
        %2067 = vadd.xlane.f32.xlu0 %v2066
        %v2068 = vpop.xlane.xlu0 %2067
        %v2069 = vmul.f32 %v2068, %v1271
        %v2070 = vadd.f32 %v2069, 1e-05
        %v2071 = vrsqrt.pop %v2070
        %v2072 = vmul.f32 %v2064, %v2071
        %v2074 = vlaneseq
        %v2075 = vshrl.u32 %v2074, 7
        %v2076 = vsub.s32 0, %v2075
        %v2077 = vrot.slane %v2058, %v2076
        %v2079 = vmul.f32 %v2072, %v2077
        %v2081 = vlaneseq
        %v2082 = vshrl.u32 %v2081, 7
        %v2083 = vsub.s32 0, %v2082
        %v2084 = vrot.slane %v2059, %v2083
        %v2086 = vadd.f32 %v2079, %v2084
        %s2087 = scalar_lea.vmem %s23, 64
        %v2088 = vld [vmem:[%s2087] sm:$0xff]
        %v2089 = vld [vmem:[%s2087 + $0x8] sm:$0xff]
        %v2090 = vld [vmem:[%s2087 + $0x10] sm:$0xff]
        %v2091 = vld [vmem:[%s2087 + $0x18] sm:$0xff]
        %v2092 = vld [vmem:[%s2087 + $0x20] sm:$0xff]
        %v2093 = vld [vmem:[%s2087 + $0x28] sm:$0xff]
        %v2094 = vld [vmem:[%s2087 + $0x30] sm:$0xff]
        %v2095 = vld [vmem:[%s2087 + $0x38] sm:$0xff]
        %s2096 = scalar_lea.vmem %s29, 1
        %v2097 = vld [vmem:[%s2096] sm:$0x1]
        %v2099 = vlaneseq
        %v2100 = vshrl.u32 %v2099, 7
        %v2101 = vsub.s32 0, %v2100
        %v2102 = vrot.slane %v2097, %v2101
        %v2105 = vsel %vm1267, %v2086, 0
        %2107 = vmatprep.subr.mxu0 0.0
        %2108 = vmatpush1.msra.mxu0 0.0
        %2109 = vmatprep.subr.mxu0 0.0
        %2110 = vmatpush1.msra.mxu0 0.0
        %2111 = vmatprep.subr.mxu0 0.0
        %2112 = vmatpush1.msra.mxu0 0.0
        %2113 = vmatprep.subr.mxu0 0.0
        %2114 = vmatpush1.msra.mxu0 0.0
        %2115 = vmatprep.subr.mxu0 0.0
        %2116 = vmatpush1.msra.mxu0 0.0
        %2117 = vmatprep.subr.mxu0 0.0
        %2118 = vmatpush1.msra.mxu0 0.0
        %2119 = vmatprep.subr.mxu0 0.0
        %2120 = vmatpush1.msra.mxu0 0.0
        %2121 = vmatprep.subr.mxu0 0.0
        %2122 = vmatpush1.msra.mxu0 0.0
        %2123 = vmatprep.subr.mxu0 0.0
        %2124 = vmatpush1.msra.mxu0 %v2095
        %2125 = vmatprep.subr.mxu0 0.0
        %2126 = vmatpush1.msra.mxu0 %v2094
        %2127 = vmatprep.subr.mxu0 0.0
        %2128 = vmatpush1.msra.mxu0 %v2093
        %2129 = vmatprep.subr.mxu0 0.0
        %2130 = vmatpush1.msra.mxu0 %v2092
        %2131 = vmatprep.subr.mxu0 0.0
        %2132 = vmatpush1.msra.mxu0 %v2091
        %2133 = vmatprep.subr.mxu0 0.0
        %2134 = vmatpush1.msra.mxu0 %v2090
        %2135 = vmatprep.subr.mxu0 0.0
        %2136 = vmatpush1.msra.mxu0 %v2089
        %2137 = vmatprep.subr.mxu0 0.0
        %2138 = vmatpush1.msra.mxu0 %v2088
        %2139 = vmatprep.subr.mxu0 0.0
        %2140 = vmatpush2.msra.mxu0 0.0
        %2141 = vmatprep.subr.mxu0 0.0
        %2142 = vmatpush2.msra.mxu0 0.0
        %2143 = vmatprep.subr.mxu0 0.0
        %2144 = vmatpush2.msra.mxu0 0.0
        %2145 = vmatprep.subr.mxu0 0.0
        %2146 = vmatpush2.msra.mxu0 0.0
        %2147 = vmatprep.subr.mxu0 0.0
        %2148 = vmatpush2.msra.mxu0 0.0
        %2149 = vmatprep.subr.mxu0 0.0
        %2150 = vmatpush2.msra.mxu0 0.0
        %2151 = vmatprep.subr.mxu0 0.0
        %2152 = vmatpush2.msra.mxu0 0.0
        %2153 = vmatprep.subr.mxu0 0.0
        %2154 = vmatpush2.msra.mxu0 0.0
        %2155 = vmatprep.subr.mxu0 0.0
        %2156 = vmatpush2.msra.mxu0 0.0
        %2157 = vmatprep.subr.mxu0 0.0
        %2158 = vmatpush2.msra.mxu0 0.0
        %2159 = vmatprep.subr.mxu0 0.0
        %2160 = vmatpush2.msra.mxu0 0.0
        %2161 = vmatprep.subr.mxu0 0.0
        %2162 = vmatpush2.msra.mxu0 0.0
        %2163 = vmatprep.subr.mxu0 0.0
        %2164 = vmatpush2.msra.mxu0 0.0
        %2165 = vmatprep.subr.mxu0 0.0
        %2166 = vmatpush2.msra.mxu0 0.0
        %2167 = vmatprep.subr.mxu0 0.0
        %2168 = vmatpush2.msra.mxu0 0.0
        %2169 = vmatprep.subr.mxu0 0.0
        %2170 = vmatpush2.msra.mxu0 0.0
        %2171 = vmatprep.mubr.f32.mxu0 0.0
        %2172 = vmatmul.mubr.f32.gmra.mxu0 %v2105
        %v2173 = vpop.f32.mrf.mxu0
        %v2174 = vadd.f32 %v2102, %v2173
        %v2175 = vpop.f32.mrf.mxu0
        %2176 = vdwg.mxu0
        %s2177 = scalar_lea.vmem %s25, 64
        %v2178 = vld [vmem:[%s2177] sm:$0xff]
        %v2179 = vld [vmem:[%s2177 + $0x8] sm:$0xff]
        %v2180 = vld [vmem:[%s2177 + $0x10] sm:$0xff]
        %v2181 = vld [vmem:[%s2177 + $0x18] sm:$0xff]
        %v2182 = vld [vmem:[%s2177 + $0x20] sm:$0xff]
        %v2183 = vld [vmem:[%s2177 + $0x28] sm:$0xff]
        %v2184 = vld [vmem:[%s2177 + $0x30] sm:$0xff]
        %v2185 = vld [vmem:[%s2177 + $0x38] sm:$0xff]
        %s2186 = scalar_lea.vmem %s31, 1
        %v2187 = vld [vmem:[%s2186] sm:$0x1]
        %v2189 = vlaneseq
        %v2190 = vshrl.u32 %v2189, 7
        %v2191 = vsub.s32 0, %v2190
        %v2192 = vrot.slane %v2187, %v2191
        %2194 = vmatprep.subr.mxu0 0.0
        %2195 = vmatpush1.msra.mxu0 0.0
        %2196 = vmatprep.subr.mxu0 0.0
        %2197 = vmatpush1.msra.mxu0 0.0
        %2198 = vmatprep.subr.mxu0 0.0
        %2199 = vmatpush1.msra.mxu0 0.0
        %2200 = vmatprep.subr.mxu0 0.0
        %2201 = vmatpush1.msra.mxu0 0.0
        %2202 = vmatprep.subr.mxu0 0.0
        %2203 = vmatpush1.msra.mxu0 0.0
        %2204 = vmatprep.subr.mxu0 0.0
        %2205 = vmatpush1.msra.mxu0 0.0
        %2206 = vmatprep.subr.mxu0 0.0
        %2207 = vmatpush1.msra.mxu0 0.0
        %2208 = vmatprep.subr.mxu0 0.0
        %2209 = vmatpush1.msra.mxu0 0.0
        %2210 = vmatprep.subr.mxu0 0.0
        %2211 = vmatpush1.msra.mxu0 %v2185
        %2212 = vmatprep.subr.mxu0 0.0
        %2213 = vmatpush1.msra.mxu0 %v2184
        %2214 = vmatprep.subr.mxu0 0.0
        %2215 = vmatpush1.msra.mxu0 %v2183
        %2216 = vmatprep.subr.mxu0 0.0
        %2217 = vmatpush1.msra.mxu0 %v2182
        %2218 = vmatprep.subr.mxu0 0.0
        %2219 = vmatpush1.msra.mxu0 %v2181
        %2220 = vmatprep.subr.mxu0 0.0
        %2221 = vmatpush1.msra.mxu0 %v2180
        %2222 = vmatprep.subr.mxu0 0.0
        %2223 = vmatpush1.msra.mxu0 %v2179
        %2224 = vmatprep.subr.mxu0 0.0
        %2225 = vmatpush1.msra.mxu0 %v2178
        %2226 = vmatprep.subr.mxu0 0.0
        %2227 = vmatpush2.msra.mxu0 0.0
        %2228 = vmatprep.subr.mxu0 0.0
        %2229 = vmatpush2.msra.mxu0 0.0
        %2230 = vmatprep.subr.mxu0 0.0
        %2231 = vmatpush2.msra.mxu0 0.0
        %2232 = vmatprep.subr.mxu0 0.0
        %2233 = vmatpush2.msra.mxu0 0.0
        %2234 = vmatprep.subr.mxu0 0.0
        %2235 = vmatpush2.msra.mxu0 0.0
        %2236 = vmatprep.subr.mxu0 0.0
        %2237 = vmatpush2.msra.mxu0 0.0
        %2238 = vmatprep.subr.mxu0 0.0
        %2239 = vmatpush2.msra.mxu0 0.0
        %2240 = vmatprep.subr.mxu0 0.0
        %2241 = vmatpush2.msra.mxu0 0.0
        %2242 = vmatprep.subr.mxu0 0.0
        %2243 = vmatpush2.msra.mxu0 0.0
        %2244 = vmatprep.subr.mxu0 0.0
        %2245 = vmatpush2.msra.mxu0 0.0
        %2246 = vmatprep.subr.mxu0 0.0
        %2247 = vmatpush2.msra.mxu0 0.0
        %2248 = vmatprep.subr.mxu0 0.0
        %2249 = vmatpush2.msra.mxu0 0.0
        %2250 = vmatprep.subr.mxu0 0.0
        %2251 = vmatpush2.msra.mxu0 0.0
        %2252 = vmatprep.subr.mxu0 0.0
        %2253 = vmatpush2.msra.mxu0 0.0
        %2254 = vmatprep.subr.mxu0 0.0
        %2255 = vmatpush2.msra.mxu0 0.0
        %2256 = vmatprep.subr.mxu0 0.0
        %2257 = vmatpush2.msra.mxu0 0.0
        %2258 = vmatprep.mubr.f32.mxu0 0.0
        %2259 = vmatmul.mubr.f32.gmra.mxu0 %v2105
        %v2260 = vpop.f32.mrf.mxu0
        %v2261 = vadd.f32 %v2192, %v2260
        %v2262 = vpop.f32.mrf.mxu0
        %2263 = vdwg.mxu0
        %s2264 = scalar_lea.vmem %s27, 64
        %v2265 = vld [vmem:[%s2264] sm:$0xff]
        %v2266 = vld [vmem:[%s2264 + $0x8] sm:$0xff]
        %v2267 = vld [vmem:[%s2264 + $0x10] sm:$0xff]
        %v2268 = vld [vmem:[%s2264 + $0x18] sm:$0xff]
        %v2269 = vld [vmem:[%s2264 + $0x20] sm:$0xff]
        %v2270 = vld [vmem:[%s2264 + $0x28] sm:$0xff]
        %v2271 = vld [vmem:[%s2264 + $0x30] sm:$0xff]
        %v2272 = vld [vmem:[%s2264 + $0x38] sm:$0xff]
        %s2273 = scalar_lea.vmem %s33, 1
        %v2274 = vld [vmem:[%s2273] sm:$0x1]
        %v2276 = vlaneseq
        %v2277 = vshrl.u32 %v2276, 7
        %v2278 = vsub.s32 0, %v2277
        %v2279 = vrot.slane %v2274, %v2278
        %2281 = vmatprep.subr.mxu0 0.0
        %2282 = vmatpush1.msra.mxu0 0.0
        %2283 = vmatprep.subr.mxu0 0.0
        %2284 = vmatpush1.msra.mxu0 0.0
        %2285 = vmatprep.subr.mxu0 0.0
        %2286 = vmatpush1.msra.mxu0 0.0
        %2287 = vmatprep.subr.mxu0 0.0
        %2288 = vmatpush1.msra.mxu0 0.0
        %2289 = vmatprep.subr.mxu0 0.0
        %2290 = vmatpush1.msra.mxu0 0.0
        %2291 = vmatprep.subr.mxu0 0.0
        %2292 = vmatpush1.msra.mxu0 0.0
        %2293 = vmatprep.subr.mxu0 0.0
        %2294 = vmatpush1.msra.mxu0 0.0
        %2295 = vmatprep.subr.mxu0 0.0
        %2296 = vmatpush1.msra.mxu0 0.0
        %2297 = vmatprep.subr.mxu0 0.0
        %2298 = vmatpush1.msra.mxu0 %v2272
        %2299 = vmatprep.subr.mxu0 0.0
        %2300 = vmatpush1.msra.mxu0 %v2271
        %2301 = vmatprep.subr.mxu0 0.0
        %2302 = vmatpush1.msra.mxu0 %v2270
        %2303 = vmatprep.subr.mxu0 0.0
        %2304 = vmatpush1.msra.mxu0 %v2269
        %2305 = vmatprep.subr.mxu0 0.0
        %2306 = vmatpush1.msra.mxu0 %v2268
        %2307 = vmatprep.subr.mxu0 0.0
        %2308 = vmatpush1.msra.mxu0 %v2267
        %2309 = vmatprep.subr.mxu0 0.0
        %2310 = vmatpush1.msra.mxu0 %v2266
        %2311 = vmatprep.subr.mxu0 0.0
        %2312 = vmatpush1.msra.mxu0 %v2265
        %2313 = vmatprep.subr.mxu0 0.0
        %2314 = vmatpush2.msra.mxu0 0.0
        %2315 = vmatprep.subr.mxu0 0.0
        %2316 = vmatpush2.msra.mxu0 0.0
        %2317 = vmatprep.subr.mxu0 0.0
        %2318 = vmatpush2.msra.mxu0 0.0
        %2319 = vmatprep.subr.mxu0 0.0
        %2320 = vmatpush2.msra.mxu0 0.0
        %2321 = vmatprep.subr.mxu0 0.0
        %2322 = vmatpush2.msra.mxu0 0.0
        %2323 = vmatprep.subr.mxu0 0.0
        %2324 = vmatpush2.msra.mxu0 0.0
        %2325 = vmatprep.subr.mxu0 0.0
        %2326 = vmatpush2.msra.mxu0 0.0
        %2327 = vmatprep.subr.mxu0 0.0
        %2328 = vmatpush2.msra.mxu0 0.0
        %2329 = vmatprep.subr.mxu0 0.0
        %2330 = vmatpush2.msra.mxu0 0.0
        %2331 = vmatprep.subr.mxu0 0.0
        %2332 = vmatpush2.msra.mxu0 0.0
        %2333 = vmatprep.subr.mxu0 0.0
        %2334 = vmatpush2.msra.mxu0 0.0
        %2335 = vmatprep.subr.mxu0 0.0
        %2336 = vmatpush2.msra.mxu0 0.0
        %2337 = vmatprep.subr.mxu0 0.0
        %2338 = vmatpush2.msra.mxu0 0.0
        %2339 = vmatprep.subr.mxu0 0.0
        %2340 = vmatpush2.msra.mxu0 0.0
        %2341 = vmatprep.subr.mxu0 0.0
        %2342 = vmatpush2.msra.mxu0 0.0
        %2343 = vmatprep.subr.mxu0 0.0
        %2344 = vmatpush2.msra.mxu0 0.0
        %2345 = vmatprep.mubr.f32.mxu0 0.0
        %2346 = vmatmul.mubr.f32.gmra.mxu0 %v2105
        %v2347 = vpop.f32.mrf.mxu0
        %v2348 = vadd.f32 %v2279, %v2347
        %v2349 = vpop.f32.mrf.mxu0
        %2350 = vdwg.mxu0
        %v2351 = vmul.f32 %v2174, 0.125
        %v2353 = vsel %vm1267, %v2351, 0
        %v2356 = vsel %vm1267, %v2261, 0
        %2358 = vmatprep.subr.mxu0 0.0
        %2359 = vmatpush1.xpose.msra.mxu0 0.0
        %2360 = vmatprep.subr.mxu0 0.0
        %2361 = vmatpush1.xpose.msra.mxu0 0.0
        %2362 = vmatprep.subr.mxu0 0.0
        %2363 = vmatpush1.xpose.msra.mxu0 0.0
        %2364 = vmatprep.subr.mxu0 0.0
        %2365 = vmatpush1.xpose.msra.mxu0 0.0
        %2366 = vmatprep.subr.mxu0 0.0
        %2367 = vmatpush1.xpose.msra.mxu0 0.0
        %2368 = vmatprep.subr.mxu0 0.0
        %2369 = vmatpush1.xpose.msra.mxu0 0.0
        %2370 = vmatprep.subr.mxu0 0.0
        %2371 = vmatpush1.xpose.msra.mxu0 0.0
        %2372 = vmatprep.subr.mxu0 0.0
        %2373 = vmatpush1.xpose.msra.mxu0 0.0
        %2374 = vmatprep.subr.mxu0 0.0
        %2375 = vmatpush1.xpose.msra.mxu0 0.0
        %2376 = vmatprep.subr.mxu0 0.0
        %2377 = vmatpush1.xpose.msra.mxu0 0.0
        %2378 = vmatprep.subr.mxu0 0.0
        %2379 = vmatpush1.xpose.msra.mxu0 0.0
        %2380 = vmatprep.subr.mxu0 0.0
        %2381 = vmatpush1.xpose.msra.mxu0 0.0
        %2382 = vmatprep.subr.mxu0 0.0
        %2383 = vmatpush1.xpose.msra.mxu0 0.0
        %2384 = vmatprep.subr.mxu0 0.0
        %2385 = vmatpush1.xpose.msra.mxu0 0.0
        %2386 = vmatprep.subr.mxu0 0.0
        %2387 = vmatpush1.xpose.msra.mxu0 0.0
        %2388 = vmatprep.subr.mxu0 0.0
        %2389 = vmatpush1.xpose.msra.mxu0 %v2356
        %2390 = vmatprep.subr.mxu0 0.0
        %2391 = vmatpush2.xpose.msra.mxu0 0.0
        %2392 = vmatprep.subr.mxu0 0.0
        %2393 = vmatpush2.xpose.msra.mxu0 0.0
        %2394 = vmatprep.subr.mxu0 0.0
        %2395 = vmatpush2.xpose.msra.mxu0 0.0
        %2396 = vmatprep.subr.mxu0 0.0
        %2397 = vmatpush2.xpose.msra.mxu0 0.0
        %2398 = vmatprep.subr.mxu0 0.0
        %2399 = vmatpush2.xpose.msra.mxu0 0.0
        %2400 = vmatprep.subr.mxu0 0.0
        %2401 = vmatpush2.xpose.msra.mxu0 0.0
        %2402 = vmatprep.subr.mxu0 0.0
        %2403 = vmatpush2.xpose.msra.mxu0 0.0
        %2404 = vmatprep.subr.mxu0 0.0
        %2405 = vmatpush2.xpose.msra.mxu0 0.0
        %2406 = vmatprep.subr.mxu0 0.0
        %2407 = vmatpush2.xpose.msra.mxu0 0.0
        %2408 = vmatprep.subr.mxu0 0.0
        %2409 = vmatpush2.xpose.msra.mxu0 0.0
        %2410 = vmatprep.subr.mxu0 0.0
        %2411 = vmatpush2.xpose.msra.mxu0 0.0
        %2412 = vmatprep.subr.mxu0 0.0
        %2413 = vmatpush2.xpose.msra.mxu0 0.0
        %2414 = vmatprep.subr.mxu0 0.0
        %2415 = vmatpush2.xpose.msra.mxu0 0.0
        %2416 = vmatprep.subr.mxu0 0.0
        %2417 = vmatpush2.xpose.msra.mxu0 0.0
        %2418 = vmatprep.subr.mxu0 0.0
        %2419 = vmatpush2.xpose.msra.mxu0 0.0
        %2420 = vmatprep.subr.mxu0 0.0
        %2421 = vmatpush2.xpose.msra.mxu0 0.0
        %2422 = vmatprep.mubr.f32.mxu0 0.0
        %2423 = vmatmul.mubr.f32.gmra.mxu0 %v2353
        %v2424 = vpop.f32.mrf.mxu0
        %v2425 = vadd.f32 0.0, %v2424
        %v2426 = vpop.f32.mrf.mxu0
        %2427 = vdwg.mxu0
        %v2428 = vsel %vm1000, %v2425, -inf
        %2429 = vmax.xlane.f32.xlu0 %v2428
        %v2430 = vpop.xlane.xlu0 %2429
        %v2431 = vsub.f32 %v2425, %v2430
        %v2432 = vmul.f32 %v2431, 1.442695
        %v2433 = vpow.pop %v2432
        %v2434 = vsel %vm1000, %v2433, 0.0
        %2435 = vadd.xlane.f32.xlu0 %v2434
        %v2436 = vpop.xlane.xlu0 %2435
        %v2437 = vrcp.pop %v2436
        %v2438 = vmul.f32 %v2433, %v2437
        %v2440 = vsel %vm1000, %v2438, 0
        %2442 = vmatprep.subr.mxu0 0.0
        %2443 = vmatpush1.msra.mxu0 0.0
        %2444 = vmatprep.subr.mxu0 0.0
        %2445 = vmatpush1.msra.mxu0 0.0
        %2446 = vmatprep.subr.mxu0 0.0
        %2447 = vmatpush1.msra.mxu0 0.0
        %2448 = vmatprep.subr.mxu0 0.0
        %2449 = vmatpush1.msra.mxu0 0.0
        %2450 = vmatprep.subr.mxu0 0.0
        %2451 = vmatpush1.msra.mxu0 0.0
        %2452 = vmatprep.subr.mxu0 0.0
        %2453 = vmatpush1.msra.mxu0 0.0
        %2454 = vmatprep.subr.mxu0 0.0
        %2455 = vmatpush1.msra.mxu0 0.0
        %2456 = vmatprep.subr.mxu0 0.0
        %2457 = vmatpush1.msra.mxu0 0.0
        %2458 = vmatprep.subr.mxu0 0.0
        %2459 = vmatpush1.msra.mxu0 0.0
        %2460 = vmatprep.subr.mxu0 0.0
        %2461 = vmatpush1.msra.mxu0 0.0
        %2462 = vmatprep.subr.mxu0 0.0
        %2463 = vmatpush1.msra.mxu0 0.0
        %2464 = vmatprep.subr.mxu0 0.0
        %2465 = vmatpush1.msra.mxu0 0.0
        %2466 = vmatprep.subr.mxu0 0.0
        %2467 = vmatpush1.msra.mxu0 0.0
        %2468 = vmatprep.subr.mxu0 0.0
        %2469 = vmatpush1.msra.mxu0 0.0
        %2470 = vmatprep.subr.mxu0 0.0
        %2471 = vmatpush1.msra.mxu0 0.0
        %2472 = vmatprep.subr.mxu0 0.0
        %2473 = vmatpush1.msra.mxu0 %v2348
        %2474 = vmatprep.subr.mxu0 0.0
        %2475 = vmatpush2.msra.mxu0 0.0
        %2476 = vmatprep.subr.mxu0 0.0
        %2477 = vmatpush2.msra.mxu0 0.0
        %2478 = vmatprep.subr.mxu0 0.0
        %2479 = vmatpush2.msra.mxu0 0.0
        %2480 = vmatprep.subr.mxu0 0.0
        %2481 = vmatpush2.msra.mxu0 0.0
        %2482 = vmatprep.subr.mxu0 0.0
        %2483 = vmatpush2.msra.mxu0 0.0
        %2484 = vmatprep.subr.mxu0 0.0
        %2485 = vmatpush2.msra.mxu0 0.0
        %2486 = vmatprep.subr.mxu0 0.0
        %2487 = vmatpush2.msra.mxu0 0.0
        %2488 = vmatprep.subr.mxu0 0.0
        %2489 = vmatpush2.msra.mxu0 0.0
        %2490 = vmatprep.subr.mxu0 0.0
        %2491 = vmatpush2.msra.mxu0 0.0
        %2492 = vmatprep.subr.mxu0 0.0
        %2493 = vmatpush2.msra.mxu0 0.0
        %2494 = vmatprep.subr.mxu0 0.0
        %2495 = vmatpush2.msra.mxu0 0.0
        %2496 = vmatprep.subr.mxu0 0.0
        %2497 = vmatpush2.msra.mxu0 0.0
        %2498 = vmatprep.subr.mxu0 0.0
        %2499 = vmatpush2.msra.mxu0 0.0
        %2500 = vmatprep.subr.mxu0 0.0
        %2501 = vmatpush2.msra.mxu0 0.0
        %2502 = vmatprep.subr.mxu0 0.0
        %2503 = vmatpush2.msra.mxu0 0.0
        %2504 = vmatprep.subr.mxu0 0.0
        %2505 = vmatpush2.msra.mxu0 0.0
        %2506 = vmatprep.mubr.f32.mxu0 0.0
        %2507 = vmatmul.mubr.f32.gmra.mxu0 %v2440
        %v2508 = vpop.f32.mrf.mxu0
        %v2509 = vadd.f32 0.0, %v2508
        %v2510 = vpop.f32.mrf.mxu0
        %2511 = vdwg.mxu0
        %s2512 = scalar_lea.vmem %s35, 64
        %v2513 = vld [vmem:[%s2512] sm:$0xff]
        %v2514 = vld [vmem:[%s2512 + $0x8] sm:$0xff]
        %v2515 = vld [vmem:[%s2512 + $0x10] sm:$0xff]
        %v2516 = vld [vmem:[%s2512 + $0x18] sm:$0xff]
        %v2517 = vld [vmem:[%s2512 + $0x20] sm:$0xff]
        %v2518 = vld [vmem:[%s2512 + $0x28] sm:$0xff]
        %v2519 = vld [vmem:[%s2512 + $0x30] sm:$0xff]
        %v2520 = vld [vmem:[%s2512 + $0x38] sm:$0xff]
        %s2521 = scalar_lea.vmem %s37, 1
        %v2522 = vld [vmem:[%s2521] sm:$0x1]
        %v2524 = vlaneseq
        %v2525 = vshrl.u32 %v2524, 7
        %v2526 = vsub.s32 0, %v2525
        %v2527 = vrot.slane %v2522, %v2526
        %v2530 = vsel %vm1267, %v2509, 0
        %2532 = vmatprep.subr.mxu0 0.0
        %2533 = vmatpush1.msra.mxu0 0.0
        %2534 = vmatprep.subr.mxu0 0.0
        %2535 = vmatpush1.msra.mxu0 0.0
        %2536 = vmatprep.subr.mxu0 0.0
        %2537 = vmatpush1.msra.mxu0 0.0
        %2538 = vmatprep.subr.mxu0 0.0
        %2539 = vmatpush1.msra.mxu0 0.0
        %2540 = vmatprep.subr.mxu0 0.0
        %2541 = vmatpush1.msra.mxu0 0.0
        %2542 = vmatprep.subr.mxu0 0.0
        %2543 = vmatpush1.msra.mxu0 0.0
        %2544 = vmatprep.subr.mxu0 0.0
        %2545 = vmatpush1.msra.mxu0 0.0
        %2546 = vmatprep.subr.mxu0 0.0
        %2547 = vmatpush1.msra.mxu0 0.0
        %2548 = vmatprep.subr.mxu0 0.0
        %2549 = vmatpush1.msra.mxu0 %v2520
        %2550 = vmatprep.subr.mxu0 0.0
        %2551 = vmatpush1.msra.mxu0 %v2519
        %2552 = vmatprep.subr.mxu0 0.0
        %2553 = vmatpush1.msra.mxu0 %v2518
        %2554 = vmatprep.subr.mxu0 0.0
        %2555 = vmatpush1.msra.mxu0 %v2517
        %2556 = vmatprep.subr.mxu0 0.0
        %2557 = vmatpush1.msra.mxu0 %v2516
        %2558 = vmatprep.subr.mxu0 0.0
        %2559 = vmatpush1.msra.mxu0 %v2515
        %2560 = vmatprep.subr.mxu0 0.0
        %2561 = vmatpush1.msra.mxu0 %v2514
        %2562 = vmatprep.subr.mxu0 0.0
        %2563 = vmatpush1.msra.mxu0 %v2513
        %2564 = vmatprep.subr.mxu0 0.0
        %2565 = vmatpush2.msra.mxu0 0.0
        %2566 = vmatprep.subr.mxu0 0.0
        %2567 = vmatpush2.msra.mxu0 0.0
        %2568 = vmatprep.subr.mxu0 0.0
        %2569 = vmatpush2.msra.mxu0 0.0
        %2570 = vmatprep.subr.mxu0 0.0
        %2571 = vmatpush2.msra.mxu0 0.0
        %2572 = vmatprep.subr.mxu0 0.0
        %2573 = vmatpush2.msra.mxu0 0.0
        %2574 = vmatprep.subr.mxu0 0.0
        %2575 = vmatpush2.msra.mxu0 0.0
        %2576 = vmatprep.subr.mxu0 0.0
        %2577 = vmatpush2.msra.mxu0 0.0
        %2578 = vmatprep.subr.mxu0 0.0
        %2579 = vmatpush2.msra.mxu0 0.0
        %2580 = vmatprep.subr.mxu0 0.0
        %2581 = vmatpush2.msra.mxu0 0.0
        %2582 = vmatprep.subr.mxu0 0.0
        %2583 = vmatpush2.msra.mxu0 0.0
        %2584 = vmatprep.subr.mxu0 0.0
        %2585 = vmatpush2.msra.mxu0 0.0
        %2586 = vmatprep.subr.mxu0 0.0
        %2587 = vmatpush2.msra.mxu0 0.0
        %2588 = vmatprep.subr.mxu0 0.0
        %2589 = vmatpush2.msra.mxu0 0.0
        %2590 = vmatprep.subr.mxu0 0.0
        %2591 = vmatpush2.msra.mxu0 0.0
        %2592 = vmatprep.subr.mxu0 0.0
        %2593 = vmatpush2.msra.mxu0 0.0
        %2594 = vmatprep.subr.mxu0 0.0
        %2595 = vmatpush2.msra.mxu0 0.0
        %2596 = vmatprep.mubr.f32.mxu0 0.0
        %2597 = vmatmul.mubr.f32.gmra.mxu0 %v2530
        %v2598 = vpop.f32.mrf.mxu0
        %v2599 = vadd.f32 %v2527, %v2598
        %v2600 = vpop.f32.mrf.mxu0
        %2601 = vdwg.mxu0
        %v2602 = vadd.f32 %v2086, %v2599
        %s2603 = scalar_lea.vmem %s39, 1
        %v2604 = vld [vmem:[%s2603] sm:$0x1]
        %s2605 = scalar_lea.vmem %s41, 1
        %v2606 = vld [vmem:[%s2605] sm:$0x1]
        %v2607 = vsel %vm1267, %v2602, 0.0
        %2608 = vadd.xlane.f32.xlu0 %v2607
        %v2609 = vpop.xlane.xlu0 %2608
        %v2610 = vmul.f32 %v2609, %v1271
        %v2611 = vsub.f32 %v2602, %v2610
        %v2612 = vmul.f32 %v2611, %v2611
        %v2613 = vsel %vm1267, %v2612, 0.0
        %2614 = vadd.xlane.f32.xlu0 %v2613
        %v2615 = vpop.xlane.xlu0 %2614
        %v2616 = vmul.f32 %v2615, %v1271
        %v2617 = vadd.f32 %v2616, 1e-05
        %v2618 = vrsqrt.pop %v2617
        %v2619 = vmul.f32 %v2611, %v2618
        %v2621 = vlaneseq
        %v2622 = vshrl.u32 %v2621, 7
        %v2623 = vsub.s32 0, %v2622
        %v2624 = vrot.slane %v2604, %v2623
        %v2626 = vmul.f32 %v2619, %v2624
        %v2628 = vlaneseq
        %v2629 = vshrl.u32 %v2628, 7
        %v2630 = vsub.s32 0, %v2629
        %v2631 = vrot.slane %v2606, %v2630
        %v2633 = vadd.f32 %v2626, %v2631
        %s2634 = scalar_lea.vmem %s43, 128
        %v2635 = vld [vmem:[%s2634] sm:$0xff]
        %v2636 = vld [vmem:[%s2634 + $0x8] sm:$0xff]
        %v2637 = vld [vmem:[%s2634 + $0x10] sm:$0xff]
        %v2638 = vld [vmem:[%s2634 + $0x18] sm:$0xff]
        %v2639 = vld [vmem:[%s2634 + $0x20] sm:$0xff]
        %v2640 = vld [vmem:[%s2634 + $0x28] sm:$0xff]
        %v2641 = vld [vmem:[%s2634 + $0x30] sm:$0xff]
        %v2642 = vld [vmem:[%s2634 + $0x38] sm:$0xff]
        %v2643 = vld [vmem:[%s2634 + $0x40] sm:$0xff]
        %v2644 = vld [vmem:[%s2634 + $0x48] sm:$0xff]
        %v2645 = vld [vmem:[%s2634 + $0x50] sm:$0xff]
        %v2646 = vld [vmem:[%s2634 + $0x58] sm:$0xff]
        %v2647 = vld [vmem:[%s2634 + $0x60] sm:$0xff]
        %v2648 = vld [vmem:[%s2634 + $0x68] sm:$0xff]
        %v2649 = vld [vmem:[%s2634 + $0x70] sm:$0xff]
        %v2650 = vld [vmem:[%s2634 + $0x78] sm:$0xff]
        %s2651 = scalar_lea.vmem %s45, 2
        %v2652 = vld [vmem:[%s2651] sm:$0x3]
        %v2654 = vlaneseq
        %v2655 = vshrl.u32 %v2654, 7
        %v2656 = vsub.s32 0, %v2655
        %v2657 = vrot.slane %v2652, %v2656
        %v2658 = vlaneseq
        %v2659 = vshrl.u32 %v2658, 7
        %v2660 = vsub.s32 1, %v2659
        %v2661 = vrot.slane %v2652, %v2660
        %v2665 = vsel %vm1267, %v2633, 0
        %2667 = vmatprep.subr.mxu0 0.0
        %2668 = vmatpush1.msra.mxu0 0.0
        %2669 = vmatprep.subr.mxu0 0.0
        %2670 = vmatpush1.msra.mxu0 0.0
        %2671 = vmatprep.subr.mxu0 0.0
        %2672 = vmatpush1.msra.mxu0 0.0
        %2673 = vmatprep.subr.mxu0 0.0
        %2674 = vmatpush1.msra.mxu0 0.0
        %2675 = vmatprep.subr.mxu0 0.0
        %2676 = vmatpush1.msra.mxu0 0.0
        %2677 = vmatprep.subr.mxu0 0.0
        %2678 = vmatpush1.msra.mxu0 0.0
        %2679 = vmatprep.subr.mxu0 0.0
        %2680 = vmatpush1.msra.mxu0 0.0
        %2681 = vmatprep.subr.mxu0 0.0
        %2682 = vmatpush1.msra.mxu0 0.0
        %2683 = vmatprep.subr.mxu0 %v2650
        %2684 = vmatpush1.msra.mxu0 %v2649
        %2685 = vmatprep.subr.mxu0 %v2648
        %2686 = vmatpush1.msra.mxu0 %v2647
        %2687 = vmatprep.subr.mxu0 %v2646
        %2688 = vmatpush1.msra.mxu0 %v2645
        %2689 = vmatprep.subr.mxu0 %v2644
        %2690 = vmatpush1.msra.mxu0 %v2643
        %2691 = vmatprep.subr.mxu0 %v2642
        %2692 = vmatpush1.msra.mxu0 %v2641
        %2693 = vmatprep.subr.mxu0 %v2640
        %2694 = vmatpush1.msra.mxu0 %v2639
        %2695 = vmatprep.subr.mxu0 %v2638
        %2696 = vmatpush1.msra.mxu0 %v2637
        %2697 = vmatprep.subr.mxu0 %v2636
        %2698 = vmatpush1.msra.mxu0 %v2635
        %2699 = vmatprep.subr.mxu0 0.0
        %2700 = vmatpush2.msra.mxu0 0.0
        %2701 = vmatprep.subr.mxu0 0.0
        %2702 = vmatpush2.msra.mxu0 0.0
        %2703 = vmatprep.subr.mxu0 0.0
        %2704 = vmatpush2.msra.mxu0 0.0
        %2705 = vmatprep.subr.mxu0 0.0
        %2706 = vmatpush2.msra.mxu0 0.0
        %2707 = vmatprep.subr.mxu0 0.0
        %2708 = vmatpush2.msra.mxu0 0.0
        %2709 = vmatprep.subr.mxu0 0.0
        %2710 = vmatpush2.msra.mxu0 0.0
        %2711 = vmatprep.subr.mxu0 0.0
        %2712 = vmatpush2.msra.mxu0 0.0
        %2713 = vmatprep.subr.mxu0 0.0
        %2714 = vmatpush2.msra.mxu0 0.0
        %2715 = vmatprep.subr.mxu0 0.0
        %2716 = vmatpush2.msra.mxu0 0.0
        %2717 = vmatprep.subr.mxu0 0.0
        %2718 = vmatpush2.msra.mxu0 0.0
        %2719 = vmatprep.subr.mxu0 0.0
        %2720 = vmatpush2.msra.mxu0 0.0
        %2721 = vmatprep.subr.mxu0 0.0
        %2722 = vmatpush2.msra.mxu0 0.0
        %2723 = vmatprep.subr.mxu0 0.0
        %2724 = vmatpush2.msra.mxu0 0.0
        %2725 = vmatprep.subr.mxu0 0.0
        %2726 = vmatpush2.msra.mxu0 0.0
        %2727 = vmatprep.subr.mxu0 0.0
        %2728 = vmatpush2.msra.mxu0 0.0
        %2729 = vmatprep.subr.mxu0 0.0
        %2730 = vmatpush2.msra.mxu0 0.0
        %2731 = vmatprep.mubr.f32.mxu0 0.0
        %2732 = vmatmul.mubr.f32.gmra.mxu0 %v2665
        %v2733 = vpop.f32.mrf.mxu0
        %v2734 = vadd.f32 %v2657, %v2733
        %v2735 = vpop.f32.mrf.mxu0
        %v2736 = vadd.f32 %v2661, %v2735
        %2737 = vdwg.mxu0
        %v2738 = vmax.f32 %v2734, 0.0
        %v2739 = vmax.f32 %v2736, 0.0
        %s2740 = scalar_lea.vmem %s47, 256
        %v2741 = vld [vmem:[%s2740] sm:$0xff]
        %v2742 = vld [vmem:[%s2740 + $0x8] sm:$0xff]
        %v2743 = vld [vmem:[%s2740 + $0x10] sm:$0xff]
        %v2744 = vld [vmem:[%s2740 + $0x18] sm:$0xff]
        %v2745 = vld [vmem:[%s2740 + $0x20] sm:$0xff]
        %v2746 = vld [vmem:[%s2740 + $0x28] sm:$0xff]
        %v2747 = vld [vmem:[%s2740 + $0x30] sm:$0xff]
        %v2748 = vld [vmem:[%s2740 + $0x38] sm:$0xff]
        %v2749 = vld [vmem:[%s2740 + $0x40] sm:$0xff]
        %v2750 = vld [vmem:[%s2740 + $0x48] sm:$0xff]
        %v2751 = vld [vmem:[%s2740 + $0x50] sm:$0xff]
        %v2752 = vld [vmem:[%s2740 + $0x58] sm:$0xff]
        %v2753 = vld [vmem:[%s2740 + $0x60] sm:$0xff]
        %v2754 = vld [vmem:[%s2740 + $0x68] sm:$0xff]
        %v2755 = vld [vmem:[%s2740 + $0x70] sm:$0xff]
        %v2756 = vld [vmem:[%s2740 + $0x78] sm:$0xff]
        %v2757 = vld [vmem:[%s2740 + $0x80] sm:$0xff]
        %v2758 = vld [vmem:[%s2740 + $0x88] sm:$0xff]
        %v2759 = vld [vmem:[%s2740 + $0x90] sm:$0xff]
        %v2760 = vld [vmem:[%s2740 + $0x98] sm:$0xff]
        %v2761 = vld [vmem:[%s2740 + $0xa0] sm:$0xff]
        %v2762 = vld [vmem:[%s2740 + $0xa8] sm:$0xff]
        %v2763 = vld [vmem:[%s2740 + $0xb0] sm:$0xff]
        %v2764 = vld [vmem:[%s2740 + $0xb8] sm:$0xff]
        %v2765 = vld [vmem:[%s2740 + $0xc0] sm:$0xff]
        %v2766 = vld [vmem:[%s2740 + $0xc8] sm:$0xff]
        %v2767 = vld [vmem:[%s2740 + $0xd0] sm:$0xff]
        %v2768 = vld [vmem:[%s2740 + $0xd8] sm:$0xff]
        %v2769 = vld [vmem:[%s2740 + $0xe0] sm:$0xff]
        %v2770 = vld [vmem:[%s2740 + $0xe8] sm:$0xff]
        %v2771 = vld [vmem:[%s2740 + $0xf0] sm:$0xff]
        %v2772 = vld [vmem:[%s2740 + $0xf8] sm:$0xff]
        %s2773 = scalar_lea.vmem %s49, 1
        %v2774 = vld [vmem:[%s2773] sm:$0x1]
        %v2776 = vlaneseq
        %v2777 = vshrl.u32 %v2776, 7
        %v2778 = vsub.s32 0, %v2777
        %v2779 = vrot.slane %v2774, %v2778
        %2781 = vmatprep.subr.mxu0 0.0
        %2782 = vmatpush1.msra.mxu0 %v2756
        %2783 = vmatprep.subr.mxu0 0.0
        %2784 = vmatpush1.msra.mxu0 %v2755
        %2785 = vmatprep.subr.mxu0 0.0
        %2786 = vmatpush1.msra.mxu0 %v2754
        %2787 = vmatprep.subr.mxu0 0.0
        %2788 = vmatpush1.msra.mxu0 %v2753
        %2789 = vmatprep.subr.mxu0 0.0
        %2790 = vmatpush1.msra.mxu0 %v2752
        %2791 = vmatprep.subr.mxu0 0.0
        %2792 = vmatpush1.msra.mxu0 %v2751
        %2793 = vmatprep.subr.mxu0 0.0
        %2794 = vmatpush1.msra.mxu0 %v2750
        %2795 = vmatprep.subr.mxu0 0.0
        %2796 = vmatpush1.msra.mxu0 %v2749
        %2797 = vmatprep.subr.mxu0 0.0
        %2798 = vmatpush1.msra.mxu0 %v2748
        %2799 = vmatprep.subr.mxu0 0.0
        %2800 = vmatpush1.msra.mxu0 %v2747
        %2801 = vmatprep.subr.mxu0 0.0
        %2802 = vmatpush1.msra.mxu0 %v2746
        %2803 = vmatprep.subr.mxu0 0.0
        %2804 = vmatpush1.msra.mxu0 %v2745
        %2805 = vmatprep.subr.mxu0 0.0
        %2806 = vmatpush1.msra.mxu0 %v2744
        %2807 = vmatprep.subr.mxu0 0.0
        %2808 = vmatpush1.msra.mxu0 %v2743
        %2809 = vmatprep.subr.mxu0 0.0
        %2810 = vmatpush1.msra.mxu0 %v2742
        %2811 = vmatprep.subr.mxu0 0.0
        %2812 = vmatpush1.msra.mxu0 %v2741
        %2813 = vmatprep.subr.mxu0 0.0
        %2814 = vmatpush2.msra.mxu0 %v2772
        %2815 = vmatprep.subr.mxu0 0.0
        %2816 = vmatpush2.msra.mxu0 %v2771
        %2817 = vmatprep.subr.mxu0 0.0
        %2818 = vmatpush2.msra.mxu0 %v2770
        %2819 = vmatprep.subr.mxu0 0.0
        %2820 = vmatpush2.msra.mxu0 %v2769
        %2821 = vmatprep.subr.mxu0 0.0
        %2822 = vmatpush2.msra.mxu0 %v2768
        %2823 = vmatprep.subr.mxu0 0.0
        %2824 = vmatpush2.msra.mxu0 %v2767
        %2825 = vmatprep.subr.mxu0 0.0
        %2826 = vmatpush2.msra.mxu0 %v2766
        %2827 = vmatprep.subr.mxu0 0.0
        %2828 = vmatpush2.msra.mxu0 %v2765
        %2829 = vmatprep.subr.mxu0 0.0
        %2830 = vmatpush2.msra.mxu0 %v2764
        %2831 = vmatprep.subr.mxu0 0.0
        %2832 = vmatpush2.msra.mxu0 %v2763
        %2833 = vmatprep.subr.mxu0 0.0
        %2834 = vmatpush2.msra.mxu0 %v2762
        %2835 = vmatprep.subr.mxu0 0.0
        %2836 = vmatpush2.msra.mxu0 %v2761
        %2837 = vmatprep.subr.mxu0 0.0
        %2838 = vmatpush2.msra.mxu0 %v2760
        %2839 = vmatprep.subr.mxu0 0.0
        %2840 = vmatpush2.msra.mxu0 %v2759
        %2841 = vmatprep.subr.mxu0 0.0
        %2842 = vmatpush2.msra.mxu0 %v2758
        %2843 = vmatprep.subr.mxu0 0.0
        %2844 = vmatpush2.msra.mxu0 %v2757
        %2845 = vmatprep.mubr.f32.mxu0 %v2739
        %2846 = vmatmul.mubr.f32.gmra.mxu0 %v2738
        %v2847 = vpop.f32.mrf.mxu0
        %v2848 = vadd.f32 %v2779, %v2847
        %v2849 = vpop.f32.mrf.mxu0
        %2850 = vdwg.mxu0
        %v2851 = vadd.f32 %v2633, %v2848
        %s2852 = scalar_lea.vmem %s51, 1
        %v2853 = vld [vmem:[%s2852] sm:$0x1]
        %s2854 = scalar_lea.vmem %s53, 1
        %v2855 = vld [vmem:[%s2854] sm:$0x1]
        %v2856 = vsel %vm1267, %v2851, 0.0
        %2857 = vadd.xlane.f32.xlu0 %v2856
        %v2858 = vpop.xlane.xlu0 %2857
        %v2859 = vmul.f32 %v2858, %v1271
        %v2860 = vsub.f32 %v2851, %v2859
        %v2861 = vmul.f32 %v2860, %v2860
        %v2862 = vsel %vm1267, %v2861, 0.0
        %2863 = vadd.xlane.f32.xlu0 %v2862
        %v2864 = vpop.xlane.xlu0 %2863
        %v2865 = vmul.f32 %v2864, %v1271
        %v2866 = vadd.f32 %v2865, 1e-05
        %v2867 = vrsqrt.pop %v2866
        %v2868 = vmul.f32 %v2860, %v2867
        %v2870 = vlaneseq
        %v2871 = vshrl.u32 %v2870, 7
        %v2872 = vsub.s32 0, %v2871
        %v2873 = vrot.slane %v2853, %v2872
        %v2875 = vmul.f32 %v2868, %v2873
        %v2877 = vlaneseq
        %v2878 = vshrl.u32 %v2877, 7
        %v2879 = vsub.s32 0, %v2878
        %v2880 = vrot.slane %v2855, %v2879
        %v2882 = vadd.f32 %v2875, %v2880
        %v2883 = vsel %vm1267, %v2882, 0.0
        %v2884 = vrot.slane %v2883, 4
        %v2885 = vadd.f32 %v2883, %v2884
        %v2886 = vrot.slane %v2885, 2
        %v2887 = vadd.f32 %v2885, %v2886
        %v2888 = vrot.slane %v2887, 1
        %v2889 = vadd.f32 %v2887, %v2888
        %v2890 = vrcp.pop 8.0
        %v2891 = vmul.f32 %v2889, %v2890
        %vm2892 = vcmask 516096
        %2893 = vst.msk [vmem:[%s949] sm:$0x1] %vm2892, %v2891
        %v2894 = vld [vmem:[#allocation2] sm:$0xff]
        %v2895 = vld [vmem:[#allocation2 + $0x8] sm:$0xff]
        %v2896 = vld [vmem:[#allocation2 + $0x10] sm:$0xff]
        %v2897 = vld [vmem:[#allocation2 + $0x18] sm:$0xff]
        %v2898 = vld [vmem:[#allocation2 + $0x20] sm:$0xff]
        %v2899 = vld [vmem:[#allocation2 + $0x28] sm:$0xff]
        %v2900 = vld [vmem:[#allocation2 + $0x30] sm:$0xff]
        %v2901 = vld [vmem:[#allocation2 + $0x38] sm:$0xff]
        %v2902 = vld [vmem:[%s57] sm:$0x1]
        %v2904 = vsel %vm1267, %v2891, 0
        %2906 = vmatprep.subr.mxu0 0.0
        %2907 = vmatpush1.msra.mxu0 0.0
        %2908 = vmatprep.subr.mxu0 0.0
        %2909 = vmatpush1.msra.mxu0 0.0
        %2910 = vmatprep.subr.mxu0 0.0
        %2911 = vmatpush1.msra.mxu0 0.0
        %2912 = vmatprep.subr.mxu0 0.0
        %2913 = vmatpush1.msra.mxu0 0.0
        %2914 = vmatprep.subr.mxu0 0.0
        %2915 = vmatpush1.msra.mxu0 0.0
        %2916 = vmatprep.subr.mxu0 0.0
        %2917 = vmatpush1.msra.mxu0 0.0
        %2918 = vmatprep.subr.mxu0 0.0
        %2919 = vmatpush1.msra.mxu0 0.0
        %2920 = vmatprep.subr.mxu0 0.0
        %2921 = vmatpush1.msra.mxu0 0.0
        %2922 = vmatprep.subr.mxu0 0.0
        %2923 = vmatpush1.msra.mxu0 %v2901
        %2924 = vmatprep.subr.mxu0 0.0
        %2925 = vmatpush1.msra.mxu0 %v2900
        %2926 = vmatprep.subr.mxu0 0.0
        %2927 = vmatpush1.msra.mxu0 %v2899
        %2928 = vmatprep.subr.mxu0 0.0
        %2929 = vmatpush1.msra.mxu0 %v2898
        %2930 = vmatprep.subr.mxu0 0.0
        %2931 = vmatpush1.msra.mxu0 %v2897
        %2932 = vmatprep.subr.mxu0 0.0
        %2933 = vmatpush1.msra.mxu0 %v2896
        %2934 = vmatprep.subr.mxu0 0.0
        %2935 = vmatpush1.msra.mxu0 %v2895
        %2936 = vmatprep.subr.mxu0 0.0
        %2937 = vmatpush1.msra.mxu0 %v2894
        %2938 = vmatprep.subr.mxu0 0.0
        %2939 = vmatpush2.msra.mxu0 0.0
        %2940 = vmatprep.subr.mxu0 0.0
        %2941 = vmatpush2.msra.mxu0 0.0
        %2942 = vmatprep.subr.mxu0 0.0
        %2943 = vmatpush2.msra.mxu0 0.0
        %2944 = vmatprep.subr.mxu0 0.0
        %2945 = vmatpush2.msra.mxu0 0.0
        %2946 = vmatprep.subr.mxu0 0.0
        %2947 = vmatpush2.msra.mxu0 0.0
        %2948 = vmatprep.subr.mxu0 0.0
        %2949 = vmatpush2.msra.mxu0 0.0
        %2950 = vmatprep.subr.mxu0 0.0
        %2951 = vmatpush2.msra.mxu0 0.0
        %2952 = vmatprep.subr.mxu0 0.0
        %2953 = vmatpush2.msra.mxu0 0.0
        %2954 = vmatprep.subr.mxu0 0.0
        %2955 = vmatpush2.msra.mxu0 0.0
        %2956 = vmatprep.subr.mxu0 0.0
        %2957 = vmatpush2.msra.mxu0 0.0
        %2958 = vmatprep.subr.mxu0 0.0
        %2959 = vmatpush2.msra.mxu0 0.0
        %2960 = vmatprep.subr.mxu0 0.0
        %2961 = vmatpush2.msra.mxu0 0.0
        %2962 = vmatprep.subr.mxu0 0.0
        %2963 = vmatpush2.msra.mxu0 0.0
        %2964 = vmatprep.subr.mxu0 0.0
        %2965 = vmatpush2.msra.mxu0 0.0
        %2966 = vmatprep.subr.mxu0 0.0
        %2967 = vmatpush2.msra.mxu0 0.0
        %2968 = vmatprep.subr.mxu0 0.0
        %2969 = vmatpush2.msra.mxu0 0.0
        %2970 = vmatprep.mubr.f32.mxu0 0.0
        %2971 = vmatmul.mubr.f32.gmra.mxu0 %v2904
        %v2972 = vpop.f32.mrf.mxu0
        %v2973 = vadd.f32 %v2902, %v2972
        %v2974 = vpop.f32.mrf.mxu0
        %2975 = vdwg.mxu0
        %2976 = vst [vmem:[%s965] sm:$0x1] %v2973
        %s2977 = sand.u32 %s704, 1
        %s2978 = scalar_lea.sflag [#allocation4], %s2977
        %s2979 = sand.u32 %s704, 1
        %s2980 = scalar_lea.vmem [#allocation5], %s2979
        %p2981 = scmp.lt.s32.totalorder %s77, 1
        %s2982 = scalar_select %p2981, %s77, 1
        %s2983 = scalar_lea.vmem %s61, %s2982
        // Predicated region
        $region141: #{transnet2_forward.1} parent=135 // pred_check
          %p2984 = pneg %p714
        $region142: #{transnet2_forward.1} parent=135 // pred_check_branch
          %2986 = sbr.rel (%p2984) target = $region144
        $region143: #{transnet2_forward.1} parent=135 // pred_region
          %s2988 = ssub.s32 16, 16
          %2989 = vsyncadd %s2978, %s2988
          %s2990 = smul.addr %s77, 16
          %s2991 = scalar_lea.hbm %s59, %s2990
          %s2993 = sshll.u32 %s2980, 4
          %s2994 = int_to_ptr.vmem [resolvable:$true] %s2993
          %2996 = dma.vmem_to_hbm [thread:$0]  %s2994, 16, %s2991, %s2978
        $region144: #{transnet2_forward.1} parent=135 // pred_fallthru
          _
        // Predicated region
        $region145: #{transnet2_forward.1} parent=135 // pred_check
          %p2997 = pneg %p740
        $region146: #{transnet2_forward.1} parent=135 // pred_check_branch
          %2999 = sbr.rel (%p2997) target = $region148
        $region147: #{transnet2_forward.1} parent=135 // pred_region
          _
        $region148: #{transnet2_forward.1} parent=135 // pred_fallthru
          _
      $region136: #{transnet2_forward.1} parent=5 // pred_fallthru
        _
      %p3000 = scmp.le.s32.totalorder 2, %s72
      // Predicated region
      $region149: #{transnet2_forward.1} parent=5 // pred_check
        %p3001 = pneg %p3000
      $region150: #{transnet2_forward.1} parent=5 // pred_check_branch
        %3003 = sbr.rel (%p3001) target = $region152
      $region151: #{transnet2_forward.1} parent=5 // pred_region
        %s3004 = ssub.s32 %s72, 2
        // Predicated region
        $region153: #{transnet2_forward.1} parent=151 // pred_check
          %p3005 = pneg %p720
        $region154: #{transnet2_forward.1} parent=151 // pred_check_branch
          %3007 = sbr.rel (%p3005) target = $region156
        $region155: #{transnet2_forward.1} parent=151 // pred_region
          %s3008 = sand.u32 %s705, 1
          %s3009 = scalar_lea.sflag [#allocation4], %s3008
          %s3010 = sand.u32 %s705, 1
          %s3011 = scalar_lea.vmem [#allocation5], %s3010
          %3012 = dma.done %s3009, 16
        $region156: #{transnet2_forward.1} parent=151 // pred_fallthru
          _
        // Predicated region
        $region157: #{transnet2_forward.1} parent=151 // pred_check
          %p3013 = pneg %p746
        $region158: #{transnet2_forward.1} parent=151 // pred_check_branch
          %3015 = sbr.rel (%p3013) target = $region160
        $region159: #{transnet2_forward.1} parent=151 // pred_region
          %p3016 = scmp.lt.s32.totalorder %s78, 1
          %s3017 = scalar_select %p3016, %s78, 1
          %s3018 = scalar_lea.vmem %s61, %s3017
        $region160: #{transnet2_forward.1} parent=151 // pred_fallthru
          _
      $region152: #{transnet2_forward.1} parent=5 // pred_fallthru
        _
    $region6: #{transnet2_forward.1} parent=1 // loop_footer
      %s76 = sadd.s32 1, %s72
    $region7: #{transnet2_forward.1} parent=1 // loop_footer_branch
      %71 = sbr.rel target = $region3
    $region8: #{transnet2_forward.1} parent=1 // loop_exit
      _
    %3019 = vsyncpa [#allocation3], 1
    %s3020 = scalar_lea.sflag [#allocation3], 1
    %3021 = vsyncpa %s3020, 1
    %3022 = vsyncpa [#allocation4], 1
    %s3023 = scalar_lea.sflag [#allocation4], 1
    %3024 = vsyncpa %s3023, 1

</llo_original>
